<compile_context>
chip_gen: v6e
topology: v6e:2x2x1
jax: 0.10.0
libtpu: 0.0.40
codegen_flags: <defaults>
</compile_context>

<pallas_src>
import functools

import jax
import jax.numpy as jnp
from jax.experimental import pallas as pl
from jax.experimental.pallas import tpu as pltpu

HIDDEN_SIZE = 128
SEQ_LEN = 7
INPUT_SIZE = SEQ_LEN     # matches the reference script
NUM_LAYERS = 2           # hard-coded as two stacked LSTM layers below
_SUBLANE = 8             # f32 sublane tile


def lstm_kernel(x_ref, wih1_ref, whh1_ref, b1_ref,
                wih2_ref, whh2_ref, b2_ref,
                wfc_ref, bfc_ref, out_ref, *, seq_len, batch):
    # x_ref : (T*B, I)  time-major, flattened, batch pre-padded to multiple of 8
    # wih1  : (I, 4H) ; whh1: (H, 4H) ; b1: (1, 4H)
    # wih2  : (H, 4H) ; whh2: (H, 4H) ; b2: (1, 4H)
    # wfc   : (1, H)  ; bfc : (1, 1)  ; out: (B, 1)
    H = whh1_ref.shape[0]
    T = seq_len
    B = batch

    whh1 = whh1_ref[...]
    wih2 = wih2_ref[...]
    whh2 = whh2_ref[...]

    # Hoisted layer-1 input projection: one well-shaped matmul amortizes the
    # K=7 padding cost; only h1 @ whh1 remains on the serial critical path.
    gates1_all = (jnp.dot(x_ref[...], wih1_ref[...],
                          preferred_element_type=jnp.float32)
                  + b1_ref[...])                                # (T*B, 4H)

    # Hoisted layer-2 bias broadcast (done once, not per timestep).
    b2_b = jnp.broadcast_to(b2_ref[...], (B, 4 * H))            # (B, 4H)

    def gate_split(gates):
        # PyTorch gate ordering: i, f, g, o
        i_g = jax.nn.sigmoid(gates[:, 0 * H:1 * H])
        f_g = jax.nn.sigmoid(gates[:, 1 * H:2 * H])
        g_g = jnp.tanh(gates[:, 2 * H:3 * H])
        o_g = jax.nn.sigmoid(gates[:, 3 * H:4 * H])
        return i_g, f_g, g_g, o_g

    h1 = jnp.zeros((B, H), jnp.float32)
    c1 = jnp.zeros((B, H), jnp.float32)
    h2 = jnp.zeros((B, H), jnp.float32)
    c2 = jnp.zeros((B, H), jnp.float32)

    # Fully unrolled time loop (static trip count) — gives the scheduler
    # visibility across timesteps.
    for t in range(T):
        # layer 1: input contribution already computed, sublane-aligned slice.
        g1 = (gates1_all[t * B:(t + 1) * B, :]
              + jnp.dot(h1, whh1, preferred_element_type=jnp.float32))
        i1, f1, gg1, o1 = gate_split(g1)
        c1 = f1 * c1 + i1 * gg1
        h1 = o1 * jnp.tanh(c1)

        # layer 2
        g2 = (jnp.dot(h1, wih2, preferred_element_type=jnp.float32)
              + jnp.dot(h2, whh2, preferred_element_type=jnp.float32)
              + b2_b)
        i2, f2, gg2, o2 = gate_split(g2)
        c2 = f2 * c2 + i2 * gg2
        h2 = o2 * jnp.tanh(c2)

    # fc(out[:, -1, :]): Linear(H, 1) as a VPU multiply + lane reduction
    # (avoids an N=1 MXU matmul on the epilogue critical path).
    out = jnp.sum(h2 * wfc_ref[...], axis=-1, keepdims=True) + bfc_ref[...]
    out_ref[...] = out


def lstm_forward(x, params):
    """x: (B, T, I) float32 (batch_first, like the PyTorch module). Returns (B,)."""
    B, T, I = x.shape
    # Pad batch to a multiple of 8 so every vreg sublane is used and no
    # masked partial loads/stores are needed.
    B_pad = ((B + _SUBLANE - 1) // _SUBLANE) * _SUBLANE
    x_tm = jnp.transpose(x, (1, 0, 2))                          # (T, B, I)
    if B_pad != B:
        x_tm = jnp.pad(x_tm, ((0, 0), (0, B_pad - B), (0, 0)))
    x_flat = x_tm.reshape(T * B_pad, I)                         # (T*B_pad, I)

    # TODO(synk): for large-batch throughput on v7x, add a batch grid with
    # dimension_semantics=("parallel",) to engage the second TensorCore.
    vmem = pl.BlockSpec(memory_space=pltpu.MemorySpace.VMEM)
    kernel = functools.partial(lstm_kernel, seq_len=T, batch=B_pad)
    out = pl.pallas_call(
        kernel,
        out_shape=jax.ShapeDtypeStruct((B_pad, 1), jnp.float32),
        in_specs=[vmem] * 9,
        out_specs=vmem,
    )(x_flat,
      params["wih1"], params["whh1"], params["b1"],
      params["wih2"], params["whh2"], params["b2"],
      params["wfc"], params["bfc"])
    return out[:B, 0]   # un-pad + squeeze(1)


def init_params(key, input_size, hidden_size):
    """Deterministic init matching nn.LSTM(2 layers) + nn.Linear(H, 1) shapes.

    PyTorch stores weight_ih_l{k}: (4H, in), weight_hh_l{k}: (4H, H), two biases
    (4H,) per layer, fc.weight: (1, H), fc.bias: (1,). LSTM weights are
    pre-transposed to (in, 4H) and the two LSTM biases are folded together.
    """
    H = hidden_size
    k = 1.0 / jnp.sqrt(jnp.float32(H))
    keys = jax.random.split(key, 10)

    def u(kk, shape):
        return jax.random.uniform(kk, shape, jnp.float32, minval=-k, maxval=k)

    # layer 1 (input -> H)
    w_ih1 = u(keys[0], (4 * H, input_size))
    w_hh1 = u(keys[1], (4 * H, H))
    b_ih1 = u(keys[2], (4 * H,))
    b_hh1 = u(keys[3], (4 * H,))
    # layer 2 (H -> H)
    w_ih2 = u(keys[4], (4 * H, H))
    w_hh2 = u(keys[5], (4 * H, H))
    b_ih2 = u(keys[6], (4 * H,))
    b_hh2 = u(keys[7], (4 * H,))
    # fc
    w_fc = jax.random.uniform(keys[8], (1, H), jnp.float32, minval=-k, maxval=k)
    b_fc = jax.random.uniform(keys[9], (1,), jnp.float32, minval=-k, maxval=k)

    return {
        "wih1": w_ih1.T,                       # (I, 4H)
        "whh1": w_hh1.T,                       # (H, 4H)
        "b1": (b_ih1 + b_hh1)[None, :],        # (1, 4H)
        "wih2": w_ih2.T,                       # (H, 4H)
        "whh2": w_hh2.T,                       # (H, 4H)
        "b2": (b_ih2 + b_hh2)[None, :],        # (1, 4H)
        "wfc": w_fc,                           # (1, H)  -- used via VPU reduce
        "bfc": b_fc[None, :],                  # (1, 1)
    }


def lstm_reference(x, params):
    """Pure-JAX reference with identical math (for a correctness check)."""
    B, T, _ = x.shape
    H = HIDDEN_SIZE

    def cell(x_t, h, c, wih, whh, b):
        gates = x_t @ wih + h @ whh + b
        i = jax.nn.sigmoid(gates[:, 0 * H:1 * H])
        f = jax.nn.sigmoid(gates[:, 1 * H:2 * H])
        g = jnp.tanh(gates[:, 2 * H:3 * H])
        o = jax.nn.sigmoid(gates[:, 3 * H:4 * H])
        c = f * c + i * g
        return o * jnp.tanh(c), c

    h1 = c1 = h2 = c2 = jnp.zeros((B, H), jnp.float32)
    for t in range(T):
        h1, c1 = cell(x[:, t, :], h1, c1, params["wih1"], params["whh1"], params["b1"])
        h2, c2 = cell(h1, h2, c2, params["wih2"], params["whh2"], params["b2"])
    return jnp.sum(h2 * params["wfc"], axis=-1) + params["bfc"][0, 0]


if __name__ == "__main__":
    key = jax.random.PRNGKey(0)
    k_param, k_x = jax.random.split(key)

    batch = 4
    params = init_params(k_param, INPUT_SIZE, HIDDEN_SIZE)
    x = jax.random.normal(k_x, (batch, SEQ_LEN, INPUT_SIZE), jnp.float32)

    y = lstm_forward(x, params)
    y = jax.block_until_ready(y)
    assert y.shape == (batch,)

    y_ref = lstm_reference(x, params)
    assert jnp.allclose(y, y_ref, atol=1e-5, rtol=1e-5), (y, y_ref)

    print("KERNEL_OK")
</pallas_src>

<mosaic_0001>
module attributes {stable_mosaic.version = 11 : i64} {
  func.func @lstm_kernel(%arg0: memref<56x7xf32, #tpu.memory_space<vmem>>, %arg1: memref<7x512xf32, #tpu.memory_space<vmem>>, %arg2: memref<128x512xf32, #tpu.memory_space<vmem>>, %arg3: memref<1x512xf32, #tpu.memory_space<vmem>>, %arg4: memref<128x512xf32, #tpu.memory_space<vmem>>, %arg5: memref<128x512xf32, #tpu.memory_space<vmem>>, %arg6: memref<1x512xf32, #tpu.memory_space<vmem>>, %arg7: memref<1x128xf32, #tpu.memory_space<vmem>>, %arg8: memref<1x1xf32, #tpu.memory_space<vmem>>, %arg9: memref<8x1xf32, #tpu.memory_space<vmem>>) attributes {dimension_semantics = [], scalar_prefetch = 0 : i64, scratch_operands = 0 : i64, tpu.core_type = #tpu.core_type<tc>} {
    %c0 = arith.constant 0 : index
    %c0_0 = arith.constant 0 : index
    %0 = vector.load %arg2[%c0, %c0_0] : memref<128x512xf32, #tpu.memory_space<vmem>>, vector<128x512xf32>
    %c0_1 = arith.constant 0 : index
    %c0_2 = arith.constant 0 : index
    %1 = vector.load %arg4[%c0_1, %c0_2] : memref<128x512xf32, #tpu.memory_space<vmem>>, vector<128x512xf32>
    %c0_3 = arith.constant 0 : index
    %c0_4 = arith.constant 0 : index
    %2 = vector.load %arg5[%c0_3, %c0_4] : memref<128x512xf32, #tpu.memory_space<vmem>>, vector<128x512xf32>
    %c0_5 = arith.constant 0 : index
    %c0_6 = arith.constant 0 : index
    %3 = vector.load %arg0[%c0_5, %c0_6] : memref<56x7xf32, #tpu.memory_space<vmem>>, vector<56x7xf32>
    %c0_7 = arith.constant 0 : index
    %c0_8 = arith.constant 0 : index
    %4 = vector.load %arg1[%c0_7, %c0_8] : memref<7x512xf32, #tpu.memory_space<vmem>>, vector<7x512xf32>
    %cst = arith.constant dense<0.000000e+00> : vector<56x512xf32>
    %5 = tpu.matmul %3, %4, %cst {dimension_numbers = #tpu.dot_dimension_numbers<[1], [0], [0], [1], [0, 0, 1, 1], [], []>} : vector<56x7xf32>, vector<7x512xf32>, vector<56x512xf32> -> vector<56x512xf32>
    %c0_9 = arith.constant 0 : index
    %c0_10 = arith.constant 0 : index
    %6 = vector.load %arg3[%c0_9, %c0_10] : memref<1x512xf32, #tpu.memory_space<vmem>>, vector<1x512xf32>
    %7 = vector.broadcast %6 : vector<1x512xf32> to vector<56x512xf32>
    %8 = arith.addf %5, %7 : vector<56x512xf32>
    %c0_11 = arith.constant 0 : index
    %c0_12 = arith.constant 0 : index
    %9 = vector.load %arg6[%c0_11, %c0_12] : memref<1x512xf32, #tpu.memory_space<vmem>>, vector<1x512xf32>
    %10 = vector.shape_cast %9 : vector<1x512xf32> to vector<1x512xf32>
    %11 = vector.broadcast %10 : vector<1x512xf32> to vector<8x512xf32>
    %cst_13 = arith.constant 0.000000e+00 : f32
    %12 = vector.broadcast %cst_13 : f32 to vector<8x128xf32>
    %cst_14 = arith.constant 0.000000e+00 : f32
    %13 = vector.broadcast %cst_14 : f32 to vector<8x128xf32>
    %cst_15 = arith.constant 0.000000e+00 : f32
    %14 = vector.broadcast %cst_15 : f32 to vector<8x128xf32>
    %cst_16 = arith.constant 0.000000e+00 : f32
    %15 = vector.broadcast %cst_16 : f32 to vector<8x128xf32>
    %16 = vector.extract_strided_slice %8 {offsets = [0, 0], sizes = [8, 512], strides = [1, 1]} : vector<56x512xf32> to vector<8x512xf32>
    %cst_17 = arith.constant dense<0.000000e+00> : vector<8x512xf32>
    %17 = tpu.matmul %12, %0, %cst_17 {dimension_numbers = #tpu.dot_dimension_numbers<[1], [0], [0], [1], [0, 0, 1, 1], [], []>} : vector<8x128xf32>, vector<128x512xf32>, vector<8x512xf32> -> vector<8x512xf32>
    %18 = arith.addf %16, %17 : vector<8x512xf32>
    %19 = vector.extract_strided_slice %18 {offsets = [0, 0], sizes = [8, 128], strides = [1, 1]} : vector<8x512xf32> to vector<8x128xf32>
    %20 = arith.negf %19 : vector<8x128xf32>
    %21 = math.exp %20 : vector<8x128xf32>
    %cst_18 = arith.constant 1.000000e+00 : f32
    %22 = vector.broadcast %cst_18 : f32 to vector<8x128xf32>
    %23 = arith.addf %22, %21 : vector<8x128xf32>
    %24 = arith.divf %22, %23 : vector<8x128xf32>
    %25 = vector.extract_strided_slice %18 {offsets = [0, 128], sizes = [8, 128], strides = [1, 1]} : vector<8x512xf32> to vector<8x128xf32>
    %26 = arith.negf %25 : vector<8x128xf32>
    %27 = math.exp %26 : vector<8x128xf32>
    %cst_19 = arith.constant 1.000000e+00 : f32
    %28 = vector.broadcast %cst_19 : f32 to vector<8x128xf32>
    %29 = arith.addf %28, %27 : vector<8x128xf32>
    %30 = arith.divf %28, %29 : vector<8x128xf32>
    %31 = vector.extract_strided_slice %18 {offsets = [0, 256], sizes = [8, 128], strides = [1, 1]} : vector<8x512xf32> to vector<8x128xf32>
    %32 = math.tanh %31 : vector<8x128xf32>
    %33 = vector.extract_strided_slice %18 {offsets = [0, 384], sizes = [8, 128], strides = [1, 1]} : vector<8x512xf32> to vector<8x128xf32>
    %34 = arith.negf %33 : vector<8x128xf32>
    %35 = math.exp %34 : vector<8x128xf32>
    %cst_20 = arith.constant 1.000000e+00 : f32
    %36 = vector.broadcast %cst_20 : f32 to vector<8x128xf32>
    %37 = arith.addf %36, %35 : vector<8x128xf32>
    %38 = arith.divf %36, %37 : vector<8x128xf32>
    %39 = arith.mulf %30, %13 : vector<8x128xf32>
    %40 = arith.mulf %24, %32 : vector<8x128xf32>
    %41 = arith.addf %39, %40 : vector<8x128xf32>
    %42 = math.tanh %41 : vector<8x128xf32>
    %43 = arith.mulf %38, %42 : vector<8x128xf32>
    %cst_21 = arith.constant dense<0.000000e+00> : vector<8x512xf32>
    %44 = tpu.matmul %43, %1, %cst_21 {dimension_numbers = #tpu.dot_dimension_numbers<[1], [0], [0], [1], [0, 0, 1, 1], [], []>} : vector<8x128xf32>, vector<128x512xf32>, vector<8x512xf32> -> vector<8x512xf32>
    %cst_22 = arith.constant dense<0.000000e+00> : vector<8x512xf32>
    %45 = tpu.matmul %14, %2, %cst_22 {dimension_numbers = #tpu.dot_dimension_numbers<[1], [0], [0], [1], [0, 0, 1, 1], [], []>} : vector<8x128xf32>, vector<128x512xf32>, vector<8x512xf32> -> vector<8x512xf32>
    %46 = arith.addf %44, %45 : vector<8x512xf32>
    %47 = arith.addf %46, %11 : vector<8x512xf32>
    %48 = vector.extract_strided_slice %47 {offsets = [0, 0], sizes = [8, 128], strides = [1, 1]} : vector<8x512xf32> to vector<8x128xf32>
    %49 = arith.negf %48 : vector<8x128xf32>
    %50 = math.exp %49 : vector<8x128xf32>
    %cst_23 = arith.constant 1.000000e+00 : f32
    %51 = vector.broadcast %cst_23 : f32 to vector<8x128xf32>
    %52 = arith.addf %51, %50 : vector<8x128xf32>
    %53 = arith.divf %51, %52 : vector<8x128xf32>
    %54 = vector.extract_strided_slice %47 {offsets = [0, 128], sizes = [8, 128], strides = [1, 1]} : vector<8x512xf32> to vector<8x128xf32>
    %55 = arith.negf %54 : vector<8x128xf32>
    %56 = math.exp %55 : vector<8x128xf32>
    %cst_24 = arith.constant 1.000000e+00 : f32
    %57 = vector.broadcast %cst_24 : f32 to vector<8x128xf32>
    %58 = arith.addf %57, %56 : vector<8x128xf32>
    %59 = arith.divf %57, %58 : vector<8x128xf32>
    %60 = vector.extract_strided_slice %47 {offsets = [0, 256], sizes = [8, 128], strides = [1, 1]} : vector<8x512xf32> to vector<8x128xf32>
    %61 = math.tanh %60 : vector<8x128xf32>
    %62 = vector.extract_strided_slice %47 {offsets = [0, 384], sizes = [8, 128], strides = [1, 1]} : vector<8x512xf32> to vector<8x128xf32>
    %63 = arith.negf %62 : vector<8x128xf32>
    %64 = math.exp %63 : vector<8x128xf32>
    %cst_25 = arith.constant 1.000000e+00 : f32
    %65 = vector.broadcast %cst_25 : f32 to vector<8x128xf32>
    %66 = arith.addf %65, %64 : vector<8x128xf32>
    %67 = arith.divf %65, %66 : vector<8x128xf32>
    %68 = arith.mulf %59, %15 : vector<8x128xf32>
    %69 = arith.mulf %53, %61 : vector<8x128xf32>
    %70 = arith.addf %68, %69 : vector<8x128xf32>
    %71 = math.tanh %70 : vector<8x128xf32>
    %72 = arith.mulf %67, %71 : vector<8x128xf32>
    %73 = vector.extract_strided_slice %8 {offsets = [8, 0], sizes = [8, 512], strides = [1, 1]} : vector<56x512xf32> to vector<8x512xf32>
    %cst_26 = arith.constant dense<0.000000e+00> : vector<8x512xf32>
    %74 = tpu.matmul %43, %0, %cst_26 {dimension_numbers = #tpu.dot_dimension_numbers<[1], [0], [0], [1], [0, 0, 1, 1], [], []>} : vector<8x128xf32>, vector<128x512xf32>, vector<8x512xf32> -> vector<8x512xf32>
    %75 = arith.addf %73, %74 : vector<8x512xf32>
    %76 = vector.extract_strided_slice %75 {offsets = [0, 0], sizes = [8, 128], strides = [1, 1]} : vector<8x512xf32> to vector<8x128xf32>
    %77 = arith.negf %76 : vector<8x128xf32>
    %78 = math.exp %77 : vector<8x128xf32>
    %cst_27 = arith.constant 1.000000e+00 : f32
    %79 = vector.broadcast %cst_27 : f32 to vector<8x128xf32>
    %80 = arith.addf %79, %78 : vector<8x128xf32>
    %81 = arith.divf %79, %80 : vector<8x128xf32>
    %82 = vector.extract_strided_slice %75 {offsets = [0, 128], sizes = [8, 128], strides = [1, 1]} : vector<8x512xf32> to vector<8x128xf32>
    %83 = arith.negf %82 : vector<8x128xf32>
    %84 = math.exp %83 : vector<8x128xf32>
    %cst_28 = arith.constant 1.000000e+00 : f32
    %85 = vector.broadcast %cst_28 : f32 to vector<8x128xf32>
    %86 = arith.addf %85, %84 : vector<8x128xf32>
    %87 = arith.divf %85, %86 : vector<8x128xf32>
    %88 = vector.extract_strided_slice %75 {offsets = [0, 256], sizes = [8, 128], strides = [1, 1]} : vector<8x512xf32> to vector<8x128xf32>
    %89 = math.tanh %88 : vector<8x128xf32>
    %90 = vector.extract_strided_slice %75 {offsets = [0, 384], sizes = [8, 128], strides = [1, 1]} : vector<8x512xf32> to vector<8x128xf32>
    %91 = arith.negf %90 : vector<8x128xf32>
    %92 = math.exp %91 : vector<8x128xf32>
    %cst_29 = arith.constant 1.000000e+00 : f32
    %93 = vector.broadcast %cst_29 : f32 to vector<8x128xf32>
    %94 = arith.addf %93, %92 : vector<8x128xf32>
    %95 = arith.divf %93, %94 : vector<8x128xf32>
    %96 = arith.mulf %87, %41 : vector<8x128xf32>
    %97 = arith.mulf %81, %89 : vector<8x128xf32>
    %98 = arith.addf %96, %97 : vector<8x128xf32>
    %99 = math.tanh %98 : vector<8x128xf32>
    %100 = arith.mulf %95, %99 : vector<8x128xf32>
    %cst_30 = arith.constant dense<0.000000e+00> : vector<8x512xf32>
    %101 = tpu.matmul %100, %1, %cst_30 {dimension_numbers = #tpu.dot_dimension_numbers<[1], [0], [0], [1], [0, 0, 1, 1], [], []>} : vector<8x128xf32>, vector<128x512xf32>, vector<8x512xf32> -> vector<8x512xf32>
    %cst_31 = arith.constant dense<0.000000e+00> : vector<8x512xf32>
    %102 = tpu.matmul %72, %2, %cst_31 {dimension_numbers = #tpu.dot_dimension_numbers<[1], [0], [0], [1], [0, 0, 1, 1], [], []>} : vector<8x128xf32>, vector<128x512xf32>, vector<8x512xf32> -> vector<8x512xf32>
    %103 = arith.addf %101, %102 : vector<8x512xf32>
    %104 = arith.addf %103, %11 : vector<8x512xf32>
    %105 = vector.extract_strided_slice %104 {offsets = [0, 0], sizes = [8, 128], strides = [1, 1]} : vector<8x512xf32> to vector<8x128xf32>
    %106 = arith.negf %105 : vector<8x128xf32>
    %107 = math.exp %106 : vector<8x128xf32>
    %cst_32 = arith.constant 1.000000e+00 : f32
    %108 = vector.broadcast %cst_32 : f32 to vector<8x128xf32>
    %109 = arith.addf %108, %107 : vector<8x128xf32>
    %110 = arith.divf %108, %109 : vector<8x128xf32>
    %111 = vector.extract_strided_slice %104 {offsets = [0, 128], sizes = [8, 128], strides = [1, 1]} : vector<8x512xf32> to vector<8x128xf32>
    %112 = arith.negf %111 : vector<8x128xf32>
    %113 = math.exp %112 : vector<8x128xf32>
    %cst_33 = arith.constant 1.000000e+00 : f32
    %114 = vector.broadcast %cst_33 : f32 to vector<8x128xf32>
    %115 = arith.addf %114, %113 : vector<8x128xf32>
    %116 = arith.divf %114, %115 : vector<8x128xf32>
    %117 = vector.extract_strided_slice %104 {offsets = [0, 256], sizes = [8, 128], strides = [1, 1]} : vector<8x512xf32> to vector<8x128xf32>
    %118 = math.tanh %117 : vector<8x128xf32>
    %119 = vector.extract_strided_slice %104 {offsets = [0, 384], sizes = [8, 128], strides = [1, 1]} : vector<8x512xf32> to vector<8x128xf32>
    %120 = arith.negf %119 : vector<8x128xf32>
    %121 = math.exp %120 : vector<8x128xf32>
    %cst_34 = arith.constant 1.000000e+00 : f32
    %122 = vector.broadcast %cst_34 : f32 to vector<8x128xf32>
    %123 = arith.addf %122, %121 : vector<8x128xf32>
    %124 = arith.divf %122, %123 : vector<8x128xf32>
    %125 = arith.mulf %116, %70 : vector<8x128xf32>
    %126 = arith.mulf %110, %118 : vector<8x128xf32>
    %127 = arith.addf %125, %126 : vector<8x128xf32>
    %128 = math.tanh %127 : vector<8x128xf32>
    %129 = arith.mulf %124, %128 : vector<8x128xf32>
    %130 = vector.extract_strided_slice %8 {offsets = [16, 0], sizes = [8, 512], strides = [1, 1]} : vector<56x512xf32> to vector<8x512xf32>
    %cst_35 = arith.constant dense<0.000000e+00> : vector<8x512xf32>
    %131 = tpu.matmul %100, %0, %cst_35 {dimension_numbers = #tpu.dot_dimension_numbers<[1], [0], [0], [1], [0, 0, 1, 1], [], []>} : vector<8x128xf32>, vector<128x512xf32>, vector<8x512xf32> -> vector<8x512xf32>
    %132 = arith.addf %130, %131 : vector<8x512xf32>
    %133 = vector.extract_strided_slice %132 {offsets = [0, 0], sizes = [8, 128], strides = [1, 1]} : vector<8x512xf32> to vector<8x128xf32>
    %134 = arith.negf %133 : vector<8x128xf32>
    %135 = math.exp %134 : vector<8x128xf32>
    %cst_36 = arith.constant 1.000000e+00 : f32
    %136 = vector.broadcast %cst_36 : f32 to vector<8x128xf32>
    %137 = arith.addf %136, %135 : vector<8x128xf32>
    %138 = arith.divf %136, %137 : vector<8x128xf32>
    %139 = vector.extract_strided_slice %132 {offsets = [0, 128], sizes = [8, 128], strides = [1, 1]} : vector<8x512xf32> to vector<8x128xf32>
    %140 = arith.negf %139 : vector<8x128xf32>
    %141 = math.exp %140 : vector<8x128xf32>
    %cst_37 = arith.constant 1.000000e+00 : f32
    %142 = vector.broadcast %cst_37 : f32 to vector<8x128xf32>
    %143 = arith.addf %142, %141 : vector<8x128xf32>
    %144 = arith.divf %142, %143 : vector<8x128xf32>
    %145 = vector.extract_strided_slice %132 {offsets = [0, 256], sizes = [8, 128], strides = [1, 1]} : vector<8x512xf32> to vector<8x128xf32>
    %146 = math.tanh %145 : vector<8x128xf32>
    %147 = vector.extract_strided_slice %132 {offsets = [0, 384], sizes = [8, 128], strides = [1, 1]} : vector<8x512xf32> to vector<8x128xf32>
    %148 = arith.negf %147 : vector<8x128xf32>
    %149 = math.exp %148 : vector<8x128xf32>
    %cst_38 = arith.constant 1.000000e+00 : f32
    %150 = vector.broadcast %cst_38 : f32 to vector<8x128xf32>
    %151 = arith.addf %150, %149 : vector<8x128xf32>
    %152 = arith.divf %150, %151 : vector<8x128xf32>
    %153 = arith.mulf %144, %98 : vector<8x128xf32>
    %154 = arith.mulf %138, %146 : vector<8x128xf32>
    %155 = arith.addf %153, %154 : vector<8x128xf32>
    %156 = math.tanh %155 : vector<8x128xf32>
    %157 = arith.mulf %152, %156 : vector<8x128xf32>
    %cst_39 = arith.constant dense<0.000000e+00> : vector<8x512xf32>
    %158 = tpu.matmul %157, %1, %cst_39 {dimension_numbers = #tpu.dot_dimension_numbers<[1], [0], [0], [1], [0, 0, 1, 1], [], []>} : vector<8x128xf32>, vector<128x512xf32>, vector<8x512xf32> -> vector<8x512xf32>
    %cst_40 = arith.constant dense<0.000000e+00> : vector<8x512xf32>
    %159 = tpu.matmul %129, %2, %cst_40 {dimension_numbers = #tpu.dot_dimension_numbers<[1], [0], [0], [1], [0, 0, 1, 1], [], []>} : vector<8x128xf32>, vector<128x512xf32>, vector<8x512xf32> -> vector<8x512xf32>
    %160 = arith.addf %158, %159 : vector<8x512xf32>
    %161 = arith.addf %160, %11 : vector<8x512xf32>
    %162 = vector.extract_strided_slice %161 {offsets = [0, 0], sizes = [8, 128], strides = [1, 1]} : vector<8x512xf32> to vector<8x128xf32>
    %163 = arith.negf %162 : vector<8x128xf32>
    %164 = math.exp %163 : vector<8x128xf32>
    %cst_41 = arith.constant 1.000000e+00 : f32
    %165 = vector.broadcast %cst_41 : f32 to vector<8x128xf32>
    %166 = arith.addf %165, %164 : vector<8x128xf32>
    %167 = arith.divf %165, %166 : vector<8x128xf32>
    %168 = vector.extract_strided_slice %161 {offsets = [0, 128], sizes = [8, 128], strides = [1, 1]} : vector<8x512xf32> to vector<8x128xf32>
    %169 = arith.negf %168 : vector<8x128xf32>
    %170 = math.exp %169 : vector<8x128xf32>
    %cst_42 = arith.constant 1.000000e+00 : f32
    %171 = vector.broadcast %cst_42 : f32 to vector<8x128xf32>
    %172 = arith.addf %171, %170 : vector<8x128xf32>
    %173 = arith.divf %171, %172 : vector<8x128xf32>
    %174 = vector.extract_strided_slice %161 {offsets = [0, 256], sizes = [8, 128], strides = [1, 1]} : vector<8x512xf32> to vector<8x128xf32>
    %175 = math.tanh %174 : vector<8x128xf32>
    %176 = vector.extract_strided_slice %161 {offsets = [0, 384], sizes = [8, 128], strides = [1, 1]} : vector<8x512xf32> to vector<8x128xf32>
    %177 = arith.negf %176 : vector<8x128xf32>
    %178 = math.exp %177 : vector<8x128xf32>
    %cst_43 = arith.constant 1.000000e+00 : f32
    %179 = vector.broadcast %cst_43 : f32 to vector<8x128xf32>
    %180 = arith.addf %179, %178 : vector<8x128xf32>
    %181 = arith.divf %179, %180 : vector<8x128xf32>
    %182 = arith.mulf %173, %127 : vector<8x128xf32>
    %183 = arith.mulf %167, %175 : vector<8x128xf32>
    %184 = arith.addf %182, %183 : vector<8x128xf32>
    %185 = math.tanh %184 : vector<8x128xf32>
    %186 = arith.mulf %181, %185 : vector<8x128xf32>
    %187 = vector.extract_strided_slice %8 {offsets = [24, 0], sizes = [8, 512], strides = [1, 1]} : vector<56x512xf32> to vector<8x512xf32>
    %cst_44 = arith.constant dense<0.000000e+00> : vector<8x512xf32>
    %188 = tpu.matmul %157, %0, %cst_44 {dimension_numbers = #tpu.dot_dimension_numbers<[1], [0], [0], [1], [0, 0, 1, 1], [], []>} : vector<8x128xf32>, vector<128x512xf32>, vector<8x512xf32> -> vector<8x512xf32>
    %189 = arith.addf %187, %188 : vector<8x512xf32>
    %190 = vector.extract_strided_slice %189 {offsets = [0, 0], sizes = [8, 128], strides = [1, 1]} : vector<8x512xf32> to vector<8x128xf32>
    %191 = arith.negf %190 : vector<8x128xf32>
    %192 = math.exp %191 : vector<8x128xf32>
    %cst_45 = arith.constant 1.000000e+00 : f32
    %193 = vector.broadcast %cst_45 : f32 to vector<8x128xf32>
    %194 = arith.addf %193, %192 : vector<8x128xf32>
    %195 = arith.divf %193, %194 : vector<8x128xf32>
    %196 = vector.extract_strided_slice %189 {offsets = [0, 128], sizes = [8, 128], strides = [1, 1]} : vector<8x512xf32> to vector<8x128xf32>
    %197 = arith.negf %196 : vector<8x128xf32>
    %198 = math.exp %197 : vector<8x128xf32>
    %cst_46 = arith.constant 1.000000e+00 : f32
    %199 = vector.broadcast %cst_46 : f32 to vector<8x128xf32>
    %200 = arith.addf %199, %198 : vector<8x128xf32>
    %201 = arith.divf %199, %200 : vector<8x128xf32>
    %202 = vector.extract_strided_slice %189 {offsets = [0, 256], sizes = [8, 128], strides = [1, 1]} : vector<8x512xf32> to vector<8x128xf32>
    %203 = math.tanh %202 : vector<8x128xf32>
    %204 = vector.extract_strided_slice %189 {offsets = [0, 384], sizes = [8, 128], strides = [1, 1]} : vector<8x512xf32> to vector<8x128xf32>
    %205 = arith.negf %204 : vector<8x128xf32>
    %206 = math.exp %205 : vector<8x128xf32>
    %cst_47 = arith.constant 1.000000e+00 : f32
    %207 = vector.broadcast %cst_47 : f32 to vector<8x128xf32>
    %208 = arith.addf %207, %206 : vector<8x128xf32>
    %209 = arith.divf %207, %208 : vector<8x128xf32>
    %210 = arith.mulf %201, %155 : vector<8x128xf32>
    %211 = arith.mulf %195, %203 : vector<8x128xf32>
    %212 = arith.addf %210, %211 : vector<8x128xf32>
    %213 = math.tanh %212 : vector<8x128xf32>
    %214 = arith.mulf %209, %213 : vector<8x128xf32>
    %cst_48 = arith.constant dense<0.000000e+00> : vector<8x512xf32>
    %215 = tpu.matmul %214, %1, %cst_48 {dimension_numbers = #tpu.dot_dimension_numbers<[1], [0], [0], [1], [0, 0, 1, 1], [], []>} : vector<8x128xf32>, vector<128x512xf32>, vector<8x512xf32> -> vector<8x512xf32>
    %cst_49 = arith.constant dense<0.000000e+00> : vector<8x512xf32>
    %216 = tpu.matmul %186, %2, %cst_49 {dimension_numbers = #tpu.dot_dimension_numbers<[1], [0], [0], [1], [0, 0, 1, 1], [], []>} : vector<8x128xf32>, vector<128x512xf32>, vector<8x512xf32> -> vector<8x512xf32>
    %217 = arith.addf %215, %216 : vector<8x512xf32>
    %218 = arith.addf %217, %11 : vector<8x512xf32>
    %219 = vector.extract_strided_slice %218 {offsets = [0, 0], sizes = [8, 128], strides = [1, 1]} : vector<8x512xf32> to vector<8x128xf32>
    %220 = arith.negf %219 : vector<8x128xf32>
    %221 = math.exp %220 : vector<8x128xf32>
    %cst_50 = arith.constant 1.000000e+00 : f32
    %222 = vector.broadcast %cst_50 : f32 to vector<8x128xf32>
    %223 = arith.addf %222, %221 : vector<8x128xf32>
    %224 = arith.divf %222, %223 : vector<8x128xf32>
    %225 = vector.extract_strided_slice %218 {offsets = [0, 128], sizes = [8, 128], strides = [1, 1]} : vector<8x512xf32> to vector<8x128xf32>
    %226 = arith.negf %225 : vector<8x128xf32>
    %227 = math.exp %226 : vector<8x128xf32>
    %cst_51 = arith.constant 1.000000e+00 : f32
    %228 = vector.broadcast %cst_51 : f32 to vector<8x128xf32>
    %229 = arith.addf %228, %227 : vector<8x128xf32>
    %230 = arith.divf %228, %229 : vector<8x128xf32>
    %231 = vector.extract_strided_slice %218 {offsets = [0, 256], sizes = [8, 128], strides = [1, 1]} : vector<8x512xf32> to vector<8x128xf32>
    %232 = math.tanh %231 : vector<8x128xf32>
    %233 = vector.extract_strided_slice %218 {offsets = [0, 384], sizes = [8, 128], strides = [1, 1]} : vector<8x512xf32> to vector<8x128xf32>
    %234 = arith.negf %233 : vector<8x128xf32>
    %235 = math.exp %234 : vector<8x128xf32>
    %cst_52 = arith.constant 1.000000e+00 : f32
    %236 = vector.broadcast %cst_52 : f32 to vector<8x128xf32>
    %237 = arith.addf %236, %235 : vector<8x128xf32>
    %238 = arith.divf %236, %237 : vector<8x128xf32>
    %239 = arith.mulf %230, %184 : vector<8x128xf32>
    %240 = arith.mulf %224, %232 : vector<8x128xf32>
    %241 = arith.addf %239, %240 : vector<8x128xf32>
    %242 = math.tanh %241 : vector<8x128xf32>
    %243 = arith.mulf %238, %242 : vector<8x128xf32>
    %244 = vector.extract_strided_slice %8 {offsets = [32, 0], sizes = [8, 512], strides = [1, 1]} : vector<56x512xf32> to vector<8x512xf32>
    %cst_53 = arith.constant dense<0.000000e+00> : vector<8x512xf32>
    %245 = tpu.matmul %214, %0, %cst_53 {dimension_numbers = #tpu.dot_dimension_numbers<[1], [0], [0], [1], [0, 0, 1, 1], [], []>} : vector<8x128xf32>, vector<128x512xf32>, vector<8x512xf32> -> vector<8x512xf32>
    %246 = arith.addf %244, %245 : vector<8x512xf32>
    %247 = vector.extract_strided_slice %246 {offsets = [0, 0], sizes = [8, 128], strides = [1, 1]} : vector<8x512xf32> to vector<8x128xf32>
    %248 = arith.negf %247 : vector<8x128xf32>
    %249 = math.exp %248 : vector<8x128xf32>
    %cst_54 = arith.constant 1.000000e+00 : f32
    %250 = vector.broadcast %cst_54 : f32 to vector<8x128xf32>
    %251 = arith.addf %250, %249 : vector<8x128xf32>
    %252 = arith.divf %250, %251 : vector<8x128xf32>
    %253 = vector.extract_strided_slice %246 {offsets = [0, 128], sizes = [8, 128], strides = [1, 1]} : vector<8x512xf32> to vector<8x128xf32>
    %254 = arith.negf %253 : vector<8x128xf32>
    %255 = math.exp %254 : vector<8x128xf32>
    %cst_55 = arith.constant 1.000000e+00 : f32
    %256 = vector.broadcast %cst_55 : f32 to vector<8x128xf32>
    %257 = arith.addf %256, %255 : vector<8x128xf32>
    %258 = arith.divf %256, %257 : vector<8x128xf32>
    %259 = vector.extract_strided_slice %246 {offsets = [0, 256], sizes = [8, 128], strides = [1, 1]} : vector<8x512xf32> to vector<8x128xf32>
    %260 = math.tanh %259 : vector<8x128xf32>
    %261 = vector.extract_strided_slice %246 {offsets = [0, 384], sizes = [8, 128], strides = [1, 1]} : vector<8x512xf32> to vector<8x128xf32>
    %262 = arith.negf %261 : vector<8x128xf32>
    %263 = math.exp %262 : vector<8x128xf32>
    %cst_56 = arith.constant 1.000000e+00 : f32
    %264 = vector.broadcast %cst_56 : f32 to vector<8x128xf32>
    %265 = arith.addf %264, %263 : vector<8x128xf32>
    %266 = arith.divf %264, %265 : vector<8x128xf32>
    %267 = arith.mulf %258, %212 : vector<8x128xf32>
    %268 = arith.mulf %252, %260 : vector<8x128xf32>
    %269 = arith.addf %267, %268 : vector<8x128xf32>
    %270 = math.tanh %269 : vector<8x128xf32>
    %271 = arith.mulf %266, %270 : vector<8x128xf32>
    %cst_57 = arith.constant dense<0.000000e+00> : vector<8x512xf32>
    %272 = tpu.matmul %271, %1, %cst_57 {dimension_numbers = #tpu.dot_dimension_numbers<[1], [0], [0], [1], [0, 0, 1, 1], [], []>} : vector<8x128xf32>, vector<128x512xf32>, vector<8x512xf32> -> vector<8x512xf32>
    %cst_58 = arith.constant dense<0.000000e+00> : vector<8x512xf32>
    %273 = tpu.matmul %243, %2, %cst_58 {dimension_numbers = #tpu.dot_dimension_numbers<[1], [0], [0], [1], [0, 0, 1, 1], [], []>} : vector<8x128xf32>, vector<128x512xf32>, vector<8x512xf32> -> vector<8x512xf32>
    %274 = arith.addf %272, %273 : vector<8x512xf32>
    %275 = arith.addf %274, %11 : vector<8x512xf32>
    %276 = vector.extract_strided_slice %275 {offsets = [0, 0], sizes = [8, 128], strides = [1, 1]} : vector<8x512xf32> to vector<8x128xf32>
    %277 = arith.negf %276 : vector<8x128xf32>
    %278 = math.exp %277 : vector<8x128xf32>
    %cst_59 = arith.constant 1.000000e+00 : f32
    %279 = vector.broadcast %cst_59 : f32 to vector<8x128xf32>
    %280 = arith.addf %279, %278 : vector<8x128xf32>
    %281 = arith.divf %279, %280 : vector<8x128xf32>
    %282 = vector.extract_strided_slice %275 {offsets = [0, 128], sizes = [8, 128], strides = [1, 1]} : vector<8x512xf32> to vector<8x128xf32>
    %283 = arith.negf %282 : vector<8x128xf32>
    %284 = math.exp %283 : vector<8x128xf32>
    %cst_60 = arith.constant 1.000000e+00 : f32
    %285 = vector.broadcast %cst_60 : f32 to vector<8x128xf32>
    %286 = arith.addf %285, %284 : vector<8x128xf32>
    %287 = arith.divf %285, %286 : vector<8x128xf32>
    %288 = vector.extract_strided_slice %275 {offsets = [0, 256], sizes = [8, 128], strides = [1, 1]} : vector<8x512xf32> to vector<8x128xf32>
    %289 = math.tanh %288 : vector<8x128xf32>
    %290 = vector.extract_strided_slice %275 {offsets = [0, 384], sizes = [8, 128], strides = [1, 1]} : vector<8x512xf32> to vector<8x128xf32>
    %291 = arith.negf %290 : vector<8x128xf32>
    %292 = math.exp %291 : vector<8x128xf32>
    %cst_61 = arith.constant 1.000000e+00 : f32
    %293 = vector.broadcast %cst_61 : f32 to vector<8x128xf32>
    %294 = arith.addf %293, %292 : vector<8x128xf32>
    %295 = arith.divf %293, %294 : vector<8x128xf32>
    %296 = arith.mulf %287, %241 : vector<8x128xf32>
    %297 = arith.mulf %281, %289 : vector<8x128xf32>
    %298 = arith.addf %296, %297 : vector<8x128xf32>
    %299 = math.tanh %298 : vector<8x128xf32>
    %300 = arith.mulf %295, %299 : vector<8x128xf32>
    %301 = vector.extract_strided_slice %8 {offsets = [40, 0], sizes = [8, 512], strides = [1, 1]} : vector<56x512xf32> to vector<8x512xf32>
    %cst_62 = arith.constant dense<0.000000e+00> : vector<8x512xf32>
    %302 = tpu.matmul %271, %0, %cst_62 {dimension_numbers = #tpu.dot_dimension_numbers<[1], [0], [0], [1], [0, 0, 1, 1], [], []>} : vector<8x128xf32>, vector<128x512xf32>, vector<8x512xf32> -> vector<8x512xf32>
    %303 = arith.addf %301, %302 : vector<8x512xf32>
    %304 = vector.extract_strided_slice %303 {offsets = [0, 0], sizes = [8, 128], strides = [1, 1]} : vector<8x512xf32> to vector<8x128xf32>
    %305 = arith.negf %304 : vector<8x128xf32>
    %306 = math.exp %305 : vector<8x128xf32>
    %cst_63 = arith.constant 1.000000e+00 : f32
    %307 = vector.broadcast %cst_63 : f32 to vector<8x128xf32>
    %308 = arith.addf %307, %306 : vector<8x128xf32>
    %309 = arith.divf %307, %308 : vector<8x128xf32>
    %310 = vector.extract_strided_slice %303 {offsets = [0, 128], sizes = [8, 128], strides = [1, 1]} : vector<8x512xf32> to vector<8x128xf32>
    %311 = arith.negf %310 : vector<8x128xf32>
    %312 = math.exp %311 : vector<8x128xf32>
    %cst_64 = arith.constant 1.000000e+00 : f32
    %313 = vector.broadcast %cst_64 : f32 to vector<8x128xf32>
    %314 = arith.addf %313, %312 : vector<8x128xf32>
    %315 = arith.divf %313, %314 : vector<8x128xf32>
    %316 = vector.extract_strided_slice %303 {offsets = [0, 256], sizes = [8, 128], strides = [1, 1]} : vector<8x512xf32> to vector<8x128xf32>
    %317 = math.tanh %316 : vector<8x128xf32>
    %318 = vector.extract_strided_slice %303 {offsets = [0, 384], sizes = [8, 128], strides = [1, 1]} : vector<8x512xf32> to vector<8x128xf32>
    %319 = arith.negf %318 : vector<8x128xf32>
    %320 = math.exp %319 : vector<8x128xf32>
    %cst_65 = arith.constant 1.000000e+00 : f32
    %321 = vector.broadcast %cst_65 : f32 to vector<8x128xf32>
    %322 = arith.addf %321, %320 : vector<8x128xf32>
    %323 = arith.divf %321, %322 : vector<8x128xf32>
    %324 = arith.mulf %315, %269 : vector<8x128xf32>
    %325 = arith.mulf %309, %317 : vector<8x128xf32>
    %326 = arith.addf %324, %325 : vector<8x128xf32>
    %327 = math.tanh %326 : vector<8x128xf32>
    %328 = arith.mulf %323, %327 : vector<8x128xf32>
    %cst_66 = arith.constant dense<0.000000e+00> : vector<8x512xf32>
    %329 = tpu.matmul %328, %1, %cst_66 {dimension_numbers = #tpu.dot_dimension_numbers<[1], [0], [0], [1], [0, 0, 1, 1], [], []>} : vector<8x128xf32>, vector<128x512xf32>, vector<8x512xf32> -> vector<8x512xf32>
    %cst_67 = arith.constant dense<0.000000e+00> : vector<8x512xf32>
    %330 = tpu.matmul %300, %2, %cst_67 {dimension_numbers = #tpu.dot_dimension_numbers<[1], [0], [0], [1], [0, 0, 1, 1], [], []>} : vector<8x128xf32>, vector<128x512xf32>, vector<8x512xf32> -> vector<8x512xf32>
    %331 = arith.addf %329, %330 : vector<8x512xf32>
    %332 = arith.addf %331, %11 : vector<8x512xf32>
    %333 = vector.extract_strided_slice %332 {offsets = [0, 0], sizes = [8, 128], strides = [1, 1]} : vector<8x512xf32> to vector<8x128xf32>
    %334 = arith.negf %333 : vector<8x128xf32>
    %335 = math.exp %334 : vector<8x128xf32>
    %cst_68 = arith.constant 1.000000e+00 : f32
    %336 = vector.broadcast %cst_68 : f32 to vector<8x128xf32>
    %337 = arith.addf %336, %335 : vector<8x128xf32>
    %338 = arith.divf %336, %337 : vector<8x128xf32>
    %339 = vector.extract_strided_slice %332 {offsets = [0, 128], sizes = [8, 128], strides = [1, 1]} : vector<8x512xf32> to vector<8x128xf32>
    %340 = arith.negf %339 : vector<8x128xf32>
    %341 = math.exp %340 : vector<8x128xf32>
    %cst_69 = arith.constant 1.000000e+00 : f32
    %342 = vector.broadcast %cst_69 : f32 to vector<8x128xf32>
    %343 = arith.addf %342, %341 : vector<8x128xf32>
    %344 = arith.divf %342, %343 : vector<8x128xf32>
    %345 = vector.extract_strided_slice %332 {offsets = [0, 256], sizes = [8, 128], strides = [1, 1]} : vector<8x512xf32> to vector<8x128xf32>
    %346 = math.tanh %345 : vector<8x128xf32>
    %347 = vector.extract_strided_slice %332 {offsets = [0, 384], sizes = [8, 128], strides = [1, 1]} : vector<8x512xf32> to vector<8x128xf32>
    %348 = arith.negf %347 : vector<8x128xf32>
    %349 = math.exp %348 : vector<8x128xf32>
    %cst_70 = arith.constant 1.000000e+00 : f32
    %350 = vector.broadcast %cst_70 : f32 to vector<8x128xf32>
    %351 = arith.addf %350, %349 : vector<8x128xf32>
    %352 = arith.divf %350, %351 : vector<8x128xf32>
    %353 = arith.mulf %344, %298 : vector<8x128xf32>
    %354 = arith.mulf %338, %346 : vector<8x128xf32>
    %355 = arith.addf %353, %354 : vector<8x128xf32>
    %356 = math.tanh %355 : vector<8x128xf32>
    %357 = arith.mulf %352, %356 : vector<8x128xf32>
    %358 = vector.extract_strided_slice %8 {offsets = [48, 0], sizes = [8, 512], strides = [1, 1]} : vector<56x512xf32> to vector<8x512xf32>
    %cst_71 = arith.constant dense<0.000000e+00> : vector<8x512xf32>
    %359 = tpu.matmul %328, %0, %cst_71 {dimension_numbers = #tpu.dot_dimension_numbers<[1], [0], [0], [1], [0, 0, 1, 1], [], []>} : vector<8x128xf32>, vector<128x512xf32>, vector<8x512xf32> -> vector<8x512xf32>
    %360 = arith.addf %358, %359 : vector<8x512xf32>
    %361 = vector.extract_strided_slice %360 {offsets = [0, 0], sizes = [8, 128], strides = [1, 1]} : vector<8x512xf32> to vector<8x128xf32>
    %362 = arith.negf %361 : vector<8x128xf32>
    %363 = math.exp %362 : vector<8x128xf32>
    %cst_72 = arith.constant 1.000000e+00 : f32
    %364 = vector.broadcast %cst_72 : f32 to vector<8x128xf32>
    %365 = arith.addf %364, %363 : vector<8x128xf32>
    %366 = arith.divf %364, %365 : vector<8x128xf32>
    %367 = vector.extract_strided_slice %360 {offsets = [0, 128], sizes = [8, 128], strides = [1, 1]} : vector<8x512xf32> to vector<8x128xf32>
    %368 = arith.negf %367 : vector<8x128xf32>
    %369 = math.exp %368 : vector<8x128xf32>
    %cst_73 = arith.constant 1.000000e+00 : f32
    %370 = vector.broadcast %cst_73 : f32 to vector<8x128xf32>
    %371 = arith.addf %370, %369 : vector<8x128xf32>
    %372 = arith.divf %370, %371 : vector<8x128xf32>
    %373 = vector.extract_strided_slice %360 {offsets = [0, 256], sizes = [8, 128], strides = [1, 1]} : vector<8x512xf32> to vector<8x128xf32>
    %374 = math.tanh %373 : vector<8x128xf32>
    %375 = vector.extract_strided_slice %360 {offsets = [0, 384], sizes = [8, 128], strides = [1, 1]} : vector<8x512xf32> to vector<8x128xf32>
    %376 = arith.negf %375 : vector<8x128xf32>
    %377 = math.exp %376 : vector<8x128xf32>
    %cst_74 = arith.constant 1.000000e+00 : f32
    %378 = vector.broadcast %cst_74 : f32 to vector<8x128xf32>
    %379 = arith.addf %378, %377 : vector<8x128xf32>
    %380 = arith.divf %378, %379 : vector<8x128xf32>
    %381 = arith.mulf %372, %326 : vector<8x128xf32>
    %382 = arith.mulf %366, %374 : vector<8x128xf32>
    %383 = arith.addf %381, %382 : vector<8x128xf32>
    %384 = math.tanh %383 : vector<8x128xf32>
    %385 = arith.mulf %380, %384 : vector<8x128xf32>
    %cst_75 = arith.constant dense<0.000000e+00> : vector<8x512xf32>
    %386 = tpu.matmul %385, %1, %cst_75 {dimension_numbers = #tpu.dot_dimension_numbers<[1], [0], [0], [1], [0, 0, 1, 1], [], []>} : vector<8x128xf32>, vector<128x512xf32>, vector<8x512xf32> -> vector<8x512xf32>
    %cst_76 = arith.constant dense<0.000000e+00> : vector<8x512xf32>
    %387 = tpu.matmul %357, %2, %cst_76 {dimension_numbers = #tpu.dot_dimension_numbers<[1], [0], [0], [1], [0, 0, 1, 1], [], []>} : vector<8x128xf32>, vector<128x512xf32>, vector<8x512xf32> -> vector<8x512xf32>
    %388 = arith.addf %386, %387 : vector<8x512xf32>
    %389 = arith.addf %388, %11 : vector<8x512xf32>
    %390 = vector.extract_strided_slice %389 {offsets = [0, 0], sizes = [8, 128], strides = [1, 1]} : vector<8x512xf32> to vector<8x128xf32>
    %391 = arith.negf %390 : vector<8x128xf32>
    %392 = math.exp %391 : vector<8x128xf32>
    %cst_77 = arith.constant 1.000000e+00 : f32
    %393 = vector.broadcast %cst_77 : f32 to vector<8x128xf32>
    %394 = arith.addf %393, %392 : vector<8x128xf32>
    %395 = arith.divf %393, %394 : vector<8x128xf32>
    %396 = vector.extract_strided_slice %389 {offsets = [0, 128], sizes = [8, 128], strides = [1, 1]} : vector<8x512xf32> to vector<8x128xf32>
    %397 = arith.negf %396 : vector<8x128xf32>
    %398 = math.exp %397 : vector<8x128xf32>
    %cst_78 = arith.constant 1.000000e+00 : f32
    %399 = vector.broadcast %cst_78 : f32 to vector<8x128xf32>
    %400 = arith.addf %399, %398 : vector<8x128xf32>
    %401 = arith.divf %399, %400 : vector<8x128xf32>
    %402 = vector.extract_strided_slice %389 {offsets = [0, 256], sizes = [8, 128], strides = [1, 1]} : vector<8x512xf32> to vector<8x128xf32>
    %403 = math.tanh %402 : vector<8x128xf32>
    %404 = vector.extract_strided_slice %389 {offsets = [0, 384], sizes = [8, 128], strides = [1, 1]} : vector<8x512xf32> to vector<8x128xf32>
    %405 = arith.negf %404 : vector<8x128xf32>
    %406 = math.exp %405 : vector<8x128xf32>
    %cst_79 = arith.constant 1.000000e+00 : f32
    %407 = vector.broadcast %cst_79 : f32 to vector<8x128xf32>
    %408 = arith.addf %407, %406 : vector<8x128xf32>
    %409 = arith.divf %407, %408 : vector<8x128xf32>
    %410 = arith.mulf %401, %355 : vector<8x128xf32>
    %411 = arith.mulf %395, %403 : vector<8x128xf32>
    %412 = arith.addf %410, %411 : vector<8x128xf32>
    %413 = math.tanh %412 : vector<8x128xf32>
    %414 = arith.mulf %409, %413 : vector<8x128xf32>
    %c0_80 = arith.constant 0 : index
    %c0_81 = arith.constant 0 : index
    %415 = vector.load %arg7[%c0_80, %c0_81] : memref<1x128xf32, #tpu.memory_space<vmem>>, vector<1x128xf32>
    %416 = vector.broadcast %415 : vector<1x128xf32> to vector<8x128xf32>
    %417 = arith.mulf %414, %416 : vector<8x128xf32>
    %cst_82 = arith.constant dense<0.000000e+00> : vector<8xf32>
    %418 = vector.multi_reduction <add>, %417, %cst_82 [1] : vector<8x128xf32> to vector<8xf32>
    %419 = vector.shape_cast %418 : vector<8xf32> to vector<8x1xf32>
    %c0_83 = arith.constant 0 : index
    %c0_84 = arith.constant 0 : index
    %420 = vector.load %arg8[%c0_83, %c0_84] : memref<1x1xf32, #tpu.memory_space<vmem>>, vector<1x1xf32>
    %421 = vector.broadcast %420 : vector<1x1xf32> to vector<8x1xf32>
    %422 = arith.addf %419, %421 : vector<8x1xf32>
    %c0_85 = arith.constant 0 : index
    %c0_86 = arith.constant 0 : index
    %423 = vector.load %arg9[%c0_85, %c0_86] : memref<8x1xf32, #tpu.memory_space<vmem>>, vector<8x1xf32>
    tpu.vector_store %arg9[%c0_85, %c0_86], %422 {strides = array<i32>} : memref<8x1xf32, #tpu.memory_space<vmem>>, vector<8x1xf32>,
    return
  }
}

</mosaic_0001>

<llo_original>
// kernel: tpu_custom_call.1
$region0: #{tpu_custom_call.1}
  #allocation0 [shape = 'u32[]', space=smem, size = 0x4, offset = 0x4, fixed_abs, tag = 'smem constant byte address 0x4 - core index']
  #allocation1 [shape = 'u32[144,128]{1,0:T(1,128)}', space=vmem, size = 0x12000, scoped, tag = 'internal scratch']
  #allocation2 [shape = 'f32[1,1]{1,0:T(1,128)S(1)}', space=vmem, size = 0x200, scoped, tag = 'scoped memory for tpu_custom_call.1']
  %s0 = inlined_call_operand.vmem [shape: f32[56,7], index: 0, kind: input, shape index: {}]
  %s1 = inlined_call_operand.vmem [shape: f32[7,512], index: 1, kind: input, shape index: {}]
  %s2 = inlined_call_operand.hbm [shape: f32[128,512], index: 2, kind: input, shape index: {}]
  %s3 = inlined_call_operand.vmem [shape: f32[1,512], index: 3, kind: input, shape index: {}]
  %s4 = inlined_call_operand.hbm [shape: f32[128,512], index: 4, kind: input, shape index: {}]
  %s5 = inlined_call_operand.hbm [shape: f32[128,512], index: 5, kind: input, shape index: {}]
  %s6 = inlined_call_operand.vmem [shape: f32[1,512], index: 6, kind: input, shape index: {}]
  %s7 = inlined_call_operand.vmem [shape: f32[1,128], index: 7, kind: input, shape index: {}]
  %s8 = inlined_call_operand.<no memory space> [shape: f32[1,1], index: 8, kind: input, shape index: {}]
  %s9 = inlined_call_operand.vmem [shape: f32[8,1], index: 9, kind: output, shape index: {}]
  %s10 = sld [smem:[#allocation0]]
  $region58: #{tpu_custom_call.1} parent=0
    _
  %s12 = ssub.s32 1, %s10
  %s13 = scalar_select 0, %s12, %s10
  %v14 = vstv %s8
  %15 = vst [vmem:[#allocation2] sm:$0x1] %v14
  $region1: #{tpu_custom_call.1} parent=0
    #allocation3 [shape = 'u8[262144]{0}', space=vmem, size = 0x40000, scoped, tag = 'input window, operand 2, single buffered']
    #allocation4 [shape = 's32[1]{0}', space=sflag, size = 0x4, scoped, tag = 'scoped memory for tpu_custom_call.1']
    #allocation5 [shape = 'u8[262144]{0}', space=vmem, size = 0x40000, scoped, tag = 'input window, operand 4, single buffered']
    #allocation6 [shape = 's32[1]{0}', space=sflag, size = 0x4, scoped, tag = 'scoped memory for tpu_custom_call.1']
    #allocation7 [shape = 'u8[262144]{0}', space=vmem, size = 0x40000, scoped, tag = 'input window, operand 5, single buffered']
    %16 = vsyncpa [#allocation4], 0
    %17 = vsyncpa [#allocation6], 0
    // Predicated region
    $region2: #{tpu_custom_call.1} parent=1 // pred_check
      _
    $region3: #{tpu_custom_call.1} parent=1 // pred_check_branch
      %19 = sbr.rel (0) target = $region5
    $region4: #{tpu_custom_call.1} parent=1 // pred_region
      _
    $region5: #{tpu_custom_call.1} parent=1 // pred_fallthru
      _
    // Predicated region
    $region6: #{tpu_custom_call.1} parent=1 // pred_check
      _
    $region7: #{tpu_custom_call.1} parent=1 // pred_check_branch
      %21 = sbr.rel (0) target = $region9
    $region8: #{tpu_custom_call.1} parent=1 // pred_region
      _
    $region9: #{tpu_custom_call.1} parent=1 // pred_fallthru
      _
    // Predicated region
    $region10: #{tpu_custom_call.1} parent=1 // pred_check
      _
    $region11: #{tpu_custom_call.1} parent=1 // pred_check_branch
      %23 = sbr.rel (0) target = $region13
    $region12: #{tpu_custom_call.1} parent=1 // pred_region
      %s25 = ssub.s32 8192, 8192
      %26 = vsyncadd [#allocation4], %s25
      %s27 = sshll.u32 [#allocation3], 4
      %s28 = int_to_ptr.vmem [resolvable:$true] %s27
      %33 = dma.hbm_to_vmem [thread:$0]  %s2, 8192, %s28, [#allocation4], 512, 512, 32
    $region13: #{tpu_custom_call.1} parent=1 // pred_fallthru
      _
    // Predicated region
    $region14: #{tpu_custom_call.1} parent=1 // pred_check
      _
    $region15: #{tpu_custom_call.1} parent=1 // pred_check_branch
      %35 = sbr.rel (0) target = $region17
    $region16: #{tpu_custom_call.1} parent=1 // pred_region
      _
    $region17: #{tpu_custom_call.1} parent=1 // pred_fallthru
      _
    // Predicated region
    $region18: #{tpu_custom_call.1} parent=1 // pred_check
      _
    $region19: #{tpu_custom_call.1} parent=1 // pred_check_branch
      %37 = sbr.rel (0) target = $region21
    $region20: #{tpu_custom_call.1} parent=1 // pred_region
      %s39 = ssub.s32 8192, 8192
      %40 = vsyncadd [#allocation6], %s39
      %s41 = sshll.u32 [#allocation5], 4
      %s42 = int_to_ptr.vmem [resolvable:$true] %s41
      %47 = dma.hbm_to_vmem [thread:$0]  %s4, 8192, %s42, [#allocation6], 512, 512, 32
    $region21: #{tpu_custom_call.1} parent=1 // pred_fallthru
      _
    // Predicated region
    $region22: #{tpu_custom_call.1} parent=1 // pred_check
      _
    $region23: #{tpu_custom_call.1} parent=1 // pred_check_branch
      %49 = sbr.rel (0) target = $region25
    $region24: #{tpu_custom_call.1} parent=1 // pred_region
      %s51 = ssub.s32 8192, 8192
      %52 = vsyncadd [#allocation6], %s51
      %s53 = sshll.u32 [#allocation7], 4
      %s54 = int_to_ptr.vmem [resolvable:$true] %s53
      %59 = dma.hbm_to_vmem [thread:$0]  %s5, 8192, %s54, [#allocation6], 512, 512, 32
    $region25: #{tpu_custom_call.1} parent=1 // pred_fallthru
      _
    // Predicated region
    $region26: #{tpu_custom_call.1} parent=1 // pred_check
      _
    $region27: #{tpu_custom_call.1} parent=1 // pred_check_branch
      %61 = sbr.rel (0) target = $region29
    $region28: #{tpu_custom_call.1} parent=1 // pred_region
      _
    $region29: #{tpu_custom_call.1} parent=1 // pred_fallthru
      _
    // Predicated region
    $region30: #{tpu_custom_call.1} parent=1 // pred_check
      _
    $region31: #{tpu_custom_call.1} parent=1 // pred_check_branch
      %63 = sbr.rel (0) target = $region33
    $region32: #{tpu_custom_call.1} parent=1 // pred_region
      _
    $region33: #{tpu_custom_call.1} parent=1 // pred_fallthru
      _
    // Predicated region
    $region34: #{tpu_custom_call.1} parent=1 // pred_check
      _
    $region35: #{tpu_custom_call.1} parent=1 // pred_check_branch
      %65 = sbr.rel (0) target = $region37
    $region36: #{tpu_custom_call.1} parent=1 // pred_region
      _
    $region37: #{tpu_custom_call.1} parent=1 // pred_fallthru
      _
    // Predicated region
    $region38: #{tpu_custom_call.1} parent=1 // pred_check
      _
    $region39: #{tpu_custom_call.1} parent=1 // pred_check_branch
      %67 = sbr.rel (0) target = $region41
    $region40: #{tpu_custom_call.1} parent=1 // pred_region
      %68 = dma.done [#allocation4], 8192
    $region41: #{tpu_custom_call.1} parent=1 // pred_fallthru
      _
    // Predicated region
    $region42: #{tpu_custom_call.1} parent=1 // pred_check
      _
    $region43: #{tpu_custom_call.1} parent=1 // pred_check_branch
      %70 = sbr.rel (0) target = $region45
    $region44: #{tpu_custom_call.1} parent=1 // pred_region
      %71 = dma.done [#allocation6], 8192
    $region45: #{tpu_custom_call.1} parent=1 // pred_fallthru
      _
    // Predicated region
    $region46: #{tpu_custom_call.1} parent=1 // pred_check
      _
    $region47: #{tpu_custom_call.1} parent=1 // pred_check_branch
      %73 = sbr.rel (0) target = $region49
    $region48: #{tpu_custom_call.1} parent=1 // pred_region
      %74 = dma.done [#allocation6], 8192
    $region49: #{tpu_custom_call.1} parent=1 // pred_fallthru
      _
    %v75 = vld [vmem:[#allocation3] sm:$0xff]
    %v76 = vld [vmem:[#allocation3 + $0x8] sm:$0xff]
    %v77 = vld [vmem:[#allocation3 + $0x10] sm:$0xff]
    %v78 = vld [vmem:[#allocation3 + $0x18] sm:$0xff]
    %v79 = vld [vmem:[#allocation3 + $0x20] sm:$0xff]
    %v80 = vld [vmem:[#allocation3 + $0x28] sm:$0xff]
    %v81 = vld [vmem:[#allocation3 + $0x30] sm:$0xff]
    %v82 = vld [vmem:[#allocation3 + $0x38] sm:$0xff]
    %v83 = vld [vmem:[#allocation3 + $0x40] sm:$0xff]
    %v84 = vld [vmem:[#allocation3 + $0x48] sm:$0xff]
    %v85 = vld [vmem:[#allocation3 + $0x50] sm:$0xff]
    %v86 = vld [vmem:[#allocation3 + $0x58] sm:$0xff]
    %v87 = vld [vmem:[#allocation3 + $0x60] sm:$0xff]
    %v88 = vld [vmem:[#allocation3 + $0x68] sm:$0xff]
    %v89 = vld [vmem:[#allocation3 + $0x70] sm:$0xff]
    %v90 = vld [vmem:[#allocation3 + $0x78] sm:$0xff]
    %v91 = vld [vmem:[#allocation3 + $0x80] sm:$0xff]
    %v92 = vld [vmem:[#allocation3 + $0x88] sm:$0xff]
    %v93 = vld [vmem:[#allocation3 + $0x90] sm:$0xff]
    %v94 = vld [vmem:[#allocation3 + $0x98] sm:$0xff]
    %v95 = vld [vmem:[#allocation3 + $0xa0] sm:$0xff]
    %v96 = vld [vmem:[#allocation3 + $0xa8] sm:$0xff]
    %v97 = vld [vmem:[#allocation3 + $0xb0] sm:$0xff]
    %v98 = vld [vmem:[#allocation3 + $0xb8] sm:$0xff]
    %v99 = vld [vmem:[#allocation3 + $0xc0] sm:$0xff]
    %v100 = vld [vmem:[#allocation3 + $0xc8] sm:$0xff]
    %v101 = vld [vmem:[#allocation3 + $0xd0] sm:$0xff]
    %v102 = vld [vmem:[#allocation3 + $0xd8] sm:$0xff]
    %v103 = vld [vmem:[#allocation3 + $0xe0] sm:$0xff]
    %v104 = vld [vmem:[#allocation3 + $0xe8] sm:$0xff]
    %v105 = vld [vmem:[#allocation3 + $0xf0] sm:$0xff]
    %v106 = vld [vmem:[#allocation3 + $0xf8] sm:$0xff]
    %v107 = vld [vmem:[#allocation3 + $0x100] sm:$0xff]
    %v108 = vld [vmem:[#allocation3 + $0x108] sm:$0xff]
    %v109 = vld [vmem:[#allocation3 + $0x110] sm:$0xff]
    %v110 = vld [vmem:[#allocation3 + $0x118] sm:$0xff]
    %v111 = vld [vmem:[#allocation3 + $0x120] sm:$0xff]
    %v112 = vld [vmem:[#allocation3 + $0x128] sm:$0xff]
    %v113 = vld [vmem:[#allocation3 + $0x130] sm:$0xff]
    %v114 = vld [vmem:[#allocation3 + $0x138] sm:$0xff]
    %v115 = vld [vmem:[#allocation3 + $0x140] sm:$0xff]
    %v116 = vld [vmem:[#allocation3 + $0x148] sm:$0xff]
    %v117 = vld [vmem:[#allocation3 + $0x150] sm:$0xff]
    %v118 = vld [vmem:[#allocation3 + $0x158] sm:$0xff]
    %v119 = vld [vmem:[#allocation3 + $0x160] sm:$0xff]
    %v120 = vld [vmem:[#allocation3 + $0x168] sm:$0xff]
    %v121 = vld [vmem:[#allocation3 + $0x170] sm:$0xff]
    %v122 = vld [vmem:[#allocation3 + $0x178] sm:$0xff]
    %v123 = vld [vmem:[#allocation3 + $0x180] sm:$0xff]
    %v124 = vld [vmem:[#allocation3 + $0x188] sm:$0xff]
    %v125 = vld [vmem:[#allocation3 + $0x190] sm:$0xff]
    %v126 = vld [vmem:[#allocation3 + $0x198] sm:$0xff]
    %v127 = vld [vmem:[#allocation3 + $0x1a0] sm:$0xff]
    %v128 = vld [vmem:[#allocation3 + $0x1a8] sm:$0xff]
    %v129 = vld [vmem:[#allocation3 + $0x1b0] sm:$0xff]
    %v130 = vld [vmem:[#allocation3 + $0x1b8] sm:$0xff]
    %v131 = vld [vmem:[#allocation3 + $0x1c0] sm:$0xff]
    %v132 = vld [vmem:[#allocation3 + $0x1c8] sm:$0xff]
    %v133 = vld [vmem:[#allocation3 + $0x1d0] sm:$0xff]
    %v134 = vld [vmem:[#allocation3 + $0x1d8] sm:$0xff]
    %v135 = vld [vmem:[#allocation3 + $0x1e0] sm:$0xff]
    %v136 = vld [vmem:[#allocation3 + $0x1e8] sm:$0xff]
    %v137 = vld [vmem:[#allocation3 + $0x1f0] sm:$0xff]
    %v138 = vld [vmem:[#allocation3 + $0x1f8] sm:$0xff]
    %v139 = vld [vmem:[#allocation5] sm:$0xff]
    %v140 = vld [vmem:[#allocation5 + $0x8] sm:$0xff]
    %v141 = vld [vmem:[#allocation5 + $0x10] sm:$0xff]
    %v142 = vld [vmem:[#allocation5 + $0x18] sm:$0xff]
    %v143 = vld [vmem:[#allocation5 + $0x20] sm:$0xff]
    %v144 = vld [vmem:[#allocation5 + $0x28] sm:$0xff]
    %v145 = vld [vmem:[#allocation5 + $0x30] sm:$0xff]
    %v146 = vld [vmem:[#allocation5 + $0x38] sm:$0xff]
    %v147 = vld [vmem:[#allocation5 + $0x40] sm:$0xff]
    %v148 = vld [vmem:[#allocation5 + $0x48] sm:$0xff]
    %v149 = vld [vmem:[#allocation5 + $0x50] sm:$0xff]
    %v150 = vld [vmem:[#allocation5 + $0x58] sm:$0xff]
    %v151 = vld [vmem:[#allocation5 + $0x60] sm:$0xff]
    %v152 = vld [vmem:[#allocation5 + $0x68] sm:$0xff]
    %v153 = vld [vmem:[#allocation5 + $0x70] sm:$0xff]
    %v154 = vld [vmem:[#allocation5 + $0x78] sm:$0xff]
    %v155 = vld [vmem:[#allocation5 + $0x80] sm:$0xff]
    %v156 = vld [vmem:[#allocation5 + $0x88] sm:$0xff]
    %v157 = vld [vmem:[#allocation5 + $0x90] sm:$0xff]
    %v158 = vld [vmem:[#allocation5 + $0x98] sm:$0xff]
    %v159 = vld [vmem:[#allocation5 + $0xa0] sm:$0xff]
    %v160 = vld [vmem:[#allocation5 + $0xa8] sm:$0xff]
    %v161 = vld [vmem:[#allocation5 + $0xb0] sm:$0xff]
    %v162 = vld [vmem:[#allocation5 + $0xb8] sm:$0xff]
    %v163 = vld [vmem:[#allocation5 + $0xc0] sm:$0xff]
    %v164 = vld [vmem:[#allocation5 + $0xc8] sm:$0xff]
    %v165 = vld [vmem:[#allocation5 + $0xd0] sm:$0xff]
    %v166 = vld [vmem:[#allocation5 + $0xd8] sm:$0xff]
    %v167 = vld [vmem:[#allocation5 + $0xe0] sm:$0xff]
    %v168 = vld [vmem:[#allocation5 + $0xe8] sm:$0xff]
    %v169 = vld [vmem:[#allocation5 + $0xf0] sm:$0xff]
    %v170 = vld [vmem:[#allocation5 + $0xf8] sm:$0xff]
    %v171 = vld [vmem:[#allocation5 + $0x100] sm:$0xff]
    %v172 = vld [vmem:[#allocation5 + $0x108] sm:$0xff]
    %v173 = vld [vmem:[#allocation5 + $0x110] sm:$0xff]
    %v174 = vld [vmem:[#allocation5 + $0x118] sm:$0xff]
    %v175 = vld [vmem:[#allocation5 + $0x120] sm:$0xff]
    %v176 = vld [vmem:[#allocation5 + $0x128] sm:$0xff]
    %v177 = vld [vmem:[#allocation5 + $0x130] sm:$0xff]
    %v178 = vld [vmem:[#allocation5 + $0x138] sm:$0xff]
    %v179 = vld [vmem:[#allocation5 + $0x140] sm:$0xff]
    %v180 = vld [vmem:[#allocation5 + $0x148] sm:$0xff]
    %v181 = vld [vmem:[#allocation5 + $0x150] sm:$0xff]
    %v182 = vld [vmem:[#allocation5 + $0x158] sm:$0xff]
    %v183 = vld [vmem:[#allocation5 + $0x160] sm:$0xff]
    %v184 = vld [vmem:[#allocation5 + $0x168] sm:$0xff]
    %v185 = vld [vmem:[#allocation5 + $0x170] sm:$0xff]
    %v186 = vld [vmem:[#allocation5 + $0x178] sm:$0xff]
    %v187 = vld [vmem:[#allocation5 + $0x180] sm:$0xff]
    %v188 = vld [vmem:[#allocation5 + $0x188] sm:$0xff]
    %v189 = vld [vmem:[#allocation5 + $0x190] sm:$0xff]
    %v190 = vld [vmem:[#allocation5 + $0x198] sm:$0xff]
    %v191 = vld [vmem:[#allocation5 + $0x1a0] sm:$0xff]
    %v192 = vld [vmem:[#allocation5 + $0x1a8] sm:$0xff]
    %v193 = vld [vmem:[#allocation5 + $0x1b0] sm:$0xff]
    %v194 = vld [vmem:[#allocation5 + $0x1b8] sm:$0xff]
    %v195 = vld [vmem:[#allocation5 + $0x1c0] sm:$0xff]
    %v196 = vld [vmem:[#allocation5 + $0x1c8] sm:$0xff]
    %v197 = vld [vmem:[#allocation5 + $0x1d0] sm:$0xff]
    %v198 = vld [vmem:[#allocation5 + $0x1d8] sm:$0xff]
    %v199 = vld [vmem:[#allocation5 + $0x1e0] sm:$0xff]
    %v200 = vld [vmem:[#allocation5 + $0x1e8] sm:$0xff]
    %v201 = vld [vmem:[#allocation5 + $0x1f0] sm:$0xff]
    %v202 = vld [vmem:[#allocation5 + $0x1f8] sm:$0xff]
    %v203 = vld [vmem:[#allocation7] sm:$0xff]
    %v204 = vld [vmem:[#allocation7 + $0x8] sm:$0xff]
    %v205 = vld [vmem:[#allocation7 + $0x10] sm:$0xff]
    %v206 = vld [vmem:[#allocation7 + $0x18] sm:$0xff]
    %v207 = vld [vmem:[#allocation7 + $0x20] sm:$0xff]
    %v208 = vld [vmem:[#allocation7 + $0x28] sm:$0xff]
    %v209 = vld [vmem:[#allocation7 + $0x30] sm:$0xff]
    %v210 = vld [vmem:[#allocation7 + $0x38] sm:$0xff]
    %v211 = vld [vmem:[#allocation7 + $0x40] sm:$0xff]
    %v212 = vld [vmem:[#allocation7 + $0x48] sm:$0xff]
    %v213 = vld [vmem:[#allocation7 + $0x50] sm:$0xff]
    %v214 = vld [vmem:[#allocation7 + $0x58] sm:$0xff]
    %v215 = vld [vmem:[#allocation7 + $0x60] sm:$0xff]
    %v216 = vld [vmem:[#allocation7 + $0x68] sm:$0xff]
    %v217 = vld [vmem:[#allocation7 + $0x70] sm:$0xff]
    %v218 = vld [vmem:[#allocation7 + $0x78] sm:$0xff]
    %v219 = vld [vmem:[#allocation7 + $0x80] sm:$0xff]
    %v220 = vld [vmem:[#allocation7 + $0x88] sm:$0xff]
    %v221 = vld [vmem:[#allocation7 + $0x90] sm:$0xff]
    %v222 = vld [vmem:[#allocation7 + $0x98] sm:$0xff]
    %v223 = vld [vmem:[#allocation7 + $0xa0] sm:$0xff]
    %v224 = vld [vmem:[#allocation7 + $0xa8] sm:$0xff]
    %v225 = vld [vmem:[#allocation7 + $0xb0] sm:$0xff]
    %v226 = vld [vmem:[#allocation7 + $0xb8] sm:$0xff]
    %v227 = vld [vmem:[#allocation7 + $0xc0] sm:$0xff]
    %v228 = vld [vmem:[#allocation7 + $0xc8] sm:$0xff]
    %v229 = vld [vmem:[#allocation7 + $0xd0] sm:$0xff]
    %v230 = vld [vmem:[#allocation7 + $0xd8] sm:$0xff]
    %v231 = vld [vmem:[#allocation7 + $0xe0] sm:$0xff]
    %v232 = vld [vmem:[#allocation7 + $0xe8] sm:$0xff]
    %v233 = vld [vmem:[#allocation7 + $0xf0] sm:$0xff]
    %v234 = vld [vmem:[#allocation7 + $0xf8] sm:$0xff]
    %v235 = vld [vmem:[#allocation7 + $0x100] sm:$0xff]
    %v236 = vld [vmem:[#allocation7 + $0x108] sm:$0xff]
    %v237 = vld [vmem:[#allocation7 + $0x110] sm:$0xff]
    %v238 = vld [vmem:[#allocation7 + $0x118] sm:$0xff]
    %v239 = vld [vmem:[#allocation7 + $0x120] sm:$0xff]
    %v240 = vld [vmem:[#allocation7 + $0x128] sm:$0xff]
    %v241 = vld [vmem:[#allocation7 + $0x130] sm:$0xff]
    %v242 = vld [vmem:[#allocation7 + $0x138] sm:$0xff]
    %v243 = vld [vmem:[#allocation7 + $0x140] sm:$0xff]
    %v244 = vld [vmem:[#allocation7 + $0x148] sm:$0xff]
    %v245 = vld [vmem:[#allocation7 + $0x150] sm:$0xff]
    %v246 = vld [vmem:[#allocation7 + $0x158] sm:$0xff]
    %v247 = vld [vmem:[#allocation7 + $0x160] sm:$0xff]
    %v248 = vld [vmem:[#allocation7 + $0x168] sm:$0xff]
    %v249 = vld [vmem:[#allocation7 + $0x170] sm:$0xff]
    %v250 = vld [vmem:[#allocation7 + $0x178] sm:$0xff]
    %v251 = vld [vmem:[#allocation7 + $0x180] sm:$0xff]
    %v252 = vld [vmem:[#allocation7 + $0x188] sm:$0xff]
    %v253 = vld [vmem:[#allocation7 + $0x190] sm:$0xff]
    %v254 = vld [vmem:[#allocation7 + $0x198] sm:$0xff]
    %v255 = vld [vmem:[#allocation7 + $0x1a0] sm:$0xff]
    %v256 = vld [vmem:[#allocation7 + $0x1a8] sm:$0xff]
    %v257 = vld [vmem:[#allocation7 + $0x1b0] sm:$0xff]
    %v258 = vld [vmem:[#allocation7 + $0x1b8] sm:$0xff]
    %v259 = vld [vmem:[#allocation7 + $0x1c0] sm:$0xff]
    %v260 = vld [vmem:[#allocation7 + $0x1c8] sm:$0xff]
    %v261 = vld [vmem:[#allocation7 + $0x1d0] sm:$0xff]
    %v262 = vld [vmem:[#allocation7 + $0x1d8] sm:$0xff]
    %v263 = vld [vmem:[#allocation7 + $0x1e0] sm:$0xff]
    %v264 = vld [vmem:[#allocation7 + $0x1e8] sm:$0xff]
    %v265 = vld [vmem:[#allocation7 + $0x1f0] sm:$0xff]
    %v266 = vld [vmem:[#allocation7 + $0x1f8] sm:$0xff]
    %v267 = vld [vmem:[%s0] sm:$0xff]
    %v268 = vld [vmem:[%s0 + $0x8] sm:$0xff]
    %v269 = vld [vmem:[%s0 + $0x10] sm:$0xff]
    %v270 = vld [vmem:[%s0 + $0x18] sm:$0xff]
    %v271 = vld [vmem:[%s0 + $0x20] sm:$0xff]
    %v272 = vld [vmem:[%s0 + $0x28] sm:$0xff]
    %v273 = vld [vmem:[%s0 + $0x30] sm:$0xff]
    %v274 = vld [vmem:[%s1] sm:$0x7f]
    %v275 = vld [vmem:[%s1 + $0x8] sm:$0x7f]
    %v276 = vld [vmem:[%s1 + $0x10] sm:$0x7f]
    %v277 = vld [vmem:[%s1 + $0x18] sm:$0x7f]
    %v278 = vld [vmem:[%s3] sm:$0xf]
    %v280 = vlaneseq
    %v281 = vshrl.u32 %v280, 7
    %v282 = vsub.s32 0, %v281
    %v283 = vrot.slane %v278, %v282
    %v284 = vlaneseq
    %v285 = vshrl.u32 %v284, 7
    %v286 = vsub.s32 1, %v285
    %v287 = vrot.slane %v278, %v286
    %v288 = vlaneseq
    %v289 = vshrl.u32 %v288, 7
    %v290 = vsub.s32 2, %v289
    %v291 = vrot.slane %v278, %v290
    %v292 = vlaneseq
    %v293 = vshrl.u32 %v292, 7
    %v294 = vsub.s32 3, %v293
    %v295 = vrot.slane %v278, %v294
    %vm300 = vcmask 56320
    %v302 = vsel %vm300, %v267, 0
    %v305 = vsel %vm300, %v268, 0
    %v308 = vsel %vm300, %v269, 0
    %v311 = vsel %vm300, %v270, 0
    %v314 = vsel %vm300, %v271, 0
    %v317 = vsel %vm300, %v272, 0
    %v320 = vsel %vm300, %v273, 0
    %vm322 = vcmask 1046528
    %v324 = vsel %vm322, %v274, 0
    %v327 = vsel %vm322, %v275, 0
    %v330 = vsel %vm322, %v276, 0
    %v333 = vsel %vm322, %v277, 0
    %335 = vmatprep.subr.mxu0 0.0
    %336 = vmatpush1.msra.mxu0 0.0
    %337 = vmatprep.subr.mxu0 0.0
    %338 = vmatpush1.msra.mxu0 0.0
    %339 = vmatprep.subr.mxu0 0.0
    %340 = vmatpush1.msra.mxu0 0.0
    %341 = vmatprep.subr.mxu0 0.0
    %342 = vmatpush1.msra.mxu0 0.0
    %343 = vmatprep.subr.mxu0 0.0
    %344 = vmatpush1.msra.mxu0 0.0
    %345 = vmatprep.subr.mxu0 0.0
    %346 = vmatpush1.msra.mxu0 0.0
    %347 = vmatprep.subr.mxu0 0.0
    %348 = vmatpush1.msra.mxu0 0.0
    %349 = vmatprep.subr.mxu0 0.0
    %350 = vmatpush1.msra.mxu0 0.0
    %351 = vmatprep.subr.mxu0 0.0
    %352 = vmatpush1.msra.mxu0 0.0
    %353 = vmatprep.subr.mxu0 0.0
    %354 = vmatpush1.msra.mxu0 0.0
    %355 = vmatprep.subr.mxu0 0.0
    %356 = vmatpush1.msra.mxu0 0.0
    %357 = vmatprep.subr.mxu0 0.0
    %358 = vmatpush1.msra.mxu0 0.0
    %359 = vmatprep.subr.mxu0 0.0
    %360 = vmatpush1.msra.mxu0 0.0
    %361 = vmatprep.subr.mxu0 0.0
    %362 = vmatpush1.msra.mxu0 0.0
    %363 = vmatprep.subr.mxu0 0.0
    %364 = vmatpush1.msra.mxu0 0.0
    %365 = vmatprep.subr.mxu0 %v327
    %366 = vmatpush1.msra.mxu0 %v324
    %367 = vmatprep.subr.mxu0 0.0
    %368 = vmatpush2.msra.mxu0 0.0
    %369 = vmatprep.subr.mxu0 0.0
    %370 = vmatpush2.msra.mxu0 0.0
    %371 = vmatprep.subr.mxu0 0.0
    %372 = vmatpush2.msra.mxu0 0.0
    %373 = vmatprep.subr.mxu0 0.0
    %374 = vmatpush2.msra.mxu0 0.0
    %375 = vmatprep.subr.mxu0 0.0
    %376 = vmatpush2.msra.mxu0 0.0
    %377 = vmatprep.subr.mxu0 0.0
    %378 = vmatpush2.msra.mxu0 0.0
    %379 = vmatprep.subr.mxu0 0.0
    %380 = vmatpush2.msra.mxu0 0.0
    %381 = vmatprep.subr.mxu0 0.0
    %382 = vmatpush2.msra.mxu0 0.0
    %383 = vmatprep.subr.mxu0 0.0
    %384 = vmatpush2.msra.mxu0 0.0
    %385 = vmatprep.subr.mxu0 0.0
    %386 = vmatpush2.msra.mxu0 0.0
    %387 = vmatprep.subr.mxu0 0.0
    %388 = vmatpush2.msra.mxu0 0.0
    %389 = vmatprep.subr.mxu0 0.0
    %390 = vmatpush2.msra.mxu0 0.0
    %391 = vmatprep.subr.mxu0 0.0
    %392 = vmatpush2.msra.mxu0 0.0
    %393 = vmatprep.subr.mxu0 0.0
    %394 = vmatpush2.msra.mxu0 0.0
    %395 = vmatprep.subr.mxu0 0.0
    %396 = vmatpush2.msra.mxu0 0.0
    %397 = vmatprep.subr.mxu0 0.0
    %398 = vmatpush2.msra.mxu0 0.0
    %399 = vmatprep.mubr.f32.mxu0 0.0
    %400 = vmatmul.mubr.f32.gmra.mxu0 %v302
    %v401 = vpop.f32.mrf.mxu0
    %v402 = vadd.f32 %v283, %v401
    %v403 = vpop.f32.mrf.mxu0
    %v404 = vadd.f32 %v287, %v403
    %405 = vmatprep.mubr.f32.mxu0 0.0
    %406 = vmatmul.mubr.f32.gmra.mxu0 %v305
    %v407 = vpop.f32.mrf.mxu0
    %v408 = vadd.f32 %v283, %v407
    %v409 = vpop.f32.mrf.mxu0
    %v410 = vadd.f32 %v287, %v409
    %411 = vmatprep.mubr.f32.mxu0 0.0
    %412 = vmatmul.mubr.f32.gmra.mxu0 %v308
    %v413 = vpop.f32.mrf.mxu0
    %v414 = vadd.f32 %v283, %v413
    %v415 = vpop.f32.mrf.mxu0
    %v416 = vadd.f32 %v287, %v415
    %417 = vmatprep.mubr.f32.mxu0 0.0
    %418 = vmatmul.mubr.f32.gmra.mxu0 %v311
    %v419 = vpop.f32.mrf.mxu0
    %v420 = vadd.f32 %v283, %v419
    %v421 = vpop.f32.mrf.mxu0
    %v422 = vadd.f32 %v287, %v421
    %423 = vmatprep.mubr.f32.mxu0 0.0
    %424 = vmatmul.mubr.f32.gmra.mxu0 %v314
    %v425 = vpop.f32.mrf.mxu0
    %v426 = vadd.f32 %v283, %v425
    %v427 = vpop.f32.mrf.mxu0
    %v428 = vadd.f32 %v287, %v427
    %429 = vmatprep.mubr.f32.mxu0 0.0
    %430 = vmatmul.mubr.f32.gmra.mxu0 %v317
    %v431 = vpop.f32.mrf.mxu0
    %v432 = vadd.f32 %v283, %v431
    %v433 = vpop.f32.mrf.mxu0
    %v434 = vadd.f32 %v287, %v433
    %435 = vmatprep.mubr.f32.mxu0 0.0
    %436 = vmatmul.mubr.f32.gmra.mxu0 %v320
    %v437 = vpop.f32.mrf.mxu0
    %v438 = vadd.f32 %v283, %v437
    %v439 = vpop.f32.mrf.mxu0
    %v440 = vadd.f32 %v287, %v439
    %441 = vdwg.mxu0
    %442 = vmatprep.subr.mxu0 0.0
    %443 = vmatpush1.msra.mxu0 0.0
    %444 = vmatprep.subr.mxu0 0.0
    %445 = vmatpush1.msra.mxu0 0.0
    %446 = vmatprep.subr.mxu0 0.0
    %447 = vmatpush1.msra.mxu0 0.0
    %448 = vmatprep.subr.mxu0 0.0
    %449 = vmatpush1.msra.mxu0 0.0
    %450 = vmatprep.subr.mxu0 0.0
    %451 = vmatpush1.msra.mxu0 0.0
    %452 = vmatprep.subr.mxu0 0.0
    %453 = vmatpush1.msra.mxu0 0.0
    %454 = vmatprep.subr.mxu0 0.0
    %455 = vmatpush1.msra.mxu0 0.0
    %456 = vmatprep.subr.mxu0 0.0
    %457 = vmatpush1.msra.mxu0 0.0
    %458 = vmatprep.subr.mxu0 0.0
    %459 = vmatpush1.msra.mxu0 0.0
    %460 = vmatprep.subr.mxu0 0.0
    %461 = vmatpush1.msra.mxu0 0.0
    %462 = vmatprep.subr.mxu0 0.0
    %463 = vmatpush1.msra.mxu0 0.0
    %464 = vmatprep.subr.mxu0 0.0
    %465 = vmatpush1.msra.mxu0 0.0
    %466 = vmatprep.subr.mxu0 0.0
    %467 = vmatpush1.msra.mxu0 0.0
    %468 = vmatprep.subr.mxu0 0.0
    %469 = vmatpush1.msra.mxu0 0.0
    %470 = vmatprep.subr.mxu0 0.0
    %471 = vmatpush1.msra.mxu0 0.0
    %472 = vmatprep.subr.mxu0 %v333
    %473 = vmatpush1.msra.mxu0 %v330
    %474 = vmatprep.subr.mxu0 0.0
    %475 = vmatpush2.msra.mxu0 0.0
    %476 = vmatprep.subr.mxu0 0.0
    %477 = vmatpush2.msra.mxu0 0.0
    %478 = vmatprep.subr.mxu0 0.0
    %479 = vmatpush2.msra.mxu0 0.0
    %480 = vmatprep.subr.mxu0 0.0
    %481 = vmatpush2.msra.mxu0 0.0
    %482 = vmatprep.subr.mxu0 0.0
    %483 = vmatpush2.msra.mxu0 0.0
    %484 = vmatprep.subr.mxu0 0.0
    %485 = vmatpush2.msra.mxu0 0.0
    %486 = vmatprep.subr.mxu0 0.0
    %487 = vmatpush2.msra.mxu0 0.0
    %488 = vmatprep.subr.mxu0 0.0
    %489 = vmatpush2.msra.mxu0 0.0
    %490 = vmatprep.subr.mxu0 0.0
    %491 = vmatpush2.msra.mxu0 0.0
    %492 = vmatprep.subr.mxu0 0.0
    %493 = vmatpush2.msra.mxu0 0.0
    %494 = vmatprep.subr.mxu0 0.0
    %495 = vmatpush2.msra.mxu0 0.0
    %496 = vmatprep.subr.mxu0 0.0
    %497 = vmatpush2.msra.mxu0 0.0
    %498 = vmatprep.subr.mxu0 0.0
    %499 = vmatpush2.msra.mxu0 0.0
    %500 = vmatprep.subr.mxu0 0.0
    %501 = vmatpush2.msra.mxu0 0.0
    %502 = vmatprep.subr.mxu0 0.0
    %503 = vmatpush2.msra.mxu0 0.0
    %504 = vmatprep.subr.mxu0 0.0
    %505 = vmatpush2.msra.mxu0 0.0
    %506 = vmatprep.mubr.f32.mxu0 0.0
    %507 = vmatmul.mubr.f32.gmra.mxu0 %v302
    %v508 = vpop.f32.mrf.mxu0
    %v509 = vadd.f32 %v291, %v508
    %v510 = vpop.f32.mrf.mxu0
    %v511 = vadd.f32 %v295, %v510
    %512 = vmatprep.mubr.f32.mxu0 0.0
    %513 = vmatmul.mubr.f32.gmra.mxu0 %v305
    %v514 = vpop.f32.mrf.mxu0
    %v515 = vadd.f32 %v291, %v514
    %v516 = vpop.f32.mrf.mxu0
    %v517 = vadd.f32 %v295, %v516
    %518 = vmatprep.mubr.f32.mxu0 0.0
    %519 = vmatmul.mubr.f32.gmra.mxu0 %v308
    %v520 = vpop.f32.mrf.mxu0
    %v521 = vadd.f32 %v291, %v520
    %v522 = vpop.f32.mrf.mxu0
    %v523 = vadd.f32 %v295, %v522
    %524 = vmatprep.mubr.f32.mxu0 0.0
    %525 = vmatmul.mubr.f32.gmra.mxu0 %v311
    %v526 = vpop.f32.mrf.mxu0
    %v527 = vadd.f32 %v291, %v526
    %v528 = vpop.f32.mrf.mxu0
    %v529 = vadd.f32 %v295, %v528
    %530 = vmatprep.mubr.f32.mxu0 0.0
    %531 = vmatmul.mubr.f32.gmra.mxu0 %v314
    %v532 = vpop.f32.mrf.mxu0
    %v533 = vadd.f32 %v291, %v532
    %v534 = vpop.f32.mrf.mxu0
    %v535 = vadd.f32 %v295, %v534
    %536 = vmatprep.mubr.f32.mxu0 0.0
    %537 = vmatmul.mubr.f32.gmra.mxu0 %v317
    %v538 = vpop.f32.mrf.mxu0
    %v539 = vadd.f32 %v291, %v538
    %v540 = vpop.f32.mrf.mxu0
    %v541 = vadd.f32 %v295, %v540
    %542 = vmatprep.mubr.f32.mxu0 0.0
    %543 = vmatmul.mubr.f32.gmra.mxu0 %v320
    %v544 = vpop.f32.mrf.mxu0
    %v545 = vadd.f32 %v291, %v544
    %v546 = vpop.f32.mrf.mxu0
    %v547 = vadd.f32 %v295, %v546
    %548 = vdwg.mxu0
    %v549 = vld [vmem:[%s6] sm:$0xf]
    %v551 = vlaneseq
    %v552 = vshrl.u32 %v551, 7
    %v553 = vsub.s32 0, %v552
    %v554 = vrot.slane %v549, %v553
    %v555 = vlaneseq
    %v556 = vshrl.u32 %v555, 7
    %v557 = vsub.s32 1, %v556
    %v558 = vrot.slane %v549, %v557
    %v559 = vlaneseq
    %v560 = vshrl.u32 %v559, 7
    %v561 = vsub.s32 2, %v560
    %v562 = vrot.slane %v549, %v561
    %v563 = vlaneseq
    %v564 = vshrl.u32 %v563, 7
    %v565 = vsub.s32 3, %v564
    %v566 = vrot.slane %v549, %v565
    %571 = vmatprep.subr.mxu0 %v136
    %572 = vmatpush1.msra.mxu0 %v135
    %573 = vmatprep.subr.mxu0 %v132
    %574 = vmatpush1.msra.mxu0 %v131
    %575 = vmatprep.subr.mxu0 %v128
    %576 = vmatpush1.msra.mxu0 %v127
    %577 = vmatprep.subr.mxu0 %v124
    %578 = vmatpush1.msra.mxu0 %v123
    %579 = vmatprep.subr.mxu0 %v120
    %580 = vmatpush1.msra.mxu0 %v119
    %581 = vmatprep.subr.mxu0 %v116
    %582 = vmatpush1.msra.mxu0 %v115
    %583 = vmatprep.subr.mxu0 %v112
    %584 = vmatpush1.msra.mxu0 %v111
    %585 = vmatprep.subr.mxu0 %v108
    %586 = vmatpush1.msra.mxu0 %v107
    %587 = vmatprep.subr.mxu0 %v104
    %588 = vmatpush1.msra.mxu0 %v103
    %589 = vmatprep.subr.mxu0 %v100
    %590 = vmatpush1.msra.mxu0 %v99
    %591 = vmatprep.subr.mxu0 %v96
    %592 = vmatpush1.msra.mxu0 %v95
    %593 = vmatprep.subr.mxu0 %v92
    %594 = vmatpush1.msra.mxu0 %v91
    %595 = vmatprep.subr.mxu0 %v88
    %596 = vmatpush1.msra.mxu0 %v87
    %597 = vmatprep.subr.mxu0 %v84
    %598 = vmatpush1.msra.mxu0 %v83
    %599 = vmatprep.subr.mxu0 %v80
    %600 = vmatpush1.msra.mxu0 %v79
    %601 = vmatprep.subr.mxu0 %v76
    %602 = vmatpush1.msra.mxu0 %v75
    %603 = vmatprep.subr.mxu0 0.0
    %604 = vmatpush2.msra.mxu0 0.0
    %605 = vmatprep.subr.mxu0 0.0
    %606 = vmatpush2.msra.mxu0 0.0
    %607 = vmatprep.subr.mxu0 0.0
    %608 = vmatpush2.msra.mxu0 0.0
    %609 = vmatprep.subr.mxu0 0.0
    %610 = vmatpush2.msra.mxu0 0.0
    %611 = vmatprep.subr.mxu0 0.0
    %612 = vmatpush2.msra.mxu0 0.0
    %613 = vmatprep.subr.mxu0 0.0
    %614 = vmatpush2.msra.mxu0 0.0
    %615 = vmatprep.subr.mxu0 0.0
    %616 = vmatpush2.msra.mxu0 0.0
    %617 = vmatprep.subr.mxu0 0.0
    %618 = vmatpush2.msra.mxu0 0.0
    %619 = vmatprep.subr.mxu0 0.0
    %620 = vmatpush2.msra.mxu0 0.0
    %621 = vmatprep.subr.mxu0 0.0
    %622 = vmatpush2.msra.mxu0 0.0
    %623 = vmatprep.subr.mxu0 0.0
    %624 = vmatpush2.msra.mxu0 0.0
    %625 = vmatprep.subr.mxu0 0.0
    %626 = vmatpush2.msra.mxu0 0.0
    %627 = vmatprep.subr.mxu0 0.0
    %628 = vmatpush2.msra.mxu0 0.0
    %629 = vmatprep.subr.mxu0 0.0
    %630 = vmatpush2.msra.mxu0 0.0
    %631 = vmatprep.subr.mxu0 0.0
    %632 = vmatpush2.msra.mxu0 0.0
    %633 = vmatprep.subr.mxu0 0.0
    %634 = vmatpush2.msra.mxu0 0.0
    %635 = vmatprep.mubr.f32.mxu0 0.0
    %636 = vmatmul.mubr.f32.gmra.mxu0 0.0
    %v637 = vpop.f32.mrf.mxu0
    %v638 = vadd.f32 0.0, %v637
    %v639 = vpop.f32.mrf.mxu0
    %v640 = vadd.f32 0.0, %v639
    %641 = vdwg.mxu0
    %642 = vmatprep.subr.mxu0 %v138
    %643 = vmatpush1.msra.mxu0 %v137
    %644 = vmatprep.subr.mxu0 %v134
    %645 = vmatpush1.msra.mxu0 %v133
    %646 = vmatprep.subr.mxu0 %v130
    %647 = vmatpush1.msra.mxu0 %v129
    %648 = vmatprep.subr.mxu0 %v126
    %649 = vmatpush1.msra.mxu0 %v125
    %650 = vmatprep.subr.mxu0 %v122
    %651 = vmatpush1.msra.mxu0 %v121
    %652 = vmatprep.subr.mxu0 %v118
    %653 = vmatpush1.msra.mxu0 %v117
    %654 = vmatprep.subr.mxu0 %v114
    %655 = vmatpush1.msra.mxu0 %v113
    %656 = vmatprep.subr.mxu0 %v110
    %657 = vmatpush1.msra.mxu0 %v109
    %658 = vmatprep.subr.mxu0 %v106
    %659 = vmatpush1.msra.mxu0 %v105
    %660 = vmatprep.subr.mxu0 %v102
    %661 = vmatpush1.msra.mxu0 %v101
    %662 = vmatprep.subr.mxu0 %v98
    %663 = vmatpush1.msra.mxu0 %v97
    %664 = vmatprep.subr.mxu0 %v94
    %665 = vmatpush1.msra.mxu0 %v93
    %666 = vmatprep.subr.mxu0 %v90
    %667 = vmatpush1.msra.mxu0 %v89
    %668 = vmatprep.subr.mxu0 %v86
    %669 = vmatpush1.msra.mxu0 %v85
    %670 = vmatprep.subr.mxu0 %v82
    %671 = vmatpush1.msra.mxu0 %v81
    %672 = vmatprep.subr.mxu0 %v78
    %673 = vmatpush1.msra.mxu0 %v77
    %674 = vmatprep.subr.mxu0 0.0
    %675 = vmatpush2.msra.mxu0 0.0
    %676 = vmatprep.subr.mxu0 0.0
    %677 = vmatpush2.msra.mxu0 0.0
    %678 = vmatprep.subr.mxu0 0.0
    %679 = vmatpush2.msra.mxu0 0.0
    %680 = vmatprep.subr.mxu0 0.0
    %681 = vmatpush2.msra.mxu0 0.0
    %682 = vmatprep.subr.mxu0 0.0
    %683 = vmatpush2.msra.mxu0 0.0
    %684 = vmatprep.subr.mxu0 0.0
    %685 = vmatpush2.msra.mxu0 0.0
    %686 = vmatprep.subr.mxu0 0.0
    %687 = vmatpush2.msra.mxu0 0.0
    %688 = vmatprep.subr.mxu0 0.0
    %689 = vmatpush2.msra.mxu0 0.0
    %690 = vmatprep.subr.mxu0 0.0
    %691 = vmatpush2.msra.mxu0 0.0
    %692 = vmatprep.subr.mxu0 0.0
    %693 = vmatpush2.msra.mxu0 0.0
    %694 = vmatprep.subr.mxu0 0.0
    %695 = vmatpush2.msra.mxu0 0.0
    %696 = vmatprep.subr.mxu0 0.0
    %697 = vmatpush2.msra.mxu0 0.0
    %698 = vmatprep.subr.mxu0 0.0
    %699 = vmatpush2.msra.mxu0 0.0
    %700 = vmatprep.subr.mxu0 0.0
    %701 = vmatpush2.msra.mxu0 0.0
    %702 = vmatprep.subr.mxu0 0.0
    %703 = vmatpush2.msra.mxu0 0.0
    %704 = vmatprep.subr.mxu0 0.0
    %705 = vmatpush2.msra.mxu0 0.0
    %706 = vmatprep.mubr.f32.mxu0 0.0
    %707 = vmatmul.mubr.f32.gmra.mxu0 0.0
    %v708 = vpop.f32.mrf.mxu0
    %v709 = vadd.f32 0.0, %v708
    %v710 = vpop.f32.mrf.mxu0
    %v711 = vadd.f32 0.0, %v710
    %712 = vdwg.mxu0
    %v713 = vadd.f32 %v402, %v638
    %v714 = vadd.f32 %v404, %v640
    %v715 = vadd.f32 %v509, %v709
    %v716 = vadd.f32 %v511, %v711
    %v717 = vxor.u32 %v713, 2147483648
    %v718 = vmul.f32 %v717, 1.442695
    %v719 = vpow.pop %v718
    %v720 = vadd.f32 %v719, 1.0
    %v721 = vrcp.pop %v720
    %v722 = vmul.f32 1.0, %v721
    %v723 = vxor.u32 %v714, 2147483648
    %v724 = vmul.f32 %v723, 1.442695
    %v725 = vpow.pop %v724
    %v726 = vadd.f32 %v725, 1.0
    %v727 = vrcp.pop %v726
    %v728 = vmul.f32 1.0, %v727
    %v729 = vtanh.pop %v715
    %v730 = vxor.u32 %v716, 2147483648
    %v731 = vmul.f32 %v730, 1.442695
    %v732 = vpow.pop %v731
    %v733 = vadd.f32 %v732, 1.0
    %v734 = vrcp.pop %v733
    %v735 = vmul.f32 1.0, %v734
    %v736 = vmul.f32 %v728, 0.0
    %v737 = vmul.f32 %v722, %v729
    %v738 = vadd.f32 %v736, %v737
    %v739 = vtanh.pop %v738
    %v740 = vmul.f32 %v735, %v739
    %741 = vmatprep.subr.mxu0 %v264
    %742 = vmatpush1.msra.mxu0 %v263
    %743 = vmatprep.subr.mxu0 %v260
    %744 = vmatpush1.msra.mxu0 %v259
    %745 = vmatprep.subr.mxu0 %v256
    %746 = vmatpush1.msra.mxu0 %v255
    %747 = vmatprep.subr.mxu0 %v252
    %748 = vmatpush1.msra.mxu0 %v251
    %749 = vmatprep.subr.mxu0 %v248
    %750 = vmatpush1.msra.mxu0 %v247
    %751 = vmatprep.subr.mxu0 %v244
    %752 = vmatpush1.msra.mxu0 %v243
    %753 = vmatprep.subr.mxu0 %v240
    %754 = vmatpush1.msra.mxu0 %v239
    %755 = vmatprep.subr.mxu0 %v236
    %756 = vmatpush1.msra.mxu0 %v235
    %757 = vmatprep.subr.mxu0 %v232
    %758 = vmatpush1.msra.mxu0 %v231
    %759 = vmatprep.subr.mxu0 %v228
    %760 = vmatpush1.msra.mxu0 %v227
    %761 = vmatprep.subr.mxu0 %v224
    %762 = vmatpush1.msra.mxu0 %v223
    %763 = vmatprep.subr.mxu0 %v220
    %764 = vmatpush1.msra.mxu0 %v219
    %765 = vmatprep.subr.mxu0 %v216
    %766 = vmatpush1.msra.mxu0 %v215
    %767 = vmatprep.subr.mxu0 %v212
    %768 = vmatpush1.msra.mxu0 %v211
    %769 = vmatprep.subr.mxu0 %v208
    %770 = vmatpush1.msra.mxu0 %v207
    %771 = vmatprep.subr.mxu0 %v204
    %772 = vmatpush1.msra.mxu0 %v203
    %773 = vmatprep.subr.mxu0 0.0
    %774 = vmatpush2.msra.mxu0 0.0
    %775 = vmatprep.subr.mxu0 0.0
    %776 = vmatpush2.msra.mxu0 0.0
    %777 = vmatprep.subr.mxu0 0.0
    %778 = vmatpush2.msra.mxu0 0.0
    %779 = vmatprep.subr.mxu0 0.0
    %780 = vmatpush2.msra.mxu0 0.0
    %781 = vmatprep.subr.mxu0 0.0
    %782 = vmatpush2.msra.mxu0 0.0
    %783 = vmatprep.subr.mxu0 0.0
    %784 = vmatpush2.msra.mxu0 0.0
    %785 = vmatprep.subr.mxu0 0.0
    %786 = vmatpush2.msra.mxu0 0.0
    %787 = vmatprep.subr.mxu0 0.0
    %788 = vmatpush2.msra.mxu0 0.0
    %789 = vmatprep.subr.mxu0 0.0
    %790 = vmatpush2.msra.mxu0 0.0
    %791 = vmatprep.subr.mxu0 0.0
    %792 = vmatpush2.msra.mxu0 0.0
    %793 = vmatprep.subr.mxu0 0.0
    %794 = vmatpush2.msra.mxu0 0.0
    %795 = vmatprep.subr.mxu0 0.0
    %796 = vmatpush2.msra.mxu0 0.0
    %797 = vmatprep.subr.mxu0 0.0
    %798 = vmatpush2.msra.mxu0 0.0
    %799 = vmatprep.subr.mxu0 0.0
    %800 = vmatpush2.msra.mxu0 0.0
    %801 = vmatprep.subr.mxu0 0.0
    %802 = vmatpush2.msra.mxu0 0.0
    %803 = vmatprep.subr.mxu0 0.0
    %804 = vmatpush2.msra.mxu0 0.0
    %805 = vmatprep.mubr.f32.mxu0 0.0
    %806 = vmatmul.mubr.f32.gmra.mxu0 0.0
    %v807 = vpop.f32.mrf.mxu0
    %v808 = vadd.f32 0.0, %v807
    %v809 = vpop.f32.mrf.mxu0
    %v810 = vadd.f32 0.0, %v809
    %811 = vdwg.mxu0
    %812 = vmatprep.subr.mxu0 %v266
    %813 = vmatpush1.msra.mxu0 %v265
    %814 = vmatprep.subr.mxu0 %v262
    %815 = vmatpush1.msra.mxu0 %v261
    %816 = vmatprep.subr.mxu0 %v258
    %817 = vmatpush1.msra.mxu0 %v257
    %818 = vmatprep.subr.mxu0 %v254
    %819 = vmatpush1.msra.mxu0 %v253
    %820 = vmatprep.subr.mxu0 %v250
    %821 = vmatpush1.msra.mxu0 %v249
    %822 = vmatprep.subr.mxu0 %v246
    %823 = vmatpush1.msra.mxu0 %v245
    %824 = vmatprep.subr.mxu0 %v242
    %825 = vmatpush1.msra.mxu0 %v241
    %826 = vmatprep.subr.mxu0 %v238
    %827 = vmatpush1.msra.mxu0 %v237
    %828 = vmatprep.subr.mxu0 %v234
    %829 = vmatpush1.msra.mxu0 %v233
    %830 = vmatprep.subr.mxu0 %v230
    %831 = vmatpush1.msra.mxu0 %v229
    %832 = vmatprep.subr.mxu0 %v226
    %833 = vmatpush1.msra.mxu0 %v225
    %834 = vmatprep.subr.mxu0 %v222
    %835 = vmatpush1.msra.mxu0 %v221
    %836 = vmatprep.subr.mxu0 %v218
    %837 = vmatpush1.msra.mxu0 %v217
    %838 = vmatprep.subr.mxu0 %v214
    %839 = vmatpush1.msra.mxu0 %v213
    %840 = vmatprep.subr.mxu0 %v210
    %841 = vmatpush1.msra.mxu0 %v209
    %842 = vmatprep.subr.mxu0 %v206
    %843 = vmatpush1.msra.mxu0 %v205
    %844 = vmatprep.subr.mxu0 0.0
    %845 = vmatpush2.msra.mxu0 0.0
    %846 = vmatprep.subr.mxu0 0.0
    %847 = vmatpush2.msra.mxu0 0.0
    %848 = vmatprep.subr.mxu0 0.0
    %849 = vmatpush2.msra.mxu0 0.0
    %850 = vmatprep.subr.mxu0 0.0
    %851 = vmatpush2.msra.mxu0 0.0
    %852 = vmatprep.subr.mxu0 0.0
    %853 = vmatpush2.msra.mxu0 0.0
    %854 = vmatprep.subr.mxu0 0.0
    %855 = vmatpush2.msra.mxu0 0.0
    %856 = vmatprep.subr.mxu0 0.0
    %857 = vmatpush2.msra.mxu0 0.0
    %858 = vmatprep.subr.mxu0 0.0
    %859 = vmatpush2.msra.mxu0 0.0
    %860 = vmatprep.subr.mxu0 0.0
    %861 = vmatpush2.msra.mxu0 0.0
    %862 = vmatprep.subr.mxu0 0.0
    %863 = vmatpush2.msra.mxu0 0.0
    %864 = vmatprep.subr.mxu0 0.0
    %865 = vmatpush2.msra.mxu0 0.0
    %866 = vmatprep.subr.mxu0 0.0
    %867 = vmatpush2.msra.mxu0 0.0
    %868 = vmatprep.subr.mxu0 0.0
    %869 = vmatpush2.msra.mxu0 0.0
    %870 = vmatprep.subr.mxu0 0.0
    %871 = vmatpush2.msra.mxu0 0.0
    %872 = vmatprep.subr.mxu0 0.0
    %873 = vmatpush2.msra.mxu0 0.0
    %874 = vmatprep.subr.mxu0 0.0
    %875 = vmatpush2.msra.mxu0 0.0
    %876 = vmatprep.mubr.f32.mxu0 0.0
    %877 = vmatmul.mubr.f32.gmra.mxu0 0.0
    %v878 = vpop.f32.mrf.mxu0
    %v879 = vadd.f32 0.0, %v878
    %v880 = vpop.f32.mrf.mxu0
    %v881 = vadd.f32 0.0, %v880
    %882 = vdwg.mxu0
    %883 = vmatprep.subr.mxu0 %v200
    %884 = vmatpush1.msra.mxu0 %v199
    %885 = vmatprep.subr.mxu0 %v196
    %886 = vmatpush1.msra.mxu0 %v195
    %887 = vmatprep.subr.mxu0 %v192
    %888 = vmatpush1.msra.mxu0 %v191
    %889 = vmatprep.subr.mxu0 %v188
    %890 = vmatpush1.msra.mxu0 %v187
    %891 = vmatprep.subr.mxu0 %v184
    %892 = vmatpush1.msra.mxu0 %v183
    %893 = vmatprep.subr.mxu0 %v180
    %894 = vmatpush1.msra.mxu0 %v179
    %895 = vmatprep.subr.mxu0 %v176
    %896 = vmatpush1.msra.mxu0 %v175
    %897 = vmatprep.subr.mxu0 %v172
    %898 = vmatpush1.msra.mxu0 %v171
    %899 = vmatprep.subr.mxu0 %v168
    %900 = vmatpush1.msra.mxu0 %v167
    %901 = vmatprep.subr.mxu0 %v164
    %902 = vmatpush1.msra.mxu0 %v163
    %903 = vmatprep.subr.mxu0 %v160
    %904 = vmatpush1.msra.mxu0 %v159
    %905 = vmatprep.subr.mxu0 %v156
    %906 = vmatpush1.msra.mxu0 %v155
    %907 = vmatprep.subr.mxu0 %v152
    %908 = vmatpush1.msra.mxu0 %v151
    %909 = vmatprep.subr.mxu0 %v148
    %910 = vmatpush1.msra.mxu0 %v147
    %911 = vmatprep.subr.mxu0 %v144
    %912 = vmatpush1.msra.mxu0 %v143
    %913 = vmatprep.subr.mxu0 %v140
    %914 = vmatpush1.msra.mxu0 %v139
    %915 = vmatprep.subr.mxu0 0.0
    %916 = vmatpush2.msra.mxu0 0.0
    %917 = vmatprep.subr.mxu0 0.0
    %918 = vmatpush2.msra.mxu0 0.0
    %919 = vmatprep.subr.mxu0 0.0
    %920 = vmatpush2.msra.mxu0 0.0
    %921 = vmatprep.subr.mxu0 0.0
    %922 = vmatpush2.msra.mxu0 0.0
    %923 = vmatprep.subr.mxu0 0.0
    %924 = vmatpush2.msra.mxu0 0.0
    %925 = vmatprep.subr.mxu0 0.0
    %926 = vmatpush2.msra.mxu0 0.0
    %927 = vmatprep.subr.mxu0 0.0
    %928 = vmatpush2.msra.mxu0 0.0
    %929 = vmatprep.subr.mxu0 0.0
    %930 = vmatpush2.msra.mxu0 0.0
    %931 = vmatprep.subr.mxu0 0.0
    %932 = vmatpush2.msra.mxu0 0.0
    %933 = vmatprep.subr.mxu0 0.0
    %934 = vmatpush2.msra.mxu0 0.0
    %935 = vmatprep.subr.mxu0 0.0
    %936 = vmatpush2.msra.mxu0 0.0
    %937 = vmatprep.subr.mxu0 0.0
    %938 = vmatpush2.msra.mxu0 0.0
    %939 = vmatprep.subr.mxu0 0.0
    %940 = vmatpush2.msra.mxu0 0.0
    %941 = vmatprep.subr.mxu0 0.0
    %942 = vmatpush2.msra.mxu0 0.0
    %943 = vmatprep.subr.mxu0 0.0
    %944 = vmatpush2.msra.mxu0 0.0
    %945 = vmatprep.subr.mxu0 0.0
    %946 = vmatpush2.msra.mxu0 0.0
    %947 = vmatprep.mubr.f32.mxu0 0.0
    %948 = vmatmul.mubr.f32.gmra.mxu0 %v740
    %v949 = vpop.f32.mrf.mxu0
    %v950 = vadd.f32 %v808, %v949
    %v951 = vpop.f32.mrf.mxu0
    %v952 = vadd.f32 %v810, %v951
    %953 = vdwg.mxu0
    %954 = vmatprep.subr.mxu0 %v202
    %955 = vmatpush1.msra.mxu0 %v201
    %956 = vmatprep.subr.mxu0 %v198
    %957 = vmatpush1.msra.mxu0 %v197
    %958 = vmatprep.subr.mxu0 %v194
    %959 = vmatpush1.msra.mxu0 %v193
    %960 = vmatprep.subr.mxu0 %v190
    %961 = vmatpush1.msra.mxu0 %v189
    %962 = vmatprep.subr.mxu0 %v186
    %963 = vmatpush1.msra.mxu0 %v185
    %964 = vmatprep.subr.mxu0 %v182
    %965 = vmatpush1.msra.mxu0 %v181
    %966 = vmatprep.subr.mxu0 %v178
    %967 = vmatpush1.msra.mxu0 %v177
    %968 = vmatprep.subr.mxu0 %v174
    %969 = vmatpush1.msra.mxu0 %v173
    %970 = vmatprep.subr.mxu0 %v170
    %971 = vmatpush1.msra.mxu0 %v169
    %972 = vmatprep.subr.mxu0 %v166
    %973 = vmatpush1.msra.mxu0 %v165
    %974 = vmatprep.subr.mxu0 %v162
    %975 = vmatpush1.msra.mxu0 %v161
    %976 = vmatprep.subr.mxu0 %v158
    %977 = vmatpush1.msra.mxu0 %v157
    %978 = vmatprep.subr.mxu0 %v154
    %979 = vmatpush1.msra.mxu0 %v153
    %980 = vmatprep.subr.mxu0 %v150
    %981 = vmatpush1.msra.mxu0 %v149
    %982 = vmatprep.subr.mxu0 %v146
    %983 = vmatpush1.msra.mxu0 %v145
    %984 = vmatprep.subr.mxu0 %v142
    %985 = vmatpush1.msra.mxu0 %v141
    %986 = vmatprep.subr.mxu0 0.0
    %987 = vmatpush2.msra.mxu0 0.0
    %988 = vmatprep.subr.mxu0 0.0
    %989 = vmatpush2.msra.mxu0 0.0
    %990 = vmatprep.subr.mxu0 0.0
    %991 = vmatpush2.msra.mxu0 0.0
    %992 = vmatprep.subr.mxu0 0.0
    %993 = vmatpush2.msra.mxu0 0.0
    %994 = vmatprep.subr.mxu0 0.0
    %995 = vmatpush2.msra.mxu0 0.0
    %996 = vmatprep.subr.mxu0 0.0
    %997 = vmatpush2.msra.mxu0 0.0
    %998 = vmatprep.subr.mxu0 0.0
    %999 = vmatpush2.msra.mxu0 0.0
    %1000 = vmatprep.subr.mxu0 0.0
    %1001 = vmatpush2.msra.mxu0 0.0
    %1002 = vmatprep.subr.mxu0 0.0
    %1003 = vmatpush2.msra.mxu0 0.0
    %1004 = vmatprep.subr.mxu0 0.0
    %1005 = vmatpush2.msra.mxu0 0.0
    %1006 = vmatprep.subr.mxu0 0.0
    %1007 = vmatpush2.msra.mxu0 0.0
    %1008 = vmatprep.subr.mxu0 0.0
    %1009 = vmatpush2.msra.mxu0 0.0
    %1010 = vmatprep.subr.mxu0 0.0
    %1011 = vmatpush2.msra.mxu0 0.0
    %1012 = vmatprep.subr.mxu0 0.0
    %1013 = vmatpush2.msra.mxu0 0.0
    %1014 = vmatprep.subr.mxu0 0.0
    %1015 = vmatpush2.msra.mxu0 0.0
    %1016 = vmatprep.subr.mxu0 0.0
    %1017 = vmatpush2.msra.mxu0 0.0
    %1018 = vmatprep.mubr.f32.mxu0 0.0
    %1019 = vmatmul.mubr.f32.gmra.mxu0 %v740
    %v1020 = vpop.f32.mrf.mxu0
    %v1021 = vadd.f32 %v879, %v1020
    %v1022 = vpop.f32.mrf.mxu0
    %v1023 = vadd.f32 %v881, %v1022
    %1024 = vdwg.mxu0
    %v1025 = vadd.f32 %v950, %v554
    %v1026 = vadd.f32 %v952, %v558
    %v1027 = vadd.f32 %v1021, %v562
    %v1028 = vadd.f32 %v1023, %v566
    %v1029 = vxor.u32 %v1025, 2147483648
    %v1030 = vmul.f32 %v1029, 1.442695
    %v1031 = vpow.pop %v1030
    %v1032 = vadd.f32 %v1031, 1.0
    %v1033 = vrcp.pop %v1032
    %v1034 = vmul.f32 1.0, %v1033
    %v1035 = vxor.u32 %v1026, 2147483648
    %v1036 = vmul.f32 %v1035, 1.442695
    %v1037 = vpow.pop %v1036
    %v1038 = vadd.f32 %v1037, 1.0
    %v1039 = vrcp.pop %v1038
    %v1040 = vmul.f32 1.0, %v1039
    %v1041 = vtanh.pop %v1027
    %v1042 = vxor.u32 %v1028, 2147483648
    %v1043 = vmul.f32 %v1042, 1.442695
    %v1044 = vpow.pop %v1043
    %v1045 = vadd.f32 %v1044, 1.0
    %v1046 = vrcp.pop %v1045
    %v1047 = vmul.f32 1.0, %v1046
    %v1048 = vmul.f32 %v1040, 0.0
    %v1049 = vmul.f32 %v1034, %v1041
    %v1050 = vadd.f32 %v1048, %v1049
    %v1051 = vtanh.pop %v1050
    %v1052 = vmul.f32 %v1047, %v1051
    %1053 = vmatprep.subr.mxu0 %v136
    %1054 = vmatpush1.msra.mxu0 %v135
    %1055 = vmatprep.subr.mxu0 %v132
    %1056 = vmatpush1.msra.mxu0 %v131
    %1057 = vmatprep.subr.mxu0 %v128
    %1058 = vmatpush1.msra.mxu0 %v127
    %1059 = vmatprep.subr.mxu0 %v124
    %1060 = vmatpush1.msra.mxu0 %v123
    %1061 = vmatprep.subr.mxu0 %v120
    %1062 = vmatpush1.msra.mxu0 %v119
    %1063 = vmatprep.subr.mxu0 %v116
    %1064 = vmatpush1.msra.mxu0 %v115
    %1065 = vmatprep.subr.mxu0 %v112
    %1066 = vmatpush1.msra.mxu0 %v111
    %1067 = vmatprep.subr.mxu0 %v108
    %1068 = vmatpush1.msra.mxu0 %v107
    %1069 = vmatprep.subr.mxu0 %v104
    %1070 = vmatpush1.msra.mxu0 %v103
    %1071 = vmatprep.subr.mxu0 %v100
    %1072 = vmatpush1.msra.mxu0 %v99
    %1073 = vmatprep.subr.mxu0 %v96
    %1074 = vmatpush1.msra.mxu0 %v95
    %1075 = vmatprep.subr.mxu0 %v92
    %1076 = vmatpush1.msra.mxu0 %v91
    %1077 = vmatprep.subr.mxu0 %v88
    %1078 = vmatpush1.msra.mxu0 %v87
    %1079 = vmatprep.subr.mxu0 %v84
    %1080 = vmatpush1.msra.mxu0 %v83
    %1081 = vmatprep.subr.mxu0 %v80
    %1082 = vmatpush1.msra.mxu0 %v79
    %1083 = vmatprep.subr.mxu0 %v76
    %1084 = vmatpush1.msra.mxu0 %v75
    %1085 = vmatprep.subr.mxu0 0.0
    %1086 = vmatpush2.msra.mxu0 0.0
    %1087 = vmatprep.subr.mxu0 0.0
    %1088 = vmatpush2.msra.mxu0 0.0
    %1089 = vmatprep.subr.mxu0 0.0
    %1090 = vmatpush2.msra.mxu0 0.0
    %1091 = vmatprep.subr.mxu0 0.0
    %1092 = vmatpush2.msra.mxu0 0.0
    %1093 = vmatprep.subr.mxu0 0.0
    %1094 = vmatpush2.msra.mxu0 0.0
    %1095 = vmatprep.subr.mxu0 0.0
    %1096 = vmatpush2.msra.mxu0 0.0
    %1097 = vmatprep.subr.mxu0 0.0
    %1098 = vmatpush2.msra.mxu0 0.0
    %1099 = vmatprep.subr.mxu0 0.0
    %1100 = vmatpush2.msra.mxu0 0.0
    %1101 = vmatprep.subr.mxu0 0.0
    %1102 = vmatpush2.msra.mxu0 0.0
    %1103 = vmatprep.subr.mxu0 0.0
    %1104 = vmatpush2.msra.mxu0 0.0
    %1105 = vmatprep.subr.mxu0 0.0
    %1106 = vmatpush2.msra.mxu0 0.0
    %1107 = vmatprep.subr.mxu0 0.0
    %1108 = vmatpush2.msra.mxu0 0.0
    %1109 = vmatprep.subr.mxu0 0.0
    %1110 = vmatpush2.msra.mxu0 0.0
    %1111 = vmatprep.subr.mxu0 0.0
    %1112 = vmatpush2.msra.mxu0 0.0
    %1113 = vmatprep.subr.mxu0 0.0
    %1114 = vmatpush2.msra.mxu0 0.0
    %1115 = vmatprep.subr.mxu0 0.0
    %1116 = vmatpush2.msra.mxu0 0.0
    %1117 = vmatprep.mubr.f32.mxu0 0.0
    %1118 = vmatmul.mubr.f32.gmra.mxu0 %v740
    %v1119 = vpop.f32.mrf.mxu0
    %v1120 = vadd.f32 0.0, %v1119
    %v1121 = vpop.f32.mrf.mxu0
    %v1122 = vadd.f32 0.0, %v1121
    %1123 = vdwg.mxu0
    %1124 = vmatprep.subr.mxu0 %v138
    %1125 = vmatpush1.msra.mxu0 %v137
    %1126 = vmatprep.subr.mxu0 %v134
    %1127 = vmatpush1.msra.mxu0 %v133
    %1128 = vmatprep.subr.mxu0 %v130
    %1129 = vmatpush1.msra.mxu0 %v129
    %1130 = vmatprep.subr.mxu0 %v126
    %1131 = vmatpush1.msra.mxu0 %v125
    %1132 = vmatprep.subr.mxu0 %v122
    %1133 = vmatpush1.msra.mxu0 %v121
    %1134 = vmatprep.subr.mxu0 %v118
    %1135 = vmatpush1.msra.mxu0 %v117
    %1136 = vmatprep.subr.mxu0 %v114
    %1137 = vmatpush1.msra.mxu0 %v113
    %1138 = vmatprep.subr.mxu0 %v110
    %1139 = vmatpush1.msra.mxu0 %v109
    %1140 = vmatprep.subr.mxu0 %v106
    %1141 = vmatpush1.msra.mxu0 %v105
    %1142 = vmatprep.subr.mxu0 %v102
    %1143 = vmatpush1.msra.mxu0 %v101
    %1144 = vmatprep.subr.mxu0 %v98
    %1145 = vmatpush1.msra.mxu0 %v97
    %1146 = vmatprep.subr.mxu0 %v94
    %1147 = vmatpush1.msra.mxu0 %v93
    %1148 = vmatprep.subr.mxu0 %v90
    %1149 = vmatpush1.msra.mxu0 %v89
    %1150 = vmatprep.subr.mxu0 %v86
    %1151 = vmatpush1.msra.mxu0 %v85
    %1152 = vmatprep.subr.mxu0 %v82
    %1153 = vmatpush1.msra.mxu0 %v81
    %1154 = vmatprep.subr.mxu0 %v78
    %1155 = vmatpush1.msra.mxu0 %v77
    %1156 = vmatprep.subr.mxu0 0.0
    %1157 = vmatpush2.msra.mxu0 0.0
    %1158 = vmatprep.subr.mxu0 0.0
    %1159 = vmatpush2.msra.mxu0 0.0
    %1160 = vmatprep.subr.mxu0 0.0
    %1161 = vmatpush2.msra.mxu0 0.0
    %1162 = vmatprep.subr.mxu0 0.0
    %1163 = vmatpush2.msra.mxu0 0.0
    %1164 = vmatprep.subr.mxu0 0.0
    %1165 = vmatpush2.msra.mxu0 0.0
    %1166 = vmatprep.subr.mxu0 0.0
    %1167 = vmatpush2.msra.mxu0 0.0
    %1168 = vmatprep.subr.mxu0 0.0
    %1169 = vmatpush2.msra.mxu0 0.0
    %1170 = vmatprep.subr.mxu0 0.0
    %1171 = vmatpush2.msra.mxu0 0.0
    %1172 = vmatprep.subr.mxu0 0.0
    %1173 = vmatpush2.msra.mxu0 0.0
    %1174 = vmatprep.subr.mxu0 0.0
    %1175 = vmatpush2.msra.mxu0 0.0
    %1176 = vmatprep.subr.mxu0 0.0
    %1177 = vmatpush2.msra.mxu0 0.0
    %1178 = vmatprep.subr.mxu0 0.0
    %1179 = vmatpush2.msra.mxu0 0.0
    %1180 = vmatprep.subr.mxu0 0.0
    %1181 = vmatpush2.msra.mxu0 0.0
    %1182 = vmatprep.subr.mxu0 0.0
    %1183 = vmatpush2.msra.mxu0 0.0
    %1184 = vmatprep.subr.mxu0 0.0
    %1185 = vmatpush2.msra.mxu0 0.0
    %1186 = vmatprep.subr.mxu0 0.0
    %1187 = vmatpush2.msra.mxu0 0.0
    %1188 = vmatprep.mubr.f32.mxu0 0.0
    %1189 = vmatmul.mubr.f32.gmra.mxu0 %v740
    %v1190 = vpop.f32.mrf.mxu0
    %v1191 = vadd.f32 0.0, %v1190
    %v1192 = vpop.f32.mrf.mxu0
    %v1193 = vadd.f32 0.0, %v1192
    %1194 = vdwg.mxu0
    %v1195 = vadd.f32 %v408, %v1120
    %v1196 = vadd.f32 %v410, %v1122
    %v1197 = vadd.f32 %v515, %v1191
    %v1198 = vadd.f32 %v517, %v1193
    %v1199 = vxor.u32 %v1195, 2147483648
    %v1200 = vmul.f32 %v1199, 1.442695
    %v1201 = vpow.pop %v1200
    %v1202 = vadd.f32 %v1201, 1.0
    %v1203 = vrcp.pop %v1202
    %v1204 = vmul.f32 1.0, %v1203
    %v1205 = vxor.u32 %v1196, 2147483648
    %v1206 = vmul.f32 %v1205, 1.442695
    %v1207 = vpow.pop %v1206
    %v1208 = vadd.f32 %v1207, 1.0
    %v1209 = vrcp.pop %v1208
    %v1210 = vmul.f32 1.0, %v1209
    %v1211 = vtanh.pop %v1197
    %v1212 = vxor.u32 %v1198, 2147483648
    %v1213 = vmul.f32 %v1212, 1.442695
    %v1214 = vpow.pop %v1213
    %v1215 = vadd.f32 %v1214, 1.0
    %v1216 = vrcp.pop %v1215
    %v1217 = vmul.f32 1.0, %v1216
    %v1218 = vmul.f32 %v1210, %v738
    %v1219 = vmul.f32 %v1204, %v1211
    %v1220 = vadd.f32 %v1218, %v1219
    %v1221 = vtanh.pop %v1220
    %v1222 = vmul.f32 %v1217, %v1221
    %1223 = vmatprep.subr.mxu0 %v264
    %1224 = vmatpush1.msra.mxu0 %v263
    %1225 = vmatprep.subr.mxu0 %v260
    %1226 = vmatpush1.msra.mxu0 %v259
    %1227 = vmatprep.subr.mxu0 %v256
    %1228 = vmatpush1.msra.mxu0 %v255
    %1229 = vmatprep.subr.mxu0 %v252
    %1230 = vmatpush1.msra.mxu0 %v251
    %1231 = vmatprep.subr.mxu0 %v248
    %1232 = vmatpush1.msra.mxu0 %v247
    %1233 = vmatprep.subr.mxu0 %v244
    %1234 = vmatpush1.msra.mxu0 %v243
    %1235 = vmatprep.subr.mxu0 %v240
    %1236 = vmatpush1.msra.mxu0 %v239
    %1237 = vmatprep.subr.mxu0 %v236
    %1238 = vmatpush1.msra.mxu0 %v235
    %1239 = vmatprep.subr.mxu0 %v232
    %1240 = vmatpush1.msra.mxu0 %v231
    %1241 = vmatprep.subr.mxu0 %v228
    %1242 = vmatpush1.msra.mxu0 %v227
    %1243 = vmatprep.subr.mxu0 %v224
    %1244 = vmatpush1.msra.mxu0 %v223
    %1245 = vmatprep.subr.mxu0 %v220
    %1246 = vmatpush1.msra.mxu0 %v219
    %1247 = vmatprep.subr.mxu0 %v216
    %1248 = vmatpush1.msra.mxu0 %v215
    %1249 = vmatprep.subr.mxu0 %v212
    %1250 = vmatpush1.msra.mxu0 %v211
    %1251 = vmatprep.subr.mxu0 %v208
    %1252 = vmatpush1.msra.mxu0 %v207
    %1253 = vmatprep.subr.mxu0 %v204
    %1254 = vmatpush1.msra.mxu0 %v203
    %1255 = vmatprep.subr.mxu0 0.0
    %1256 = vmatpush2.msra.mxu0 0.0
    %1257 = vmatprep.subr.mxu0 0.0
    %1258 = vmatpush2.msra.mxu0 0.0
    %1259 = vmatprep.subr.mxu0 0.0
    %1260 = vmatpush2.msra.mxu0 0.0
    %1261 = vmatprep.subr.mxu0 0.0
    %1262 = vmatpush2.msra.mxu0 0.0
    %1263 = vmatprep.subr.mxu0 0.0
    %1264 = vmatpush2.msra.mxu0 0.0
    %1265 = vmatprep.subr.mxu0 0.0
    %1266 = vmatpush2.msra.mxu0 0.0
    %1267 = vmatprep.subr.mxu0 0.0
    %1268 = vmatpush2.msra.mxu0 0.0
    %1269 = vmatprep.subr.mxu0 0.0
    %1270 = vmatpush2.msra.mxu0 0.0
    %1271 = vmatprep.subr.mxu0 0.0
    %1272 = vmatpush2.msra.mxu0 0.0
    %1273 = vmatprep.subr.mxu0 0.0
    %1274 = vmatpush2.msra.mxu0 0.0
    %1275 = vmatprep.subr.mxu0 0.0
    %1276 = vmatpush2.msra.mxu0 0.0
    %1277 = vmatprep.subr.mxu0 0.0
    %1278 = vmatpush2.msra.mxu0 0.0
    %1279 = vmatprep.subr.mxu0 0.0
    %1280 = vmatpush2.msra.mxu0 0.0
    %1281 = vmatprep.subr.mxu0 0.0
    %1282 = vmatpush2.msra.mxu0 0.0
    %1283 = vmatprep.subr.mxu0 0.0
    %1284 = vmatpush2.msra.mxu0 0.0
    %1285 = vmatprep.subr.mxu0 0.0
    %1286 = vmatpush2.msra.mxu0 0.0
    %1287 = vmatprep.mubr.f32.mxu0 0.0
    %1288 = vmatmul.mubr.f32.gmra.mxu0 %v1052
    %v1289 = vpop.f32.mrf.mxu0
    %v1290 = vadd.f32 0.0, %v1289
    %v1291 = vpop.f32.mrf.mxu0
    %v1292 = vadd.f32 0.0, %v1291
    %1293 = vdwg.mxu0
    %1294 = vmatprep.subr.mxu0 %v266
    %1295 = vmatpush1.msra.mxu0 %v265
    %1296 = vmatprep.subr.mxu0 %v262
    %1297 = vmatpush1.msra.mxu0 %v261
    %1298 = vmatprep.subr.mxu0 %v258
    %1299 = vmatpush1.msra.mxu0 %v257
    %1300 = vmatprep.subr.mxu0 %v254
    %1301 = vmatpush1.msra.mxu0 %v253
    %1302 = vmatprep.subr.mxu0 %v250
    %1303 = vmatpush1.msra.mxu0 %v249
    %1304 = vmatprep.subr.mxu0 %v246
    %1305 = vmatpush1.msra.mxu0 %v245
    %1306 = vmatprep.subr.mxu0 %v242
    %1307 = vmatpush1.msra.mxu0 %v241
    %1308 = vmatprep.subr.mxu0 %v238
    %1309 = vmatpush1.msra.mxu0 %v237
    %1310 = vmatprep.subr.mxu0 %v234
    %1311 = vmatpush1.msra.mxu0 %v233
    %1312 = vmatprep.subr.mxu0 %v230
    %1313 = vmatpush1.msra.mxu0 %v229
    %1314 = vmatprep.subr.mxu0 %v226
    %1315 = vmatpush1.msra.mxu0 %v225
    %1316 = vmatprep.subr.mxu0 %v222
    %1317 = vmatpush1.msra.mxu0 %v221
    %1318 = vmatprep.subr.mxu0 %v218
    %1319 = vmatpush1.msra.mxu0 %v217
    %1320 = vmatprep.subr.mxu0 %v214
    %1321 = vmatpush1.msra.mxu0 %v213
    %1322 = vmatprep.subr.mxu0 %v210
    %1323 = vmatpush1.msra.mxu0 %v209
    %1324 = vmatprep.subr.mxu0 %v206
    %1325 = vmatpush1.msra.mxu0 %v205
    %1326 = vmatprep.subr.mxu0 0.0
    %1327 = vmatpush2.msra.mxu0 0.0
    %1328 = vmatprep.subr.mxu0 0.0
    %1329 = vmatpush2.msra.mxu0 0.0
    %1330 = vmatprep.subr.mxu0 0.0
    %1331 = vmatpush2.msra.mxu0 0.0
    %1332 = vmatprep.subr.mxu0 0.0
    %1333 = vmatpush2.msra.mxu0 0.0
    %1334 = vmatprep.subr.mxu0 0.0
    %1335 = vmatpush2.msra.mxu0 0.0
    %1336 = vmatprep.subr.mxu0 0.0
    %1337 = vmatpush2.msra.mxu0 0.0
    %1338 = vmatprep.subr.mxu0 0.0
    %1339 = vmatpush2.msra.mxu0 0.0
    %1340 = vmatprep.subr.mxu0 0.0
    %1341 = vmatpush2.msra.mxu0 0.0
    %1342 = vmatprep.subr.mxu0 0.0
    %1343 = vmatpush2.msra.mxu0 0.0
    %1344 = vmatprep.subr.mxu0 0.0
    %1345 = vmatpush2.msra.mxu0 0.0
    %1346 = vmatprep.subr.mxu0 0.0
    %1347 = vmatpush2.msra.mxu0 0.0
    %1348 = vmatprep.subr.mxu0 0.0
    %1349 = vmatpush2.msra.mxu0 0.0
    %1350 = vmatprep.subr.mxu0 0.0
    %1351 = vmatpush2.msra.mxu0 0.0
    %1352 = vmatprep.subr.mxu0 0.0
    %1353 = vmatpush2.msra.mxu0 0.0
    %1354 = vmatprep.subr.mxu0 0.0
    %1355 = vmatpush2.msra.mxu0 0.0
    %1356 = vmatprep.subr.mxu0 0.0
    %1357 = vmatpush2.msra.mxu0 0.0
    %1358 = vmatprep.mubr.f32.mxu0 0.0
    %1359 = vmatmul.mubr.f32.gmra.mxu0 %v1052
    %v1360 = vpop.f32.mrf.mxu0
    %v1361 = vadd.f32 0.0, %v1360
    %v1362 = vpop.f32.mrf.mxu0
    %v1363 = vadd.f32 0.0, %v1362
    %1364 = vdwg.mxu0
    %1365 = vmatprep.subr.mxu0 %v200
    %1366 = vmatpush1.msra.mxu0 %v199
    %1367 = vmatprep.subr.mxu0 %v196
    %1368 = vmatpush1.msra.mxu0 %v195
    %1369 = vmatprep.subr.mxu0 %v192
    %1370 = vmatpush1.msra.mxu0 %v191
    %1371 = vmatprep.subr.mxu0 %v188
    %1372 = vmatpush1.msra.mxu0 %v187
    %1373 = vmatprep.subr.mxu0 %v184
    %1374 = vmatpush1.msra.mxu0 %v183
    %1375 = vmatprep.subr.mxu0 %v180
    %1376 = vmatpush1.msra.mxu0 %v179
    %1377 = vmatprep.subr.mxu0 %v176
    %1378 = vmatpush1.msra.mxu0 %v175
    %1379 = vmatprep.subr.mxu0 %v172
    %1380 = vmatpush1.msra.mxu0 %v171
    %1381 = vmatprep.subr.mxu0 %v168
    %1382 = vmatpush1.msra.mxu0 %v167
    %1383 = vmatprep.subr.mxu0 %v164
    %1384 = vmatpush1.msra.mxu0 %v163
    %1385 = vmatprep.subr.mxu0 %v160
    %1386 = vmatpush1.msra.mxu0 %v159
    %1387 = vmatprep.subr.mxu0 %v156
    %1388 = vmatpush1.msra.mxu0 %v155
    %1389 = vmatprep.subr.mxu0 %v152
    %1390 = vmatpush1.msra.mxu0 %v151
    %1391 = vmatprep.subr.mxu0 %v148
    %1392 = vmatpush1.msra.mxu0 %v147
    %1393 = vmatprep.subr.mxu0 %v144
    %1394 = vmatpush1.msra.mxu0 %v143
    %1395 = vmatprep.subr.mxu0 %v140
    %1396 = vmatpush1.msra.mxu0 %v139
    %1397 = vmatprep.subr.mxu0 0.0
    %1398 = vmatpush2.msra.mxu0 0.0
    %1399 = vmatprep.subr.mxu0 0.0
    %1400 = vmatpush2.msra.mxu0 0.0
    %1401 = vmatprep.subr.mxu0 0.0
    %1402 = vmatpush2.msra.mxu0 0.0
    %1403 = vmatprep.subr.mxu0 0.0
    %1404 = vmatpush2.msra.mxu0 0.0
    %1405 = vmatprep.subr.mxu0 0.0
    %1406 = vmatpush2.msra.mxu0 0.0
    %1407 = vmatprep.subr.mxu0 0.0
    %1408 = vmatpush2.msra.mxu0 0.0
    %1409 = vmatprep.subr.mxu0 0.0
    %1410 = vmatpush2.msra.mxu0 0.0
    %1411 = vmatprep.subr.mxu0 0.0
    %1412 = vmatpush2.msra.mxu0 0.0
    %1413 = vmatprep.subr.mxu0 0.0
    %1414 = vmatpush2.msra.mxu0 0.0
    %1415 = vmatprep.subr.mxu0 0.0
    %1416 = vmatpush2.msra.mxu0 0.0
    %1417 = vmatprep.subr.mxu0 0.0
    %1418 = vmatpush2.msra.mxu0 0.0
    %1419 = vmatprep.subr.mxu0 0.0
    %1420 = vmatpush2.msra.mxu0 0.0
    %1421 = vmatprep.subr.mxu0 0.0
    %1422 = vmatpush2.msra.mxu0 0.0
    %1423 = vmatprep.subr.mxu0 0.0
    %1424 = vmatpush2.msra.mxu0 0.0
    %1425 = vmatprep.subr.mxu0 0.0
    %1426 = vmatpush2.msra.mxu0 0.0
    %1427 = vmatprep.subr.mxu0 0.0
    %1428 = vmatpush2.msra.mxu0 0.0
    %1429 = vmatprep.mubr.f32.mxu0 0.0
    %1430 = vmatmul.mubr.f32.gmra.mxu0 %v1222
    %v1431 = vpop.f32.mrf.mxu0
    %v1432 = vadd.f32 %v1290, %v1431
    %v1433 = vpop.f32.mrf.mxu0
    %v1434 = vadd.f32 %v1292, %v1433
    %1435 = vdwg.mxu0
    %1436 = vmatprep.subr.mxu0 %v202
    %1437 = vmatpush1.msra.mxu0 %v201
    %1438 = vmatprep.subr.mxu0 %v198
    %1439 = vmatpush1.msra.mxu0 %v197
    %1440 = vmatprep.subr.mxu0 %v194
    %1441 = vmatpush1.msra.mxu0 %v193
    %1442 = vmatprep.subr.mxu0 %v190
    %1443 = vmatpush1.msra.mxu0 %v189
    %1444 = vmatprep.subr.mxu0 %v186
    %1445 = vmatpush1.msra.mxu0 %v185
    %1446 = vmatprep.subr.mxu0 %v182
    %1447 = vmatpush1.msra.mxu0 %v181
    %1448 = vmatprep.subr.mxu0 %v178
    %1449 = vmatpush1.msra.mxu0 %v177
    %1450 = vmatprep.subr.mxu0 %v174
    %1451 = vmatpush1.msra.mxu0 %v173
    %1452 = vmatprep.subr.mxu0 %v170
    %1453 = vmatpush1.msra.mxu0 %v169
    %1454 = vmatprep.subr.mxu0 %v166
    %1455 = vmatpush1.msra.mxu0 %v165
    %1456 = vmatprep.subr.mxu0 %v162
    %1457 = vmatpush1.msra.mxu0 %v161
    %1458 = vmatprep.subr.mxu0 %v158
    %1459 = vmatpush1.msra.mxu0 %v157
    %1460 = vmatprep.subr.mxu0 %v154
    %1461 = vmatpush1.msra.mxu0 %v153
    %1462 = vmatprep.subr.mxu0 %v150
    %1463 = vmatpush1.msra.mxu0 %v149
    %1464 = vmatprep.subr.mxu0 %v146
    %1465 = vmatpush1.msra.mxu0 %v145
    %1466 = vmatprep.subr.mxu0 %v142
    %1467 = vmatpush1.msra.mxu0 %v141
    %1468 = vmatprep.subr.mxu0 0.0
    %1469 = vmatpush2.msra.mxu0 0.0
    %1470 = vmatprep.subr.mxu0 0.0
    %1471 = vmatpush2.msra.mxu0 0.0
    %1472 = vmatprep.subr.mxu0 0.0
    %1473 = vmatpush2.msra.mxu0 0.0
    %1474 = vmatprep.subr.mxu0 0.0
    %1475 = vmatpush2.msra.mxu0 0.0
    %1476 = vmatprep.subr.mxu0 0.0
    %1477 = vmatpush2.msra.mxu0 0.0
    %1478 = vmatprep.subr.mxu0 0.0
    %1479 = vmatpush2.msra.mxu0 0.0
    %1480 = vmatprep.subr.mxu0 0.0
    %1481 = vmatpush2.msra.mxu0 0.0
    %1482 = vmatprep.subr.mxu0 0.0
    %1483 = vmatpush2.msra.mxu0 0.0
    %1484 = vmatprep.subr.mxu0 0.0
    %1485 = vmatpush2.msra.mxu0 0.0
    %1486 = vmatprep.subr.mxu0 0.0
    %1487 = vmatpush2.msra.mxu0 0.0
    %1488 = vmatprep.subr.mxu0 0.0
    %1489 = vmatpush2.msra.mxu0 0.0
    %1490 = vmatprep.subr.mxu0 0.0
    %1491 = vmatpush2.msra.mxu0 0.0
    %1492 = vmatprep.subr.mxu0 0.0
    %1493 = vmatpush2.msra.mxu0 0.0
    %1494 = vmatprep.subr.mxu0 0.0
    %1495 = vmatpush2.msra.mxu0 0.0
    %1496 = vmatprep.subr.mxu0 0.0
    %1497 = vmatpush2.msra.mxu0 0.0
    %1498 = vmatprep.subr.mxu0 0.0
    %1499 = vmatpush2.msra.mxu0 0.0
    %1500 = vmatprep.mubr.f32.mxu0 0.0
    %1501 = vmatmul.mubr.f32.gmra.mxu0 %v1222
    %v1502 = vpop.f32.mrf.mxu0
    %v1503 = vadd.f32 %v1361, %v1502
    %v1504 = vpop.f32.mrf.mxu0
    %v1505 = vadd.f32 %v1363, %v1504
    %1506 = vdwg.mxu0
    %v1507 = vadd.f32 %v1432, %v554
    %v1508 = vadd.f32 %v1434, %v558
    %v1509 = vadd.f32 %v1503, %v562
    %v1510 = vadd.f32 %v1505, %v566
    %v1511 = vxor.u32 %v1507, 2147483648
    %v1512 = vmul.f32 %v1511, 1.442695
    %v1513 = vpow.pop %v1512
    %v1514 = vadd.f32 %v1513, 1.0
    %v1515 = vrcp.pop %v1514
    %v1516 = vmul.f32 1.0, %v1515
    %v1517 = vxor.u32 %v1508, 2147483648
    %v1518 = vmul.f32 %v1517, 1.442695
    %v1519 = vpow.pop %v1518
    %v1520 = vadd.f32 %v1519, 1.0
    %v1521 = vrcp.pop %v1520
    %v1522 = vmul.f32 1.0, %v1521
    %v1523 = vtanh.pop %v1509
    %v1524 = vxor.u32 %v1510, 2147483648
    %v1525 = vmul.f32 %v1524, 1.442695
    %v1526 = vpow.pop %v1525
    %v1527 = vadd.f32 %v1526, 1.0
    %v1528 = vrcp.pop %v1527
    %v1529 = vmul.f32 1.0, %v1528
    %v1530 = vmul.f32 %v1522, %v1050
    %v1531 = vmul.f32 %v1516, %v1523
    %v1532 = vadd.f32 %v1530, %v1531
    %v1533 = vtanh.pop %v1532
    %v1534 = vmul.f32 %v1529, %v1533
    %1535 = vmatprep.subr.mxu0 %v136
    %1536 = vmatpush1.msra.mxu0 %v135
    %1537 = vmatprep.subr.mxu0 %v132
    %1538 = vmatpush1.msra.mxu0 %v131
    %1539 = vmatprep.subr.mxu0 %v128
    %1540 = vmatpush1.msra.mxu0 %v127
    %1541 = vmatprep.subr.mxu0 %v124
    %1542 = vmatpush1.msra.mxu0 %v123
    %1543 = vmatprep.subr.mxu0 %v120
    %1544 = vmatpush1.msra.mxu0 %v119
    %1545 = vmatprep.subr.mxu0 %v116
    %1546 = vmatpush1.msra.mxu0 %v115
    %1547 = vmatprep.subr.mxu0 %v112
    %1548 = vmatpush1.msra.mxu0 %v111
    %1549 = vmatprep.subr.mxu0 %v108
    %1550 = vmatpush1.msra.mxu0 %v107
    %1551 = vmatprep.subr.mxu0 %v104
    %1552 = vmatpush1.msra.mxu0 %v103
    %1553 = vmatprep.subr.mxu0 %v100
    %1554 = vmatpush1.msra.mxu0 %v99
    %1555 = vmatprep.subr.mxu0 %v96
    %1556 = vmatpush1.msra.mxu0 %v95
    %1557 = vmatprep.subr.mxu0 %v92
    %1558 = vmatpush1.msra.mxu0 %v91
    %1559 = vmatprep.subr.mxu0 %v88
    %1560 = vmatpush1.msra.mxu0 %v87
    %1561 = vmatprep.subr.mxu0 %v84
    %1562 = vmatpush1.msra.mxu0 %v83
    %1563 = vmatprep.subr.mxu0 %v80
    %1564 = vmatpush1.msra.mxu0 %v79
    %1565 = vmatprep.subr.mxu0 %v76
    %1566 = vmatpush1.msra.mxu0 %v75
    %1567 = vmatprep.subr.mxu0 0.0
    %1568 = vmatpush2.msra.mxu0 0.0
    %1569 = vmatprep.subr.mxu0 0.0
    %1570 = vmatpush2.msra.mxu0 0.0
    %1571 = vmatprep.subr.mxu0 0.0
    %1572 = vmatpush2.msra.mxu0 0.0
    %1573 = vmatprep.subr.mxu0 0.0
    %1574 = vmatpush2.msra.mxu0 0.0
    %1575 = vmatprep.subr.mxu0 0.0
    %1576 = vmatpush2.msra.mxu0 0.0
    %1577 = vmatprep.subr.mxu0 0.0
    %1578 = vmatpush2.msra.mxu0 0.0
    %1579 = vmatprep.subr.mxu0 0.0
    %1580 = vmatpush2.msra.mxu0 0.0
    %1581 = vmatprep.subr.mxu0 0.0
    %1582 = vmatpush2.msra.mxu0 0.0
    %1583 = vmatprep.subr.mxu0 0.0
    %1584 = vmatpush2.msra.mxu0 0.0
    %1585 = vmatprep.subr.mxu0 0.0
    %1586 = vmatpush2.msra.mxu0 0.0
    %1587 = vmatprep.subr.mxu0 0.0
    %1588 = vmatpush2.msra.mxu0 0.0
    %1589 = vmatprep.subr.mxu0 0.0
    %1590 = vmatpush2.msra.mxu0 0.0
    %1591 = vmatprep.subr.mxu0 0.0
    %1592 = vmatpush2.msra.mxu0 0.0
    %1593 = vmatprep.subr.mxu0 0.0
    %1594 = vmatpush2.msra.mxu0 0.0
    %1595 = vmatprep.subr.mxu0 0.0
    %1596 = vmatpush2.msra.mxu0 0.0
    %1597 = vmatprep.subr.mxu0 0.0
    %1598 = vmatpush2.msra.mxu0 0.0
    %1599 = vmatprep.mubr.f32.mxu0 0.0
    %1600 = vmatmul.mubr.f32.gmra.mxu0 %v1222
    %v1601 = vpop.f32.mrf.mxu0
    %v1602 = vadd.f32 0.0, %v1601
    %v1603 = vpop.f32.mrf.mxu0
    %v1604 = vadd.f32 0.0, %v1603
    %1605 = vdwg.mxu0
    %1606 = vmatprep.subr.mxu0 %v138
    %1607 = vmatpush1.msra.mxu0 %v137
    %1608 = vmatprep.subr.mxu0 %v134
    %1609 = vmatpush1.msra.mxu0 %v133
    %1610 = vmatprep.subr.mxu0 %v130
    %1611 = vmatpush1.msra.mxu0 %v129
    %1612 = vmatprep.subr.mxu0 %v126
    %1613 = vmatpush1.msra.mxu0 %v125
    %1614 = vmatprep.subr.mxu0 %v122
    %1615 = vmatpush1.msra.mxu0 %v121
    %1616 = vmatprep.subr.mxu0 %v118
    %1617 = vmatpush1.msra.mxu0 %v117
    %1618 = vmatprep.subr.mxu0 %v114
    %1619 = vmatpush1.msra.mxu0 %v113
    %1620 = vmatprep.subr.mxu0 %v110
    %1621 = vmatpush1.msra.mxu0 %v109
    %1622 = vmatprep.subr.mxu0 %v106
    %1623 = vmatpush1.msra.mxu0 %v105
    %1624 = vmatprep.subr.mxu0 %v102
    %1625 = vmatpush1.msra.mxu0 %v101
    %1626 = vmatprep.subr.mxu0 %v98
    %1627 = vmatpush1.msra.mxu0 %v97
    %1628 = vmatprep.subr.mxu0 %v94
    %1629 = vmatpush1.msra.mxu0 %v93
    %1630 = vmatprep.subr.mxu0 %v90
    %1631 = vmatpush1.msra.mxu0 %v89
    %1632 = vmatprep.subr.mxu0 %v86
    %1633 = vmatpush1.msra.mxu0 %v85
    %1634 = vmatprep.subr.mxu0 %v82
    %1635 = vmatpush1.msra.mxu0 %v81
    %1636 = vmatprep.subr.mxu0 %v78
    %1637 = vmatpush1.msra.mxu0 %v77
    %1638 = vmatprep.subr.mxu0 0.0
    %1639 = vmatpush2.msra.mxu0 0.0
    %1640 = vmatprep.subr.mxu0 0.0
    %1641 = vmatpush2.msra.mxu0 0.0
    %1642 = vmatprep.subr.mxu0 0.0
    %1643 = vmatpush2.msra.mxu0 0.0
    %1644 = vmatprep.subr.mxu0 0.0
    %1645 = vmatpush2.msra.mxu0 0.0
    %1646 = vmatprep.subr.mxu0 0.0
    %1647 = vmatpush2.msra.mxu0 0.0
    %1648 = vmatprep.subr.mxu0 0.0
    %1649 = vmatpush2.msra.mxu0 0.0
    %1650 = vmatprep.subr.mxu0 0.0
    %1651 = vmatpush2.msra.mxu0 0.0
    %1652 = vmatprep.subr.mxu0 0.0
    %1653 = vmatpush2.msra.mxu0 0.0
    %1654 = vmatprep.subr.mxu0 0.0
    %1655 = vmatpush2.msra.mxu0 0.0
    %1656 = vmatprep.subr.mxu0 0.0
    %1657 = vmatpush2.msra.mxu0 0.0
    %1658 = vmatprep.subr.mxu0 0.0
    %1659 = vmatpush2.msra.mxu0 0.0
    %1660 = vmatprep.subr.mxu0 0.0
    %1661 = vmatpush2.msra.mxu0 0.0
    %1662 = vmatprep.subr.mxu0 0.0
    %1663 = vmatpush2.msra.mxu0 0.0
    %1664 = vmatprep.subr.mxu0 0.0
    %1665 = vmatpush2.msra.mxu0 0.0
    %1666 = vmatprep.subr.mxu0 0.0
    %1667 = vmatpush2.msra.mxu0 0.0
    %1668 = vmatprep.subr.mxu0 0.0
    %1669 = vmatpush2.msra.mxu0 0.0
    %1670 = vmatprep.mubr.f32.mxu0 0.0
    %1671 = vmatmul.mubr.f32.gmra.mxu0 %v1222
    %v1672 = vpop.f32.mrf.mxu0
    %v1673 = vadd.f32 0.0, %v1672
    %v1674 = vpop.f32.mrf.mxu0
    %v1675 = vadd.f32 0.0, %v1674
    %1676 = vdwg.mxu0
    %v1677 = vadd.f32 %v414, %v1602
    %v1678 = vadd.f32 %v416, %v1604
    %v1679 = vadd.f32 %v521, %v1673
    %v1680 = vadd.f32 %v523, %v1675
    %v1681 = vxor.u32 %v1677, 2147483648
    %v1682 = vmul.f32 %v1681, 1.442695
    %v1683 = vpow.pop %v1682
    %v1684 = vadd.f32 %v1683, 1.0
    %v1685 = vrcp.pop %v1684
    %v1686 = vmul.f32 1.0, %v1685
    %v1687 = vxor.u32 %v1678, 2147483648
    %v1688 = vmul.f32 %v1687, 1.442695
    %v1689 = vpow.pop %v1688
    %v1690 = vadd.f32 %v1689, 1.0
    %v1691 = vrcp.pop %v1690
    %v1692 = vmul.f32 1.0, %v1691
    %v1693 = vtanh.pop %v1679
    %v1694 = vxor.u32 %v1680, 2147483648
    %v1695 = vmul.f32 %v1694, 1.442695
    %v1696 = vpow.pop %v1695
    %v1697 = vadd.f32 %v1696, 1.0
    %v1698 = vrcp.pop %v1697
    %v1699 = vmul.f32 1.0, %v1698
    %v1700 = vmul.f32 %v1692, %v1220
    %v1701 = vmul.f32 %v1686, %v1693
    %v1702 = vadd.f32 %v1700, %v1701
    %v1703 = vtanh.pop %v1702
    %v1704 = vmul.f32 %v1699, %v1703
    %1705 = vmatprep.subr.mxu0 %v264
    %1706 = vmatpush1.msra.mxu0 %v263
    %1707 = vmatprep.subr.mxu0 %v260
    %1708 = vmatpush1.msra.mxu0 %v259
    %1709 = vmatprep.subr.mxu0 %v256
    %1710 = vmatpush1.msra.mxu0 %v255
    %1711 = vmatprep.subr.mxu0 %v252
    %1712 = vmatpush1.msra.mxu0 %v251
    %1713 = vmatprep.subr.mxu0 %v248
    %1714 = vmatpush1.msra.mxu0 %v247
    %1715 = vmatprep.subr.mxu0 %v244
    %1716 = vmatpush1.msra.mxu0 %v243
    %1717 = vmatprep.subr.mxu0 %v240
    %1718 = vmatpush1.msra.mxu0 %v239
    %1719 = vmatprep.subr.mxu0 %v236
    %1720 = vmatpush1.msra.mxu0 %v235
    %1721 = vmatprep.subr.mxu0 %v232
    %1722 = vmatpush1.msra.mxu0 %v231
    %1723 = vmatprep.subr.mxu0 %v228
    %1724 = vmatpush1.msra.mxu0 %v227
    %1725 = vmatprep.subr.mxu0 %v224
    %1726 = vmatpush1.msra.mxu0 %v223
    %1727 = vmatprep.subr.mxu0 %v220
    %1728 = vmatpush1.msra.mxu0 %v219
    %1729 = vmatprep.subr.mxu0 %v216
    %1730 = vmatpush1.msra.mxu0 %v215
    %1731 = vmatprep.subr.mxu0 %v212
    %1732 = vmatpush1.msra.mxu0 %v211
    %1733 = vmatprep.subr.mxu0 %v208
    %1734 = vmatpush1.msra.mxu0 %v207
    %1735 = vmatprep.subr.mxu0 %v204
    %1736 = vmatpush1.msra.mxu0 %v203
    %1737 = vmatprep.subr.mxu0 0.0
    %1738 = vmatpush2.msra.mxu0 0.0
    %1739 = vmatprep.subr.mxu0 0.0
    %1740 = vmatpush2.msra.mxu0 0.0
    %1741 = vmatprep.subr.mxu0 0.0
    %1742 = vmatpush2.msra.mxu0 0.0
    %1743 = vmatprep.subr.mxu0 0.0
    %1744 = vmatpush2.msra.mxu0 0.0
    %1745 = vmatprep.subr.mxu0 0.0
    %1746 = vmatpush2.msra.mxu0 0.0
    %1747 = vmatprep.subr.mxu0 0.0
    %1748 = vmatpush2.msra.mxu0 0.0
    %1749 = vmatprep.subr.mxu0 0.0
    %1750 = vmatpush2.msra.mxu0 0.0
    %1751 = vmatprep.subr.mxu0 0.0
    %1752 = vmatpush2.msra.mxu0 0.0
    %1753 = vmatprep.subr.mxu0 0.0
    %1754 = vmatpush2.msra.mxu0 0.0
    %1755 = vmatprep.subr.mxu0 0.0
    %1756 = vmatpush2.msra.mxu0 0.0
    %1757 = vmatprep.subr.mxu0 0.0
    %1758 = vmatpush2.msra.mxu0 0.0
    %1759 = vmatprep.subr.mxu0 0.0
    %1760 = vmatpush2.msra.mxu0 0.0
    %1761 = vmatprep.subr.mxu0 0.0
    %1762 = vmatpush2.msra.mxu0 0.0
    %1763 = vmatprep.subr.mxu0 0.0
    %1764 = vmatpush2.msra.mxu0 0.0
    %1765 = vmatprep.subr.mxu0 0.0
    %1766 = vmatpush2.msra.mxu0 0.0
    %1767 = vmatprep.subr.mxu0 0.0
    %1768 = vmatpush2.msra.mxu0 0.0
    %1769 = vmatprep.mubr.f32.mxu0 0.0
    %1770 = vmatmul.mubr.f32.gmra.mxu0 %v1534
    %v1771 = vpop.f32.mrf.mxu0
    %v1772 = vadd.f32 0.0, %v1771
    %v1773 = vpop.f32.mrf.mxu0
    %v1774 = vadd.f32 0.0, %v1773
    %1775 = vdwg.mxu0
    %1776 = vmatprep.subr.mxu0 %v266
    %1777 = vmatpush1.msra.mxu0 %v265
    %1778 = vmatprep.subr.mxu0 %v262
    %1779 = vmatpush1.msra.mxu0 %v261
    %1780 = vmatprep.subr.mxu0 %v258
    %1781 = vmatpush1.msra.mxu0 %v257
    %1782 = vmatprep.subr.mxu0 %v254
    %1783 = vmatpush1.msra.mxu0 %v253
    %1784 = vmatprep.subr.mxu0 %v250
    %1785 = vmatpush1.msra.mxu0 %v249
    %1786 = vmatprep.subr.mxu0 %v246
    %1787 = vmatpush1.msra.mxu0 %v245
    %1788 = vmatprep.subr.mxu0 %v242
    %1789 = vmatpush1.msra.mxu0 %v241
    %1790 = vmatprep.subr.mxu0 %v238
    %1791 = vmatpush1.msra.mxu0 %v237
    %1792 = vmatprep.subr.mxu0 %v234
    %1793 = vmatpush1.msra.mxu0 %v233
    %1794 = vmatprep.subr.mxu0 %v230
    %1795 = vmatpush1.msra.mxu0 %v229
    %1796 = vmatprep.subr.mxu0 %v226
    %1797 = vmatpush1.msra.mxu0 %v225
    %1798 = vmatprep.subr.mxu0 %v222
    %1799 = vmatpush1.msra.mxu0 %v221
    %1800 = vmatprep.subr.mxu0 %v218
    %1801 = vmatpush1.msra.mxu0 %v217
    %1802 = vmatprep.subr.mxu0 %v214
    %1803 = vmatpush1.msra.mxu0 %v213
    %1804 = vmatprep.subr.mxu0 %v210
    %1805 = vmatpush1.msra.mxu0 %v209
    %1806 = vmatprep.subr.mxu0 %v206
    %1807 = vmatpush1.msra.mxu0 %v205
    %1808 = vmatprep.subr.mxu0 0.0
    %1809 = vmatpush2.msra.mxu0 0.0
    %1810 = vmatprep.subr.mxu0 0.0
    %1811 = vmatpush2.msra.mxu0 0.0
    %1812 = vmatprep.subr.mxu0 0.0
    %1813 = vmatpush2.msra.mxu0 0.0
    %1814 = vmatprep.subr.mxu0 0.0
    %1815 = vmatpush2.msra.mxu0 0.0
    %1816 = vmatprep.subr.mxu0 0.0
    %1817 = vmatpush2.msra.mxu0 0.0
    %1818 = vmatprep.subr.mxu0 0.0
    %1819 = vmatpush2.msra.mxu0 0.0
    %1820 = vmatprep.subr.mxu0 0.0
    %1821 = vmatpush2.msra.mxu0 0.0
    %1822 = vmatprep.subr.mxu0 0.0
    %1823 = vmatpush2.msra.mxu0 0.0
    %1824 = vmatprep.subr.mxu0 0.0
    %1825 = vmatpush2.msra.mxu0 0.0
    %1826 = vmatprep.subr.mxu0 0.0
    %1827 = vmatpush2.msra.mxu0 0.0
    %1828 = vmatprep.subr.mxu0 0.0
    %1829 = vmatpush2.msra.mxu0 0.0
    %1830 = vmatprep.subr.mxu0 0.0
    %1831 = vmatpush2.msra.mxu0 0.0
    %1832 = vmatprep.subr.mxu0 0.0
    %1833 = vmatpush2.msra.mxu0 0.0
    %1834 = vmatprep.subr.mxu0 0.0
    %1835 = vmatpush2.msra.mxu0 0.0
    %1836 = vmatprep.subr.mxu0 0.0
    %1837 = vmatpush2.msra.mxu0 0.0
    %1838 = vmatprep.subr.mxu0 0.0
    %1839 = vmatpush2.msra.mxu0 0.0
    %1840 = vmatprep.mubr.f32.mxu0 0.0
    %1841 = vmatmul.mubr.f32.gmra.mxu0 %v1534
    %v1842 = vpop.f32.mrf.mxu0
    %v1843 = vadd.f32 0.0, %v1842
    %v1844 = vpop.f32.mrf.mxu0
    %v1845 = vadd.f32 0.0, %v1844
    %1846 = vdwg.mxu0
    %1847 = vmatprep.subr.mxu0 %v200
    %1848 = vmatpush1.msra.mxu0 %v199
    %1849 = vmatprep.subr.mxu0 %v196
    %1850 = vmatpush1.msra.mxu0 %v195
    %1851 = vmatprep.subr.mxu0 %v192
    %1852 = vmatpush1.msra.mxu0 %v191
    %1853 = vmatprep.subr.mxu0 %v188
    %1854 = vmatpush1.msra.mxu0 %v187
    %1855 = vmatprep.subr.mxu0 %v184
    %1856 = vmatpush1.msra.mxu0 %v183
    %1857 = vmatprep.subr.mxu0 %v180
    %1858 = vmatpush1.msra.mxu0 %v179
    %1859 = vmatprep.subr.mxu0 %v176
    %1860 = vmatpush1.msra.mxu0 %v175
    %1861 = vmatprep.subr.mxu0 %v172
    %1862 = vmatpush1.msra.mxu0 %v171
    %1863 = vmatprep.subr.mxu0 %v168
    %1864 = vmatpush1.msra.mxu0 %v167
    %1865 = vmatprep.subr.mxu0 %v164
    %1866 = vmatpush1.msra.mxu0 %v163
    %1867 = vmatprep.subr.mxu0 %v160
    %1868 = vmatpush1.msra.mxu0 %v159
    %1869 = vmatprep.subr.mxu0 %v156
    %1870 = vmatpush1.msra.mxu0 %v155
    %1871 = vmatprep.subr.mxu0 %v152
    %1872 = vmatpush1.msra.mxu0 %v151
    %1873 = vmatprep.subr.mxu0 %v148
    %1874 = vmatpush1.msra.mxu0 %v147
    %1875 = vmatprep.subr.mxu0 %v144
    %1876 = vmatpush1.msra.mxu0 %v143
    %1877 = vmatprep.subr.mxu0 %v140
    %1878 = vmatpush1.msra.mxu0 %v139
    %1879 = vmatprep.subr.mxu0 0.0
    %1880 = vmatpush2.msra.mxu0 0.0
    %1881 = vmatprep.subr.mxu0 0.0
    %1882 = vmatpush2.msra.mxu0 0.0
    %1883 = vmatprep.subr.mxu0 0.0
    %1884 = vmatpush2.msra.mxu0 0.0
    %1885 = vmatprep.subr.mxu0 0.0
    %1886 = vmatpush2.msra.mxu0 0.0
    %1887 = vmatprep.subr.mxu0 0.0
    %1888 = vmatpush2.msra.mxu0 0.0
    %1889 = vmatprep.subr.mxu0 0.0
    %1890 = vmatpush2.msra.mxu0 0.0
    %1891 = vmatprep.subr.mxu0 0.0
    %1892 = vmatpush2.msra.mxu0 0.0
    %1893 = vmatprep.subr.mxu0 0.0
    %1894 = vmatpush2.msra.mxu0 0.0
    %1895 = vmatprep.subr.mxu0 0.0
    %1896 = vmatpush2.msra.mxu0 0.0
    %1897 = vmatprep.subr.mxu0 0.0
    %1898 = vmatpush2.msra.mxu0 0.0
    %1899 = vmatprep.subr.mxu0 0.0
    %1900 = vmatpush2.msra.mxu0 0.0
    %1901 = vmatprep.subr.mxu0 0.0
    %1902 = vmatpush2.msra.mxu0 0.0
    %1903 = vmatprep.subr.mxu0 0.0
    %1904 = vmatpush2.msra.mxu0 0.0
    %1905 = vmatprep.subr.mxu0 0.0
    %1906 = vmatpush2.msra.mxu0 0.0
    %1907 = vmatprep.subr.mxu0 0.0
    %1908 = vmatpush2.msra.mxu0 0.0
    %1909 = vmatprep.subr.mxu0 0.0
    %1910 = vmatpush2.msra.mxu0 0.0
    %1911 = vmatprep.mubr.f32.mxu0 0.0
    %1912 = vmatmul.mubr.f32.gmra.mxu0 %v1704
    %v1913 = vpop.f32.mrf.mxu0
    %v1914 = vadd.f32 %v1772, %v1913
    %v1915 = vpop.f32.mrf.mxu0
    %v1916 = vadd.f32 %v1774, %v1915
    %1917 = vdwg.mxu0
    %1918 = vmatprep.subr.mxu0 %v202
    %1919 = vmatpush1.msra.mxu0 %v201
    %1920 = vmatprep.subr.mxu0 %v198
    %1921 = vmatpush1.msra.mxu0 %v197
    %1922 = vmatprep.subr.mxu0 %v194
    %1923 = vmatpush1.msra.mxu0 %v193
    %1924 = vmatprep.subr.mxu0 %v190
    %1925 = vmatpush1.msra.mxu0 %v189
    %1926 = vmatprep.subr.mxu0 %v186
    %1927 = vmatpush1.msra.mxu0 %v185
    %1928 = vmatprep.subr.mxu0 %v182
    %1929 = vmatpush1.msra.mxu0 %v181
    %1930 = vmatprep.subr.mxu0 %v178
    %1931 = vmatpush1.msra.mxu0 %v177
    %1932 = vmatprep.subr.mxu0 %v174
    %1933 = vmatpush1.msra.mxu0 %v173
    %1934 = vmatprep.subr.mxu0 %v170
    %1935 = vmatpush1.msra.mxu0 %v169
    %1936 = vmatprep.subr.mxu0 %v166
    %1937 = vmatpush1.msra.mxu0 %v165
    %1938 = vmatprep.subr.mxu0 %v162
    %1939 = vmatpush1.msra.mxu0 %v161
    %1940 = vmatprep.subr.mxu0 %v158
    %1941 = vmatpush1.msra.mxu0 %v157
    %1942 = vmatprep.subr.mxu0 %v154
    %1943 = vmatpush1.msra.mxu0 %v153
    %1944 = vmatprep.subr.mxu0 %v150
    %1945 = vmatpush1.msra.mxu0 %v149
    %1946 = vmatprep.subr.mxu0 %v146
    %1947 = vmatpush1.msra.mxu0 %v145
    %1948 = vmatprep.subr.mxu0 %v142
    %1949 = vmatpush1.msra.mxu0 %v141
    %1950 = vmatprep.subr.mxu0 0.0
    %1951 = vmatpush2.msra.mxu0 0.0
    %1952 = vmatprep.subr.mxu0 0.0
    %1953 = vmatpush2.msra.mxu0 0.0
    %1954 = vmatprep.subr.mxu0 0.0
    %1955 = vmatpush2.msra.mxu0 0.0
    %1956 = vmatprep.subr.mxu0 0.0
    %1957 = vmatpush2.msra.mxu0 0.0
    %1958 = vmatprep.subr.mxu0 0.0
    %1959 = vmatpush2.msra.mxu0 0.0
    %1960 = vmatprep.subr.mxu0 0.0
    %1961 = vmatpush2.msra.mxu0 0.0
    %1962 = vmatprep.subr.mxu0 0.0
    %1963 = vmatpush2.msra.mxu0 0.0
    %1964 = vmatprep.subr.mxu0 0.0
    %1965 = vmatpush2.msra.mxu0 0.0
    %1966 = vmatprep.subr.mxu0 0.0
    %1967 = vmatpush2.msra.mxu0 0.0
    %1968 = vmatprep.subr.mxu0 0.0
    %1969 = vmatpush2.msra.mxu0 0.0
    %1970 = vmatprep.subr.mxu0 0.0
    %1971 = vmatpush2.msra.mxu0 0.0
    %1972 = vmatprep.subr.mxu0 0.0
    %1973 = vmatpush2.msra.mxu0 0.0
    %1974 = vmatprep.subr.mxu0 0.0
    %1975 = vmatpush2.msra.mxu0 0.0
    %1976 = vmatprep.subr.mxu0 0.0
    %1977 = vmatpush2.msra.mxu0 0.0
    %1978 = vmatprep.subr.mxu0 0.0
    %1979 = vmatpush2.msra.mxu0 0.0
    %1980 = vmatprep.subr.mxu0 0.0
    %1981 = vmatpush2.msra.mxu0 0.0
    %1982 = vmatprep.mubr.f32.mxu0 0.0
    %1983 = vmatmul.mubr.f32.gmra.mxu0 %v1704
    %v1984 = vpop.f32.mrf.mxu0
    %v1985 = vadd.f32 %v1843, %v1984
    %v1986 = vpop.f32.mrf.mxu0
    %v1987 = vadd.f32 %v1845, %v1986
    %1988 = vdwg.mxu0
    %v1989 = vadd.f32 %v1914, %v554
    %v1990 = vadd.f32 %v1916, %v558
    %v1991 = vadd.f32 %v1985, %v562
    %v1992 = vadd.f32 %v1987, %v566
    %v1993 = vxor.u32 %v1989, 2147483648
    %v1994 = vmul.f32 %v1993, 1.442695
    %v1995 = vpow.pop %v1994
    %v1996 = vadd.f32 %v1995, 1.0
    %v1997 = vrcp.pop %v1996
    %v1998 = vmul.f32 1.0, %v1997
    %v1999 = vxor.u32 %v1990, 2147483648
    %v2000 = vmul.f32 %v1999, 1.442695
    %v2001 = vpow.pop %v2000
    %v2002 = vadd.f32 %v2001, 1.0
    %v2003 = vrcp.pop %v2002
    %v2004 = vmul.f32 1.0, %v2003
    %v2005 = vtanh.pop %v1991
    %v2006 = vxor.u32 %v1992, 2147483648
    %v2007 = vmul.f32 %v2006, 1.442695
    %v2008 = vpow.pop %v2007
    %v2009 = vadd.f32 %v2008, 1.0
    %v2010 = vrcp.pop %v2009
    %v2011 = vmul.f32 1.0, %v2010
    %v2012 = vmul.f32 %v2004, %v1532
    %v2013 = vmul.f32 %v1998, %v2005
    %v2014 = vadd.f32 %v2012, %v2013
    %v2015 = vtanh.pop %v2014
    %v2016 = vmul.f32 %v2011, %v2015
    %2017 = vmatprep.subr.mxu0 %v136
    %2018 = vmatpush1.msra.mxu0 %v135
    %2019 = vmatprep.subr.mxu0 %v132
    %2020 = vmatpush1.msra.mxu0 %v131
    %2021 = vmatprep.subr.mxu0 %v128
    %2022 = vmatpush1.msra.mxu0 %v127
    %2023 = vmatprep.subr.mxu0 %v124
    %2024 = vmatpush1.msra.mxu0 %v123
    %2025 = vmatprep.subr.mxu0 %v120
    %2026 = vmatpush1.msra.mxu0 %v119
    %2027 = vmatprep.subr.mxu0 %v116
    %2028 = vmatpush1.msra.mxu0 %v115
    %2029 = vmatprep.subr.mxu0 %v112
    %2030 = vmatpush1.msra.mxu0 %v111
    %2031 = vmatprep.subr.mxu0 %v108
    %2032 = vmatpush1.msra.mxu0 %v107
    %2033 = vmatprep.subr.mxu0 %v104
    %2034 = vmatpush1.msra.mxu0 %v103
    %2035 = vmatprep.subr.mxu0 %v100
    %2036 = vmatpush1.msra.mxu0 %v99
    %2037 = vmatprep.subr.mxu0 %v96
    %2038 = vmatpush1.msra.mxu0 %v95
    %2039 = vmatprep.subr.mxu0 %v92
    %2040 = vmatpush1.msra.mxu0 %v91
    %2041 = vmatprep.subr.mxu0 %v88
    %2042 = vmatpush1.msra.mxu0 %v87
    %2043 = vmatprep.subr.mxu0 %v84
    %2044 = vmatpush1.msra.mxu0 %v83
    %2045 = vmatprep.subr.mxu0 %v80
    %2046 = vmatpush1.msra.mxu0 %v79
    %2047 = vmatprep.subr.mxu0 %v76
    %2048 = vmatpush1.msra.mxu0 %v75
    %2049 = vmatprep.subr.mxu0 0.0
    %2050 = vmatpush2.msra.mxu0 0.0
    %2051 = vmatprep.subr.mxu0 0.0
    %2052 = vmatpush2.msra.mxu0 0.0
    %2053 = vmatprep.subr.mxu0 0.0
    %2054 = vmatpush2.msra.mxu0 0.0
    %2055 = vmatprep.subr.mxu0 0.0
    %2056 = vmatpush2.msra.mxu0 0.0
    %2057 = vmatprep.subr.mxu0 0.0
    %2058 = vmatpush2.msra.mxu0 0.0
    %2059 = vmatprep.subr.mxu0 0.0
    %2060 = vmatpush2.msra.mxu0 0.0
    %2061 = vmatprep.subr.mxu0 0.0
    %2062 = vmatpush2.msra.mxu0 0.0
    %2063 = vmatprep.subr.mxu0 0.0
    %2064 = vmatpush2.msra.mxu0 0.0
    %2065 = vmatprep.subr.mxu0 0.0
    %2066 = vmatpush2.msra.mxu0 0.0
    %2067 = vmatprep.subr.mxu0 0.0
    %2068 = vmatpush2.msra.mxu0 0.0
    %2069 = vmatprep.subr.mxu0 0.0
    %2070 = vmatpush2.msra.mxu0 0.0
    %2071 = vmatprep.subr.mxu0 0.0
    %2072 = vmatpush2.msra.mxu0 0.0
    %2073 = vmatprep.subr.mxu0 0.0
    %2074 = vmatpush2.msra.mxu0 0.0
    %2075 = vmatprep.subr.mxu0 0.0
    %2076 = vmatpush2.msra.mxu0 0.0
    %2077 = vmatprep.subr.mxu0 0.0
    %2078 = vmatpush2.msra.mxu0 0.0
    %2079 = vmatprep.subr.mxu0 0.0
    %2080 = vmatpush2.msra.mxu0 0.0
    %2081 = vmatprep.mubr.f32.mxu0 0.0
    %2082 = vmatmul.mubr.f32.gmra.mxu0 %v1704
    %v2083 = vpop.f32.mrf.mxu0
    %v2084 = vadd.f32 0.0, %v2083
    %v2085 = vpop.f32.mrf.mxu0
    %v2086 = vadd.f32 0.0, %v2085
    %2087 = vdwg.mxu0
    %2088 = vmatprep.subr.mxu0 %v138
    %2089 = vmatpush1.msra.mxu0 %v137
    %2090 = vmatprep.subr.mxu0 %v134
    %2091 = vmatpush1.msra.mxu0 %v133
    %2092 = vmatprep.subr.mxu0 %v130
    %2093 = vmatpush1.msra.mxu0 %v129
    %2094 = vmatprep.subr.mxu0 %v126
    %2095 = vmatpush1.msra.mxu0 %v125
    %2096 = vmatprep.subr.mxu0 %v122
    %2097 = vmatpush1.msra.mxu0 %v121
    %2098 = vmatprep.subr.mxu0 %v118
    %2099 = vmatpush1.msra.mxu0 %v117
    %2100 = vmatprep.subr.mxu0 %v114
    %2101 = vmatpush1.msra.mxu0 %v113
    %2102 = vmatprep.subr.mxu0 %v110
    %2103 = vmatpush1.msra.mxu0 %v109
    %2104 = vmatprep.subr.mxu0 %v106
    %2105 = vmatpush1.msra.mxu0 %v105
    %2106 = vmatprep.subr.mxu0 %v102
    %2107 = vmatpush1.msra.mxu0 %v101
    %2108 = vmatprep.subr.mxu0 %v98
    %2109 = vmatpush1.msra.mxu0 %v97
    %2110 = vmatprep.subr.mxu0 %v94
    %2111 = vmatpush1.msra.mxu0 %v93
    %2112 = vmatprep.subr.mxu0 %v90
    %2113 = vmatpush1.msra.mxu0 %v89
    %2114 = vmatprep.subr.mxu0 %v86
    %2115 = vmatpush1.msra.mxu0 %v85
    %2116 = vmatprep.subr.mxu0 %v82
    %2117 = vmatpush1.msra.mxu0 %v81
    %2118 = vmatprep.subr.mxu0 %v78
    %2119 = vmatpush1.msra.mxu0 %v77
    %2120 = vmatprep.subr.mxu0 0.0
    %2121 = vmatpush2.msra.mxu0 0.0
    %2122 = vmatprep.subr.mxu0 0.0
    %2123 = vmatpush2.msra.mxu0 0.0
    %2124 = vmatprep.subr.mxu0 0.0
    %2125 = vmatpush2.msra.mxu0 0.0
    %2126 = vmatprep.subr.mxu0 0.0
    %2127 = vmatpush2.msra.mxu0 0.0
    %2128 = vmatprep.subr.mxu0 0.0
    %2129 = vmatpush2.msra.mxu0 0.0
    %2130 = vmatprep.subr.mxu0 0.0
    %2131 = vmatpush2.msra.mxu0 0.0
    %2132 = vmatprep.subr.mxu0 0.0
    %2133 = vmatpush2.msra.mxu0 0.0
    %2134 = vmatprep.subr.mxu0 0.0
    %2135 = vmatpush2.msra.mxu0 0.0
    %2136 = vmatprep.subr.mxu0 0.0
    %2137 = vmatpush2.msra.mxu0 0.0
    %2138 = vmatprep.subr.mxu0 0.0
    %2139 = vmatpush2.msra.mxu0 0.0
    %2140 = vmatprep.subr.mxu0 0.0
    %2141 = vmatpush2.msra.mxu0 0.0
    %2142 = vmatprep.subr.mxu0 0.0
    %2143 = vmatpush2.msra.mxu0 0.0
    %2144 = vmatprep.subr.mxu0 0.0
    %2145 = vmatpush2.msra.mxu0 0.0
    %2146 = vmatprep.subr.mxu0 0.0
    %2147 = vmatpush2.msra.mxu0 0.0
    %2148 = vmatprep.subr.mxu0 0.0
    %2149 = vmatpush2.msra.mxu0 0.0
    %2150 = vmatprep.subr.mxu0 0.0
    %2151 = vmatpush2.msra.mxu0 0.0
    %2152 = vmatprep.mubr.f32.mxu0 0.0
    %2153 = vmatmul.mubr.f32.gmra.mxu0 %v1704
    %v2154 = vpop.f32.mrf.mxu0
    %v2155 = vadd.f32 0.0, %v2154
    %v2156 = vpop.f32.mrf.mxu0
    %v2157 = vadd.f32 0.0, %v2156
    %2158 = vdwg.mxu0
    %v2159 = vadd.f32 %v420, %v2084
    %v2160 = vadd.f32 %v422, %v2086
    %v2161 = vadd.f32 %v527, %v2155
    %v2162 = vadd.f32 %v529, %v2157
    %v2163 = vxor.u32 %v2159, 2147483648
    %v2164 = vmul.f32 %v2163, 1.442695
    %v2165 = vpow.pop %v2164
    %v2166 = vadd.f32 %v2165, 1.0
    %v2167 = vrcp.pop %v2166
    %v2168 = vmul.f32 1.0, %v2167
    %v2169 = vxor.u32 %v2160, 2147483648
    %v2170 = vmul.f32 %v2169, 1.442695
    %v2171 = vpow.pop %v2170
    %v2172 = vadd.f32 %v2171, 1.0
    %v2173 = vrcp.pop %v2172
    %v2174 = vmul.f32 1.0, %v2173
    %v2175 = vtanh.pop %v2161
    %v2176 = vxor.u32 %v2162, 2147483648
    %v2177 = vmul.f32 %v2176, 1.442695
    %v2178 = vpow.pop %v2177
    %v2179 = vadd.f32 %v2178, 1.0
    %v2180 = vrcp.pop %v2179
    %v2181 = vmul.f32 1.0, %v2180
    %v2182 = vmul.f32 %v2174, %v1702
    %v2183 = vmul.f32 %v2168, %v2175
    %v2184 = vadd.f32 %v2182, %v2183
    %v2185 = vtanh.pop %v2184
    %v2186 = vmul.f32 %v2181, %v2185
    %2187 = vmatprep.subr.mxu0 %v264
    %2188 = vmatpush1.msra.mxu0 %v263
    %2189 = vmatprep.subr.mxu0 %v260
    %2190 = vmatpush1.msra.mxu0 %v259
    %2191 = vmatprep.subr.mxu0 %v256
    %2192 = vmatpush1.msra.mxu0 %v255
    %2193 = vmatprep.subr.mxu0 %v252
    %2194 = vmatpush1.msra.mxu0 %v251
    %2195 = vmatprep.subr.mxu0 %v248
    %2196 = vmatpush1.msra.mxu0 %v247
    %2197 = vmatprep.subr.mxu0 %v244
    %2198 = vmatpush1.msra.mxu0 %v243
    %2199 = vmatprep.subr.mxu0 %v240
    %2200 = vmatpush1.msra.mxu0 %v239
    %2201 = vmatprep.subr.mxu0 %v236
    %2202 = vmatpush1.msra.mxu0 %v235
    %2203 = vmatprep.subr.mxu0 %v232
    %2204 = vmatpush1.msra.mxu0 %v231
    %2205 = vmatprep.subr.mxu0 %v228
    %2206 = vmatpush1.msra.mxu0 %v227
    %2207 = vmatprep.subr.mxu0 %v224
    %2208 = vmatpush1.msra.mxu0 %v223
    %2209 = vmatprep.subr.mxu0 %v220
    %2210 = vmatpush1.msra.mxu0 %v219
    %2211 = vmatprep.subr.mxu0 %v216
    %2212 = vmatpush1.msra.mxu0 %v215
    %2213 = vmatprep.subr.mxu0 %v212
    %2214 = vmatpush1.msra.mxu0 %v211
    %2215 = vmatprep.subr.mxu0 %v208
    %2216 = vmatpush1.msra.mxu0 %v207
    %2217 = vmatprep.subr.mxu0 %v204
    %2218 = vmatpush1.msra.mxu0 %v203
    %2219 = vmatprep.subr.mxu0 0.0
    %2220 = vmatpush2.msra.mxu0 0.0
    %2221 = vmatprep.subr.mxu0 0.0
    %2222 = vmatpush2.msra.mxu0 0.0
    %2223 = vmatprep.subr.mxu0 0.0
    %2224 = vmatpush2.msra.mxu0 0.0
    %2225 = vmatprep.subr.mxu0 0.0
    %2226 = vmatpush2.msra.mxu0 0.0
    %2227 = vmatprep.subr.mxu0 0.0
    %2228 = vmatpush2.msra.mxu0 0.0
    %2229 = vmatprep.subr.mxu0 0.0
    %2230 = vmatpush2.msra.mxu0 0.0
    %2231 = vmatprep.subr.mxu0 0.0
    %2232 = vmatpush2.msra.mxu0 0.0
    %2233 = vmatprep.subr.mxu0 0.0
    %2234 = vmatpush2.msra.mxu0 0.0
    %2235 = vmatprep.subr.mxu0 0.0
    %2236 = vmatpush2.msra.mxu0 0.0
    %2237 = vmatprep.subr.mxu0 0.0
    %2238 = vmatpush2.msra.mxu0 0.0
    %2239 = vmatprep.subr.mxu0 0.0
    %2240 = vmatpush2.msra.mxu0 0.0
    %2241 = vmatprep.subr.mxu0 0.0
    %2242 = vmatpush2.msra.mxu0 0.0
    %2243 = vmatprep.subr.mxu0 0.0
    %2244 = vmatpush2.msra.mxu0 0.0
    %2245 = vmatprep.subr.mxu0 0.0
    %2246 = vmatpush2.msra.mxu0 0.0
    %2247 = vmatprep.subr.mxu0 0.0
    %2248 = vmatpush2.msra.mxu0 0.0
    %2249 = vmatprep.subr.mxu0 0.0
    %2250 = vmatpush2.msra.mxu0 0.0
    %2251 = vmatprep.mubr.f32.mxu0 0.0
    %2252 = vmatmul.mubr.f32.gmra.mxu0 %v2016
    %v2253 = vpop.f32.mrf.mxu0
    %v2254 = vadd.f32 0.0, %v2253
    %v2255 = vpop.f32.mrf.mxu0
    %v2256 = vadd.f32 0.0, %v2255
    %2257 = vdwg.mxu0
    %2258 = vmatprep.subr.mxu0 %v266
    %2259 = vmatpush1.msra.mxu0 %v265
    %2260 = vmatprep.subr.mxu0 %v262
    %2261 = vmatpush1.msra.mxu0 %v261
    %2262 = vmatprep.subr.mxu0 %v258
    %2263 = vmatpush1.msra.mxu0 %v257
    %2264 = vmatprep.subr.mxu0 %v254
    %2265 = vmatpush1.msra.mxu0 %v253
    %2266 = vmatprep.subr.mxu0 %v250
    %2267 = vmatpush1.msra.mxu0 %v249
    %2268 = vmatprep.subr.mxu0 %v246
    %2269 = vmatpush1.msra.mxu0 %v245
    %2270 = vmatprep.subr.mxu0 %v242
    %2271 = vmatpush1.msra.mxu0 %v241
    %2272 = vmatprep.subr.mxu0 %v238
    %2273 = vmatpush1.msra.mxu0 %v237
    %2274 = vmatprep.subr.mxu0 %v234
    %2275 = vmatpush1.msra.mxu0 %v233
    %2276 = vmatprep.subr.mxu0 %v230
    %2277 = vmatpush1.msra.mxu0 %v229
    %2278 = vmatprep.subr.mxu0 %v226
    %2279 = vmatpush1.msra.mxu0 %v225
    %2280 = vmatprep.subr.mxu0 %v222
    %2281 = vmatpush1.msra.mxu0 %v221
    %2282 = vmatprep.subr.mxu0 %v218
    %2283 = vmatpush1.msra.mxu0 %v217
    %2284 = vmatprep.subr.mxu0 %v214
    %2285 = vmatpush1.msra.mxu0 %v213
    %2286 = vmatprep.subr.mxu0 %v210
    %2287 = vmatpush1.msra.mxu0 %v209
    %2288 = vmatprep.subr.mxu0 %v206
    %2289 = vmatpush1.msra.mxu0 %v205
    %2290 = vmatprep.subr.mxu0 0.0
    %2291 = vmatpush2.msra.mxu0 0.0
    %2292 = vmatprep.subr.mxu0 0.0
    %2293 = vmatpush2.msra.mxu0 0.0
    %2294 = vmatprep.subr.mxu0 0.0
    %2295 = vmatpush2.msra.mxu0 0.0
    %2296 = vmatprep.subr.mxu0 0.0
    %2297 = vmatpush2.msra.mxu0 0.0
    %2298 = vmatprep.subr.mxu0 0.0
    %2299 = vmatpush2.msra.mxu0 0.0
    %2300 = vmatprep.subr.mxu0 0.0
    %2301 = vmatpush2.msra.mxu0 0.0
    %2302 = vmatprep.subr.mxu0 0.0
    %2303 = vmatpush2.msra.mxu0 0.0
    %2304 = vmatprep.subr.mxu0 0.0
    %2305 = vmatpush2.msra.mxu0 0.0
    %2306 = vmatprep.subr.mxu0 0.0
    %2307 = vmatpush2.msra.mxu0 0.0
    %2308 = vmatprep.subr.mxu0 0.0
    %2309 = vmatpush2.msra.mxu0 0.0
    %2310 = vmatprep.subr.mxu0 0.0
    %2311 = vmatpush2.msra.mxu0 0.0
    %2312 = vmatprep.subr.mxu0 0.0
    %2313 = vmatpush2.msra.mxu0 0.0
    %2314 = vmatprep.subr.mxu0 0.0
    %2315 = vmatpush2.msra.mxu0 0.0
    %2316 = vmatprep.subr.mxu0 0.0
    %2317 = vmatpush2.msra.mxu0 0.0
    %2318 = vmatprep.subr.mxu0 0.0
    %2319 = vmatpush2.msra.mxu0 0.0
    %2320 = vmatprep.subr.mxu0 0.0
    %2321 = vmatpush2.msra.mxu0 0.0
    %2322 = vmatprep.mubr.f32.mxu0 0.0
    %2323 = vmatmul.mubr.f32.gmra.mxu0 %v2016
    %v2324 = vpop.f32.mrf.mxu0
    %v2325 = vadd.f32 0.0, %v2324
    %v2326 = vpop.f32.mrf.mxu0
    %v2327 = vadd.f32 0.0, %v2326
    %2328 = vdwg.mxu0
    %2329 = vmatprep.subr.mxu0 %v200
    %2330 = vmatpush1.msra.mxu0 %v199
    %2331 = vmatprep.subr.mxu0 %v196
    %2332 = vmatpush1.msra.mxu0 %v195
    %2333 = vmatprep.subr.mxu0 %v192
    %2334 = vmatpush1.msra.mxu0 %v191
    %2335 = vmatprep.subr.mxu0 %v188
    %2336 = vmatpush1.msra.mxu0 %v187
    %2337 = vmatprep.subr.mxu0 %v184
    %2338 = vmatpush1.msra.mxu0 %v183
    %2339 = vmatprep.subr.mxu0 %v180
    %2340 = vmatpush1.msra.mxu0 %v179
    %2341 = vmatprep.subr.mxu0 %v176
    %2342 = vmatpush1.msra.mxu0 %v175
    %2343 = vmatprep.subr.mxu0 %v172
    %2344 = vmatpush1.msra.mxu0 %v171
    %2345 = vmatprep.subr.mxu0 %v168
    %2346 = vmatpush1.msra.mxu0 %v167
    %2347 = vmatprep.subr.mxu0 %v164
    %2348 = vmatpush1.msra.mxu0 %v163
    %2349 = vmatprep.subr.mxu0 %v160
    %2350 = vmatpush1.msra.mxu0 %v159
    %2351 = vmatprep.subr.mxu0 %v156
    %2352 = vmatpush1.msra.mxu0 %v155
    %2353 = vmatprep.subr.mxu0 %v152
    %2354 = vmatpush1.msra.mxu0 %v151
    %2355 = vmatprep.subr.mxu0 %v148
    %2356 = vmatpush1.msra.mxu0 %v147
    %2357 = vmatprep.subr.mxu0 %v144
    %2358 = vmatpush1.msra.mxu0 %v143
    %2359 = vmatprep.subr.mxu0 %v140
    %2360 = vmatpush1.msra.mxu0 %v139
    %2361 = vmatprep.subr.mxu0 0.0
    %2362 = vmatpush2.msra.mxu0 0.0
    %2363 = vmatprep.subr.mxu0 0.0
    %2364 = vmatpush2.msra.mxu0 0.0
    %2365 = vmatprep.subr.mxu0 0.0
    %2366 = vmatpush2.msra.mxu0 0.0
    %2367 = vmatprep.subr.mxu0 0.0
    %2368 = vmatpush2.msra.mxu0 0.0
    %2369 = vmatprep.subr.mxu0 0.0
    %2370 = vmatpush2.msra.mxu0 0.0
    %2371 = vmatprep.subr.mxu0 0.0
    %2372 = vmatpush2.msra.mxu0 0.0
    %2373 = vmatprep.subr.mxu0 0.0
    %2374 = vmatpush2.msra.mxu0 0.0
    %2375 = vmatprep.subr.mxu0 0.0
    %2376 = vmatpush2.msra.mxu0 0.0
    %2377 = vmatprep.subr.mxu0 0.0
    %2378 = vmatpush2.msra.mxu0 0.0
    %2379 = vmatprep.subr.mxu0 0.0
    %2380 = vmatpush2.msra.mxu0 0.0
    %2381 = vmatprep.subr.mxu0 0.0
    %2382 = vmatpush2.msra.mxu0 0.0
    %2383 = vmatprep.subr.mxu0 0.0
    %2384 = vmatpush2.msra.mxu0 0.0
    %2385 = vmatprep.subr.mxu0 0.0
    %2386 = vmatpush2.msra.mxu0 0.0
    %2387 = vmatprep.subr.mxu0 0.0
    %2388 = vmatpush2.msra.mxu0 0.0
    %2389 = vmatprep.subr.mxu0 0.0
    %2390 = vmatpush2.msra.mxu0 0.0
    %2391 = vmatprep.subr.mxu0 0.0
    %2392 = vmatpush2.msra.mxu0 0.0
    %2393 = vmatprep.mubr.f32.mxu0 0.0
    %2394 = vmatmul.mubr.f32.gmra.mxu0 %v2186
    %v2395 = vpop.f32.mrf.mxu0
    %v2396 = vadd.f32 %v2254, %v2395
    %v2397 = vpop.f32.mrf.mxu0
    %v2398 = vadd.f32 %v2256, %v2397
    %2399 = vdwg.mxu0
    %2400 = vmatprep.subr.mxu0 %v202
    %2401 = vmatpush1.msra.mxu0 %v201
    %2402 = vmatprep.subr.mxu0 %v198
    %2403 = vmatpush1.msra.mxu0 %v197
    %2404 = vmatprep.subr.mxu0 %v194
    %2405 = vmatpush1.msra.mxu0 %v193
    %2406 = vmatprep.subr.mxu0 %v190
    %2407 = vmatpush1.msra.mxu0 %v189
    %2408 = vmatprep.subr.mxu0 %v186
    %2409 = vmatpush1.msra.mxu0 %v185
    %2410 = vmatprep.subr.mxu0 %v182
    %2411 = vmatpush1.msra.mxu0 %v181
    %2412 = vmatprep.subr.mxu0 %v178
    %2413 = vmatpush1.msra.mxu0 %v177
    %2414 = vmatprep.subr.mxu0 %v174
    %2415 = vmatpush1.msra.mxu0 %v173
    %2416 = vmatprep.subr.mxu0 %v170
    %2417 = vmatpush1.msra.mxu0 %v169
    %2418 = vmatprep.subr.mxu0 %v166
    %2419 = vmatpush1.msra.mxu0 %v165
    %2420 = vmatprep.subr.mxu0 %v162
    %2421 = vmatpush1.msra.mxu0 %v161
    %2422 = vmatprep.subr.mxu0 %v158
    %2423 = vmatpush1.msra.mxu0 %v157
    %2424 = vmatprep.subr.mxu0 %v154
    %2425 = vmatpush1.msra.mxu0 %v153
    %2426 = vmatprep.subr.mxu0 %v150
    %2427 = vmatpush1.msra.mxu0 %v149
    %2428 = vmatprep.subr.mxu0 %v146
    %2429 = vmatpush1.msra.mxu0 %v145
    %2430 = vmatprep.subr.mxu0 %v142
    %2431 = vmatpush1.msra.mxu0 %v141
    %2432 = vmatprep.subr.mxu0 0.0
    %2433 = vmatpush2.msra.mxu0 0.0
    %2434 = vmatprep.subr.mxu0 0.0
    %2435 = vmatpush2.msra.mxu0 0.0
    %2436 = vmatprep.subr.mxu0 0.0
    %2437 = vmatpush2.msra.mxu0 0.0
    %2438 = vmatprep.subr.mxu0 0.0
    %2439 = vmatpush2.msra.mxu0 0.0
    %2440 = vmatprep.subr.mxu0 0.0
    %2441 = vmatpush2.msra.mxu0 0.0
    %2442 = vmatprep.subr.mxu0 0.0
    %2443 = vmatpush2.msra.mxu0 0.0
    %2444 = vmatprep.subr.mxu0 0.0
    %2445 = vmatpush2.msra.mxu0 0.0
    %2446 = vmatprep.subr.mxu0 0.0
    %2447 = vmatpush2.msra.mxu0 0.0
    %2448 = vmatprep.subr.mxu0 0.0
    %2449 = vmatpush2.msra.mxu0 0.0
    %2450 = vmatprep.subr.mxu0 0.0
    %2451 = vmatpush2.msra.mxu0 0.0
    %2452 = vmatprep.subr.mxu0 0.0
    %2453 = vmatpush2.msra.mxu0 0.0
    %2454 = vmatprep.subr.mxu0 0.0
    %2455 = vmatpush2.msra.mxu0 0.0
    %2456 = vmatprep.subr.mxu0 0.0
    %2457 = vmatpush2.msra.mxu0 0.0
    %2458 = vmatprep.subr.mxu0 0.0
    %2459 = vmatpush2.msra.mxu0 0.0
    %2460 = vmatprep.subr.mxu0 0.0
    %2461 = vmatpush2.msra.mxu0 0.0
    %2462 = vmatprep.subr.mxu0 0.0
    %2463 = vmatpush2.msra.mxu0 0.0
    %2464 = vmatprep.mubr.f32.mxu0 0.0
    %2465 = vmatmul.mubr.f32.gmra.mxu0 %v2186
    %v2466 = vpop.f32.mrf.mxu0
    %v2467 = vadd.f32 %v2325, %v2466
    %v2468 = vpop.f32.mrf.mxu0
    %v2469 = vadd.f32 %v2327, %v2468
    %2470 = vdwg.mxu0
    %v2471 = vadd.f32 %v2396, %v554
    %v2472 = vadd.f32 %v2398, %v558
    %v2473 = vadd.f32 %v2467, %v562
    %v2474 = vadd.f32 %v2469, %v566
    %v2475 = vxor.u32 %v2471, 2147483648
    %v2476 = vmul.f32 %v2475, 1.442695
    %v2477 = vpow.pop %v2476
    %v2478 = vadd.f32 %v2477, 1.0
    %v2479 = vrcp.pop %v2478
    %v2480 = vmul.f32 1.0, %v2479
    %v2481 = vxor.u32 %v2472, 2147483648
    %v2482 = vmul.f32 %v2481, 1.442695
    %v2483 = vpow.pop %v2482
    %v2484 = vadd.f32 %v2483, 1.0
    %v2485 = vrcp.pop %v2484
    %v2486 = vmul.f32 1.0, %v2485
    %v2487 = vtanh.pop %v2473
    %v2488 = vxor.u32 %v2474, 2147483648
    %v2489 = vmul.f32 %v2488, 1.442695
    %v2490 = vpow.pop %v2489
    %v2491 = vadd.f32 %v2490, 1.0
    %v2492 = vrcp.pop %v2491
    %v2493 = vmul.f32 1.0, %v2492
    %v2494 = vmul.f32 %v2486, %v2014
    %v2495 = vmul.f32 %v2480, %v2487
    %v2496 = vadd.f32 %v2494, %v2495
    %v2497 = vtanh.pop %v2496
    %v2498 = vmul.f32 %v2493, %v2497
    %2499 = vmatprep.subr.mxu0 %v136
    %2500 = vmatpush1.msra.mxu0 %v135
    %2501 = vmatprep.subr.mxu0 %v132
    %2502 = vmatpush1.msra.mxu0 %v131
    %2503 = vmatprep.subr.mxu0 %v128
    %2504 = vmatpush1.msra.mxu0 %v127
    %2505 = vmatprep.subr.mxu0 %v124
    %2506 = vmatpush1.msra.mxu0 %v123
    %2507 = vmatprep.subr.mxu0 %v120
    %2508 = vmatpush1.msra.mxu0 %v119
    %2509 = vmatprep.subr.mxu0 %v116
    %2510 = vmatpush1.msra.mxu0 %v115
    %2511 = vmatprep.subr.mxu0 %v112
    %2512 = vmatpush1.msra.mxu0 %v111
    %2513 = vmatprep.subr.mxu0 %v108
    %2514 = vmatpush1.msra.mxu0 %v107
    %2515 = vmatprep.subr.mxu0 %v104
    %2516 = vmatpush1.msra.mxu0 %v103
    %2517 = vmatprep.subr.mxu0 %v100
    %2518 = vmatpush1.msra.mxu0 %v99
    %2519 = vmatprep.subr.mxu0 %v96
    %2520 = vmatpush1.msra.mxu0 %v95
    %2521 = vmatprep.subr.mxu0 %v92
    %2522 = vmatpush1.msra.mxu0 %v91
    %2523 = vmatprep.subr.mxu0 %v88
    %2524 = vmatpush1.msra.mxu0 %v87
    %2525 = vmatprep.subr.mxu0 %v84
    %2526 = vmatpush1.msra.mxu0 %v83
    %2527 = vmatprep.subr.mxu0 %v80
    %2528 = vmatpush1.msra.mxu0 %v79
    %2529 = vmatprep.subr.mxu0 %v76
    %2530 = vmatpush1.msra.mxu0 %v75
    %2531 = vmatprep.subr.mxu0 0.0
    %2532 = vmatpush2.msra.mxu0 0.0
    %2533 = vmatprep.subr.mxu0 0.0
    %2534 = vmatpush2.msra.mxu0 0.0
    %2535 = vmatprep.subr.mxu0 0.0
    %2536 = vmatpush2.msra.mxu0 0.0
    %2537 = vmatprep.subr.mxu0 0.0
    %2538 = vmatpush2.msra.mxu0 0.0
    %2539 = vmatprep.subr.mxu0 0.0
    %2540 = vmatpush2.msra.mxu0 0.0
    %2541 = vmatprep.subr.mxu0 0.0
    %2542 = vmatpush2.msra.mxu0 0.0
    %2543 = vmatprep.subr.mxu0 0.0
    %2544 = vmatpush2.msra.mxu0 0.0
    %2545 = vmatprep.subr.mxu0 0.0
    %2546 = vmatpush2.msra.mxu0 0.0
    %2547 = vmatprep.subr.mxu0 0.0
    %2548 = vmatpush2.msra.mxu0 0.0
    %2549 = vmatprep.subr.mxu0 0.0
    %2550 = vmatpush2.msra.mxu0 0.0
    %2551 = vmatprep.subr.mxu0 0.0
    %2552 = vmatpush2.msra.mxu0 0.0
    %2553 = vmatprep.subr.mxu0 0.0
    %2554 = vmatpush2.msra.mxu0 0.0
    %2555 = vmatprep.subr.mxu0 0.0
    %2556 = vmatpush2.msra.mxu0 0.0
    %2557 = vmatprep.subr.mxu0 0.0
    %2558 = vmatpush2.msra.mxu0 0.0
    %2559 = vmatprep.subr.mxu0 0.0
    %2560 = vmatpush2.msra.mxu0 0.0
    %2561 = vmatprep.subr.mxu0 0.0
    %2562 = vmatpush2.msra.mxu0 0.0
    %2563 = vmatprep.mubr.f32.mxu0 0.0
    %2564 = vmatmul.mubr.f32.gmra.mxu0 %v2186
    %v2565 = vpop.f32.mrf.mxu0
    %v2566 = vadd.f32 0.0, %v2565
    %v2567 = vpop.f32.mrf.mxu0
    %v2568 = vadd.f32 0.0, %v2567
    %2569 = vdwg.mxu0
    %2570 = vmatprep.subr.mxu0 %v138
    %2571 = vmatpush1.msra.mxu0 %v137
    %2572 = vmatprep.subr.mxu0 %v134
    %2573 = vmatpush1.msra.mxu0 %v133
    %2574 = vmatprep.subr.mxu0 %v130
    %2575 = vmatpush1.msra.mxu0 %v129
    %2576 = vmatprep.subr.mxu0 %v126
    %2577 = vmatpush1.msra.mxu0 %v125
    %2578 = vmatprep.subr.mxu0 %v122
    %2579 = vmatpush1.msra.mxu0 %v121
    %2580 = vmatprep.subr.mxu0 %v118
    %2581 = vmatpush1.msra.mxu0 %v117
    %2582 = vmatprep.subr.mxu0 %v114
    %2583 = vmatpush1.msra.mxu0 %v113
    %2584 = vmatprep.subr.mxu0 %v110
    %2585 = vmatpush1.msra.mxu0 %v109
    %2586 = vmatprep.subr.mxu0 %v106
    %2587 = vmatpush1.msra.mxu0 %v105
    %2588 = vmatprep.subr.mxu0 %v102
    %2589 = vmatpush1.msra.mxu0 %v101
    %2590 = vmatprep.subr.mxu0 %v98
    %2591 = vmatpush1.msra.mxu0 %v97
    %2592 = vmatprep.subr.mxu0 %v94
    %2593 = vmatpush1.msra.mxu0 %v93
    %2594 = vmatprep.subr.mxu0 %v90
    %2595 = vmatpush1.msra.mxu0 %v89
    %2596 = vmatprep.subr.mxu0 %v86
    %2597 = vmatpush1.msra.mxu0 %v85
    %2598 = vmatprep.subr.mxu0 %v82
    %2599 = vmatpush1.msra.mxu0 %v81
    %2600 = vmatprep.subr.mxu0 %v78
    %2601 = vmatpush1.msra.mxu0 %v77
    %2602 = vmatprep.subr.mxu0 0.0
    %2603 = vmatpush2.msra.mxu0 0.0
    %2604 = vmatprep.subr.mxu0 0.0
    %2605 = vmatpush2.msra.mxu0 0.0
    %2606 = vmatprep.subr.mxu0 0.0
    %2607 = vmatpush2.msra.mxu0 0.0
    %2608 = vmatprep.subr.mxu0 0.0
    %2609 = vmatpush2.msra.mxu0 0.0
    %2610 = vmatprep.subr.mxu0 0.0
    %2611 = vmatpush2.msra.mxu0 0.0
    %2612 = vmatprep.subr.mxu0 0.0
    %2613 = vmatpush2.msra.mxu0 0.0
    %2614 = vmatprep.subr.mxu0 0.0
    %2615 = vmatpush2.msra.mxu0 0.0
    %2616 = vmatprep.subr.mxu0 0.0
    %2617 = vmatpush2.msra.mxu0 0.0
    %2618 = vmatprep.subr.mxu0 0.0
    %2619 = vmatpush2.msra.mxu0 0.0
    %2620 = vmatprep.subr.mxu0 0.0
    %2621 = vmatpush2.msra.mxu0 0.0
    %2622 = vmatprep.subr.mxu0 0.0
    %2623 = vmatpush2.msra.mxu0 0.0
    %2624 = vmatprep.subr.mxu0 0.0
    %2625 = vmatpush2.msra.mxu0 0.0
    %2626 = vmatprep.subr.mxu0 0.0
    %2627 = vmatpush2.msra.mxu0 0.0
    %2628 = vmatprep.subr.mxu0 0.0
    %2629 = vmatpush2.msra.mxu0 0.0
    %2630 = vmatprep.subr.mxu0 0.0
    %2631 = vmatpush2.msra.mxu0 0.0
    %2632 = vmatprep.subr.mxu0 0.0
    %2633 = vmatpush2.msra.mxu0 0.0
    %2634 = vmatprep.mubr.f32.mxu0 0.0
    %2635 = vmatmul.mubr.f32.gmra.mxu0 %v2186
    %v2636 = vpop.f32.mrf.mxu0
    %v2637 = vadd.f32 0.0, %v2636
    %v2638 = vpop.f32.mrf.mxu0
    %v2639 = vadd.f32 0.0, %v2638
    %2640 = vdwg.mxu0
    %v2641 = vadd.f32 %v426, %v2566
    %v2642 = vadd.f32 %v428, %v2568
    %v2643 = vadd.f32 %v533, %v2637
    %v2644 = vadd.f32 %v535, %v2639
    %v2645 = vxor.u32 %v2641, 2147483648
    %v2646 = vmul.f32 %v2645, 1.442695
    %v2647 = vpow.pop %v2646
    %v2648 = vadd.f32 %v2647, 1.0
    %v2649 = vrcp.pop %v2648
    %v2650 = vmul.f32 1.0, %v2649
    %v2651 = vxor.u32 %v2642, 2147483648
    %v2652 = vmul.f32 %v2651, 1.442695
    %v2653 = vpow.pop %v2652
    %v2654 = vadd.f32 %v2653, 1.0
    %v2655 = vrcp.pop %v2654
    %v2656 = vmul.f32 1.0, %v2655
    %v2657 = vtanh.pop %v2643
    %v2658 = vxor.u32 %v2644, 2147483648
    %v2659 = vmul.f32 %v2658, 1.442695
    %v2660 = vpow.pop %v2659
    %v2661 = vadd.f32 %v2660, 1.0
    %v2662 = vrcp.pop %v2661
    %v2663 = vmul.f32 1.0, %v2662
    %v2664 = vmul.f32 %v2656, %v2184
    %v2665 = vmul.f32 %v2650, %v2657
    %v2666 = vadd.f32 %v2664, %v2665
    %v2667 = vtanh.pop %v2666
    %v2668 = vmul.f32 %v2663, %v2667
    %2669 = vmatprep.subr.mxu0 %v264
    %2670 = vmatpush1.msra.mxu0 %v263
    %2671 = vmatprep.subr.mxu0 %v260
    %2672 = vmatpush1.msra.mxu0 %v259
    %2673 = vmatprep.subr.mxu0 %v256
    %2674 = vmatpush1.msra.mxu0 %v255
    %2675 = vmatprep.subr.mxu0 %v252
    %2676 = vmatpush1.msra.mxu0 %v251
    %2677 = vmatprep.subr.mxu0 %v248
    %2678 = vmatpush1.msra.mxu0 %v247
    %2679 = vmatprep.subr.mxu0 %v244
    %2680 = vmatpush1.msra.mxu0 %v243
    %2681 = vmatprep.subr.mxu0 %v240
    %2682 = vmatpush1.msra.mxu0 %v239
    %2683 = vmatprep.subr.mxu0 %v236
    %2684 = vmatpush1.msra.mxu0 %v235
    %2685 = vmatprep.subr.mxu0 %v232
    %2686 = vmatpush1.msra.mxu0 %v231
    %2687 = vmatprep.subr.mxu0 %v228
    %2688 = vmatpush1.msra.mxu0 %v227
    %2689 = vmatprep.subr.mxu0 %v224
    %2690 = vmatpush1.msra.mxu0 %v223
    %2691 = vmatprep.subr.mxu0 %v220
    %2692 = vmatpush1.msra.mxu0 %v219
    %2693 = vmatprep.subr.mxu0 %v216
    %2694 = vmatpush1.msra.mxu0 %v215
    %2695 = vmatprep.subr.mxu0 %v212
    %2696 = vmatpush1.msra.mxu0 %v211
    %2697 = vmatprep.subr.mxu0 %v208
    %2698 = vmatpush1.msra.mxu0 %v207
    %2699 = vmatprep.subr.mxu0 %v204
    %2700 = vmatpush1.msra.mxu0 %v203
    %2701 = vmatprep.subr.mxu0 0.0
    %2702 = vmatpush2.msra.mxu0 0.0
    %2703 = vmatprep.subr.mxu0 0.0
    %2704 = vmatpush2.msra.mxu0 0.0
    %2705 = vmatprep.subr.mxu0 0.0
    %2706 = vmatpush2.msra.mxu0 0.0
    %2707 = vmatprep.subr.mxu0 0.0
    %2708 = vmatpush2.msra.mxu0 0.0
    %2709 = vmatprep.subr.mxu0 0.0
    %2710 = vmatpush2.msra.mxu0 0.0
    %2711 = vmatprep.subr.mxu0 0.0
    %2712 = vmatpush2.msra.mxu0 0.0
    %2713 = vmatprep.subr.mxu0 0.0
    %2714 = vmatpush2.msra.mxu0 0.0
    %2715 = vmatprep.subr.mxu0 0.0
    %2716 = vmatpush2.msra.mxu0 0.0
    %2717 = vmatprep.subr.mxu0 0.0
    %2718 = vmatpush2.msra.mxu0 0.0
    %2719 = vmatprep.subr.mxu0 0.0
    %2720 = vmatpush2.msra.mxu0 0.0
    %2721 = vmatprep.subr.mxu0 0.0
    %2722 = vmatpush2.msra.mxu0 0.0
    %2723 = vmatprep.subr.mxu0 0.0
    %2724 = vmatpush2.msra.mxu0 0.0
    %2725 = vmatprep.subr.mxu0 0.0
    %2726 = vmatpush2.msra.mxu0 0.0
    %2727 = vmatprep.subr.mxu0 0.0
    %2728 = vmatpush2.msra.mxu0 0.0
    %2729 = vmatprep.subr.mxu0 0.0
    %2730 = vmatpush2.msra.mxu0 0.0
    %2731 = vmatprep.subr.mxu0 0.0
    %2732 = vmatpush2.msra.mxu0 0.0
    %2733 = vmatprep.mubr.f32.mxu0 0.0
    %2734 = vmatmul.mubr.f32.gmra.mxu0 %v2498
    %v2735 = vpop.f32.mrf.mxu0
    %v2736 = vadd.f32 0.0, %v2735
    %v2737 = vpop.f32.mrf.mxu0
    %v2738 = vadd.f32 0.0, %v2737
    %2739 = vdwg.mxu0
    %2740 = vmatprep.subr.mxu0 %v266
    %2741 = vmatpush1.msra.mxu0 %v265
    %2742 = vmatprep.subr.mxu0 %v262
    %2743 = vmatpush1.msra.mxu0 %v261
    %2744 = vmatprep.subr.mxu0 %v258
    %2745 = vmatpush1.msra.mxu0 %v257
    %2746 = vmatprep.subr.mxu0 %v254
    %2747 = vmatpush1.msra.mxu0 %v253
    %2748 = vmatprep.subr.mxu0 %v250
    %2749 = vmatpush1.msra.mxu0 %v249
    %2750 = vmatprep.subr.mxu0 %v246
    %2751 = vmatpush1.msra.mxu0 %v245
    %2752 = vmatprep.subr.mxu0 %v242
    %2753 = vmatpush1.msra.mxu0 %v241
    %2754 = vmatprep.subr.mxu0 %v238
    %2755 = vmatpush1.msra.mxu0 %v237
    %2756 = vmatprep.subr.mxu0 %v234
    %2757 = vmatpush1.msra.mxu0 %v233
    %2758 = vmatprep.subr.mxu0 %v230
    %2759 = vmatpush1.msra.mxu0 %v229
    %2760 = vmatprep.subr.mxu0 %v226
    %2761 = vmatpush1.msra.mxu0 %v225
    %2762 = vmatprep.subr.mxu0 %v222
    %2763 = vmatpush1.msra.mxu0 %v221
    %2764 = vmatprep.subr.mxu0 %v218
    %2765 = vmatpush1.msra.mxu0 %v217
    %2766 = vmatprep.subr.mxu0 %v214
    %2767 = vmatpush1.msra.mxu0 %v213
    %2768 = vmatprep.subr.mxu0 %v210
    %2769 = vmatpush1.msra.mxu0 %v209
    %2770 = vmatprep.subr.mxu0 %v206
    %2771 = vmatpush1.msra.mxu0 %v205
    %2772 = vmatprep.subr.mxu0 0.0
    %2773 = vmatpush2.msra.mxu0 0.0
    %2774 = vmatprep.subr.mxu0 0.0
    %2775 = vmatpush2.msra.mxu0 0.0
    %2776 = vmatprep.subr.mxu0 0.0
    %2777 = vmatpush2.msra.mxu0 0.0
    %2778 = vmatprep.subr.mxu0 0.0
    %2779 = vmatpush2.msra.mxu0 0.0
    %2780 = vmatprep.subr.mxu0 0.0
    %2781 = vmatpush2.msra.mxu0 0.0
    %2782 = vmatprep.subr.mxu0 0.0
    %2783 = vmatpush2.msra.mxu0 0.0
    %2784 = vmatprep.subr.mxu0 0.0
    %2785 = vmatpush2.msra.mxu0 0.0
    %2786 = vmatprep.subr.mxu0 0.0
    %2787 = vmatpush2.msra.mxu0 0.0
    %2788 = vmatprep.subr.mxu0 0.0
    %2789 = vmatpush2.msra.mxu0 0.0
    %2790 = vmatprep.subr.mxu0 0.0
    %2791 = vmatpush2.msra.mxu0 0.0
    %2792 = vmatprep.subr.mxu0 0.0
    %2793 = vmatpush2.msra.mxu0 0.0
    %2794 = vmatprep.subr.mxu0 0.0
    %2795 = vmatpush2.msra.mxu0 0.0
    %2796 = vmatprep.subr.mxu0 0.0
    %2797 = vmatpush2.msra.mxu0 0.0
    %2798 = vmatprep.subr.mxu0 0.0
    %2799 = vmatpush2.msra.mxu0 0.0
    %2800 = vmatprep.subr.mxu0 0.0
    %2801 = vmatpush2.msra.mxu0 0.0
    %2802 = vmatprep.subr.mxu0 0.0
    %2803 = vmatpush2.msra.mxu0 0.0
    %2804 = vmatprep.mubr.f32.mxu0 0.0
    %2805 = vmatmul.mubr.f32.gmra.mxu0 %v2498
    %v2806 = vpop.f32.mrf.mxu0
    %v2807 = vadd.f32 0.0, %v2806
    %v2808 = vpop.f32.mrf.mxu0
    %v2809 = vadd.f32 0.0, %v2808
    %2810 = vdwg.mxu0
    %2811 = vmatprep.subr.mxu0 %v200
    %2812 = vmatpush1.msra.mxu0 %v199
    %2813 = vmatprep.subr.mxu0 %v196
    %2814 = vmatpush1.msra.mxu0 %v195
    %2815 = vmatprep.subr.mxu0 %v192
    %2816 = vmatpush1.msra.mxu0 %v191
    %2817 = vmatprep.subr.mxu0 %v188
    %2818 = vmatpush1.msra.mxu0 %v187
    %2819 = vmatprep.subr.mxu0 %v184
    %2820 = vmatpush1.msra.mxu0 %v183
    %2821 = vmatprep.subr.mxu0 %v180
    %2822 = vmatpush1.msra.mxu0 %v179
    %2823 = vmatprep.subr.mxu0 %v176
    %2824 = vmatpush1.msra.mxu0 %v175
    %2825 = vmatprep.subr.mxu0 %v172
    %2826 = vmatpush1.msra.mxu0 %v171
    %2827 = vmatprep.subr.mxu0 %v168
    %2828 = vmatpush1.msra.mxu0 %v167
    %2829 = vmatprep.subr.mxu0 %v164
    %2830 = vmatpush1.msra.mxu0 %v163
    %2831 = vmatprep.subr.mxu0 %v160
    %2832 = vmatpush1.msra.mxu0 %v159
    %2833 = vmatprep.subr.mxu0 %v156
    %2834 = vmatpush1.msra.mxu0 %v155
    %2835 = vmatprep.subr.mxu0 %v152
    %2836 = vmatpush1.msra.mxu0 %v151
    %2837 = vmatprep.subr.mxu0 %v148
    %2838 = vmatpush1.msra.mxu0 %v147
    %2839 = vmatprep.subr.mxu0 %v144
    %2840 = vmatpush1.msra.mxu0 %v143
    %2841 = vmatprep.subr.mxu0 %v140
    %2842 = vmatpush1.msra.mxu0 %v139
    %2843 = vmatprep.subr.mxu0 0.0
    %2844 = vmatpush2.msra.mxu0 0.0
    %2845 = vmatprep.subr.mxu0 0.0
    %2846 = vmatpush2.msra.mxu0 0.0
    %2847 = vmatprep.subr.mxu0 0.0
    %2848 = vmatpush2.msra.mxu0 0.0
    %2849 = vmatprep.subr.mxu0 0.0
    %2850 = vmatpush2.msra.mxu0 0.0
    %2851 = vmatprep.subr.mxu0 0.0
    %2852 = vmatpush2.msra.mxu0 0.0
    %2853 = vmatprep.subr.mxu0 0.0
    %2854 = vmatpush2.msra.mxu0 0.0
    %2855 = vmatprep.subr.mxu0 0.0
    %2856 = vmatpush2.msra.mxu0 0.0
    %2857 = vmatprep.subr.mxu0 0.0
    %2858 = vmatpush2.msra.mxu0 0.0
    %2859 = vmatprep.subr.mxu0 0.0
    %2860 = vmatpush2.msra.mxu0 0.0
    %2861 = vmatprep.subr.mxu0 0.0
    %2862 = vmatpush2.msra.mxu0 0.0
    %2863 = vmatprep.subr.mxu0 0.0
    %2864 = vmatpush2.msra.mxu0 0.0
    %2865 = vmatprep.subr.mxu0 0.0
    %2866 = vmatpush2.msra.mxu0 0.0
    %2867 = vmatprep.subr.mxu0 0.0
    %2868 = vmatpush2.msra.mxu0 0.0
    %2869 = vmatprep.subr.mxu0 0.0
    %2870 = vmatpush2.msra.mxu0 0.0
    %2871 = vmatprep.subr.mxu0 0.0
    %2872 = vmatpush2.msra.mxu0 0.0
    %2873 = vmatprep.subr.mxu0 0.0
    %2874 = vmatpush2.msra.mxu0 0.0
    %2875 = vmatprep.mubr.f32.mxu0 0.0
    %2876 = vmatmul.mubr.f32.gmra.mxu0 %v2668
    %v2877 = vpop.f32.mrf.mxu0
    %v2878 = vadd.f32 %v2736, %v2877
    %v2879 = vpop.f32.mrf.mxu0
    %v2880 = vadd.f32 %v2738, %v2879
    %2881 = vdwg.mxu0
    %2882 = vmatprep.subr.mxu0 %v202
    %2883 = vmatpush1.msra.mxu0 %v201
    %2884 = vmatprep.subr.mxu0 %v198
    %2885 = vmatpush1.msra.mxu0 %v197
    %2886 = vmatprep.subr.mxu0 %v194
    %2887 = vmatpush1.msra.mxu0 %v193
    %2888 = vmatprep.subr.mxu0 %v190
    %2889 = vmatpush1.msra.mxu0 %v189
    %2890 = vmatprep.subr.mxu0 %v186
    %2891 = vmatpush1.msra.mxu0 %v185
    %2892 = vmatprep.subr.mxu0 %v182
    %2893 = vmatpush1.msra.mxu0 %v181
    %2894 = vmatprep.subr.mxu0 %v178
    %2895 = vmatpush1.msra.mxu0 %v177
    %2896 = vmatprep.subr.mxu0 %v174
    %2897 = vmatpush1.msra.mxu0 %v173
    %2898 = vmatprep.subr.mxu0 %v170
    %2899 = vmatpush1.msra.mxu0 %v169
    %2900 = vmatprep.subr.mxu0 %v166
    %2901 = vmatpush1.msra.mxu0 %v165
    %2902 = vmatprep.subr.mxu0 %v162
    %2903 = vmatpush1.msra.mxu0 %v161
    %2904 = vmatprep.subr.mxu0 %v158
    %2905 = vmatpush1.msra.mxu0 %v157
    %2906 = vmatprep.subr.mxu0 %v154
    %2907 = vmatpush1.msra.mxu0 %v153
    %2908 = vmatprep.subr.mxu0 %v150
    %2909 = vmatpush1.msra.mxu0 %v149
    %2910 = vmatprep.subr.mxu0 %v146
    %2911 = vmatpush1.msra.mxu0 %v145
    %2912 = vmatprep.subr.mxu0 %v142
    %2913 = vmatpush1.msra.mxu0 %v141
    %2914 = vmatprep.subr.mxu0 0.0
    %2915 = vmatpush2.msra.mxu0 0.0
    %2916 = vmatprep.subr.mxu0 0.0
    %2917 = vmatpush2.msra.mxu0 0.0
    %2918 = vmatprep.subr.mxu0 0.0
    %2919 = vmatpush2.msra.mxu0 0.0
    %2920 = vmatprep.subr.mxu0 0.0
    %2921 = vmatpush2.msra.mxu0 0.0
    %2922 = vmatprep.subr.mxu0 0.0
    %2923 = vmatpush2.msra.mxu0 0.0
    %2924 = vmatprep.subr.mxu0 0.0
    %2925 = vmatpush2.msra.mxu0 0.0
    %2926 = vmatprep.subr.mxu0 0.0
    %2927 = vmatpush2.msra.mxu0 0.0
    %2928 = vmatprep.subr.mxu0 0.0
    %2929 = vmatpush2.msra.mxu0 0.0
    %2930 = vmatprep.subr.mxu0 0.0
    %2931 = vmatpush2.msra.mxu0 0.0
    %2932 = vmatprep.subr.mxu0 0.0
    %2933 = vmatpush2.msra.mxu0 0.0
    %2934 = vmatprep.subr.mxu0 0.0
    %2935 = vmatpush2.msra.mxu0 0.0
    %2936 = vmatprep.subr.mxu0 0.0
    %2937 = vmatpush2.msra.mxu0 0.0
    %2938 = vmatprep.subr.mxu0 0.0
    %2939 = vmatpush2.msra.mxu0 0.0
    %2940 = vmatprep.subr.mxu0 0.0
    %2941 = vmatpush2.msra.mxu0 0.0
    %2942 = vmatprep.subr.mxu0 0.0
    %2943 = vmatpush2.msra.mxu0 0.0
    %2944 = vmatprep.subr.mxu0 0.0
    %2945 = vmatpush2.msra.mxu0 0.0
    %2946 = vmatprep.mubr.f32.mxu0 0.0
    %2947 = vmatmul.mubr.f32.gmra.mxu0 %v2668
    %v2948 = vpop.f32.mrf.mxu0
    %v2949 = vadd.f32 %v2807, %v2948
    %v2950 = vpop.f32.mrf.mxu0
    %v2951 = vadd.f32 %v2809, %v2950
    %2952 = vdwg.mxu0
    %v2953 = vadd.f32 %v2878, %v554
    %v2954 = vadd.f32 %v2880, %v558
    %v2955 = vadd.f32 %v2949, %v562
    %v2956 = vadd.f32 %v2951, %v566
    %v2957 = vxor.u32 %v2953, 2147483648
    %v2958 = vmul.f32 %v2957, 1.442695
    %v2959 = vpow.pop %v2958
    %v2960 = vadd.f32 %v2959, 1.0
    %v2961 = vrcp.pop %v2960
    %v2962 = vmul.f32 1.0, %v2961
    %v2963 = vxor.u32 %v2954, 2147483648
    %v2964 = vmul.f32 %v2963, 1.442695
    %v2965 = vpow.pop %v2964
    %v2966 = vadd.f32 %v2965, 1.0
    %v2967 = vrcp.pop %v2966
    %v2968 = vmul.f32 1.0, %v2967
    %v2969 = vtanh.pop %v2955
    %v2970 = vxor.u32 %v2956, 2147483648
    %v2971 = vmul.f32 %v2970, 1.442695
    %v2972 = vpow.pop %v2971
    %v2973 = vadd.f32 %v2972, 1.0
    %v2974 = vrcp.pop %v2973
    %v2975 = vmul.f32 1.0, %v2974
    %v2976 = vmul.f32 %v2968, %v2496
    %v2977 = vmul.f32 %v2962, %v2969
    %v2978 = vadd.f32 %v2976, %v2977
    %v2979 = vtanh.pop %v2978
    %v2980 = vmul.f32 %v2975, %v2979
    %2981 = vmatprep.subr.mxu0 %v136
    %2982 = vmatpush1.msra.mxu0 %v135
    %2983 = vmatprep.subr.mxu0 %v132
    %2984 = vmatpush1.msra.mxu0 %v131
    %2985 = vmatprep.subr.mxu0 %v128
    %2986 = vmatpush1.msra.mxu0 %v127
    %2987 = vmatprep.subr.mxu0 %v124
    %2988 = vmatpush1.msra.mxu0 %v123
    %2989 = vmatprep.subr.mxu0 %v120
    %2990 = vmatpush1.msra.mxu0 %v119
    %2991 = vmatprep.subr.mxu0 %v116
    %2992 = vmatpush1.msra.mxu0 %v115
    %2993 = vmatprep.subr.mxu0 %v112
    %2994 = vmatpush1.msra.mxu0 %v111
    %2995 = vmatprep.subr.mxu0 %v108
    %2996 = vmatpush1.msra.mxu0 %v107
    %2997 = vmatprep.subr.mxu0 %v104
    %2998 = vmatpush1.msra.mxu0 %v103
    %2999 = vmatprep.subr.mxu0 %v100
    %3000 = vmatpush1.msra.mxu0 %v99
    %3001 = vmatprep.subr.mxu0 %v96
    %3002 = vmatpush1.msra.mxu0 %v95
    %3003 = vmatprep.subr.mxu0 %v92
    %3004 = vmatpush1.msra.mxu0 %v91
    %3005 = vmatprep.subr.mxu0 %v88
    %3006 = vmatpush1.msra.mxu0 %v87
    %3007 = vmatprep.subr.mxu0 %v84
    %3008 = vmatpush1.msra.mxu0 %v83
    %3009 = vmatprep.subr.mxu0 %v80
    %3010 = vmatpush1.msra.mxu0 %v79
    %3011 = vmatprep.subr.mxu0 %v76
    %3012 = vmatpush1.msra.mxu0 %v75
    %3013 = vmatprep.subr.mxu0 0.0
    %3014 = vmatpush2.msra.mxu0 0.0
    %3015 = vmatprep.subr.mxu0 0.0
    %3016 = vmatpush2.msra.mxu0 0.0
    %3017 = vmatprep.subr.mxu0 0.0
    %3018 = vmatpush2.msra.mxu0 0.0
    %3019 = vmatprep.subr.mxu0 0.0
    %3020 = vmatpush2.msra.mxu0 0.0
    %3021 = vmatprep.subr.mxu0 0.0
    %3022 = vmatpush2.msra.mxu0 0.0
    %3023 = vmatprep.subr.mxu0 0.0
    %3024 = vmatpush2.msra.mxu0 0.0
    %3025 = vmatprep.subr.mxu0 0.0
    %3026 = vmatpush2.msra.mxu0 0.0
    %3027 = vmatprep.subr.mxu0 0.0
    %3028 = vmatpush2.msra.mxu0 0.0
    %3029 = vmatprep.subr.mxu0 0.0
    %3030 = vmatpush2.msra.mxu0 0.0
    %3031 = vmatprep.subr.mxu0 0.0
    %3032 = vmatpush2.msra.mxu0 0.0
    %3033 = vmatprep.subr.mxu0 0.0
    %3034 = vmatpush2.msra.mxu0 0.0
    %3035 = vmatprep.subr.mxu0 0.0
    %3036 = vmatpush2.msra.mxu0 0.0
    %3037 = vmatprep.subr.mxu0 0.0
    %3038 = vmatpush2.msra.mxu0 0.0
    %3039 = vmatprep.subr.mxu0 0.0
    %3040 = vmatpush2.msra.mxu0 0.0
    %3041 = vmatprep.subr.mxu0 0.0
    %3042 = vmatpush2.msra.mxu0 0.0
    %3043 = vmatprep.subr.mxu0 0.0
    %3044 = vmatpush2.msra.mxu0 0.0
    %3045 = vmatprep.mubr.f32.mxu0 0.0
    %3046 = vmatmul.mubr.f32.gmra.mxu0 %v2668
    %v3047 = vpop.f32.mrf.mxu0
    %v3048 = vadd.f32 0.0, %v3047
    %v3049 = vpop.f32.mrf.mxu0
    %v3050 = vadd.f32 0.0, %v3049
    %3051 = vdwg.mxu0
    %3052 = vmatprep.subr.mxu0 %v138
    %3053 = vmatpush1.msra.mxu0 %v137
    %3054 = vmatprep.subr.mxu0 %v134
    %3055 = vmatpush1.msra.mxu0 %v133
    %3056 = vmatprep.subr.mxu0 %v130
    %3057 = vmatpush1.msra.mxu0 %v129
    %3058 = vmatprep.subr.mxu0 %v126
    %3059 = vmatpush1.msra.mxu0 %v125
    %3060 = vmatprep.subr.mxu0 %v122
    %3061 = vmatpush1.msra.mxu0 %v121
    %3062 = vmatprep.subr.mxu0 %v118
    %3063 = vmatpush1.msra.mxu0 %v117
    %3064 = vmatprep.subr.mxu0 %v114
    %3065 = vmatpush1.msra.mxu0 %v113
    %3066 = vmatprep.subr.mxu0 %v110
    %3067 = vmatpush1.msra.mxu0 %v109
    %3068 = vmatprep.subr.mxu0 %v106
    %3069 = vmatpush1.msra.mxu0 %v105
    %3070 = vmatprep.subr.mxu0 %v102
    %3071 = vmatpush1.msra.mxu0 %v101
    %3072 = vmatprep.subr.mxu0 %v98
    %3073 = vmatpush1.msra.mxu0 %v97
    %3074 = vmatprep.subr.mxu0 %v94
    %3075 = vmatpush1.msra.mxu0 %v93
    %3076 = vmatprep.subr.mxu0 %v90
    %3077 = vmatpush1.msra.mxu0 %v89
    %3078 = vmatprep.subr.mxu0 %v86
    %3079 = vmatpush1.msra.mxu0 %v85
    %3080 = vmatprep.subr.mxu0 %v82
    %3081 = vmatpush1.msra.mxu0 %v81
    %3082 = vmatprep.subr.mxu0 %v78
    %3083 = vmatpush1.msra.mxu0 %v77
    %3084 = vmatprep.subr.mxu0 0.0
    %3085 = vmatpush2.msra.mxu0 0.0
    %3086 = vmatprep.subr.mxu0 0.0
    %3087 = vmatpush2.msra.mxu0 0.0
    %3088 = vmatprep.subr.mxu0 0.0
    %3089 = vmatpush2.msra.mxu0 0.0
    %3090 = vmatprep.subr.mxu0 0.0
    %3091 = vmatpush2.msra.mxu0 0.0
    %3092 = vmatprep.subr.mxu0 0.0
    %3093 = vmatpush2.msra.mxu0 0.0
    %3094 = vmatprep.subr.mxu0 0.0
    %3095 = vmatpush2.msra.mxu0 0.0
    %3096 = vmatprep.subr.mxu0 0.0
    %3097 = vmatpush2.msra.mxu0 0.0
    %3098 = vmatprep.subr.mxu0 0.0
    %3099 = vmatpush2.msra.mxu0 0.0
    %3100 = vmatprep.subr.mxu0 0.0
    %3101 = vmatpush2.msra.mxu0 0.0
    %3102 = vmatprep.subr.mxu0 0.0
    %3103 = vmatpush2.msra.mxu0 0.0
    %3104 = vmatprep.subr.mxu0 0.0
    %3105 = vmatpush2.msra.mxu0 0.0
    %3106 = vmatprep.subr.mxu0 0.0
    %3107 = vmatpush2.msra.mxu0 0.0
    %3108 = vmatprep.subr.mxu0 0.0
    %3109 = vmatpush2.msra.mxu0 0.0
    %3110 = vmatprep.subr.mxu0 0.0
    %3111 = vmatpush2.msra.mxu0 0.0
    %3112 = vmatprep.subr.mxu0 0.0
    %3113 = vmatpush2.msra.mxu0 0.0
    %3114 = vmatprep.subr.mxu0 0.0
    %3115 = vmatpush2.msra.mxu0 0.0
    %3116 = vmatprep.mubr.f32.mxu0 0.0
    %3117 = vmatmul.mubr.f32.gmra.mxu0 %v2668
    %v3118 = vpop.f32.mrf.mxu0
    %v3119 = vadd.f32 0.0, %v3118
    %v3120 = vpop.f32.mrf.mxu0
    %v3121 = vadd.f32 0.0, %v3120
    %3122 = vdwg.mxu0
    %v3123 = vadd.f32 %v432, %v3048
    %v3124 = vadd.f32 %v434, %v3050
    %v3125 = vadd.f32 %v539, %v3119
    %v3126 = vadd.f32 %v541, %v3121
    %v3127 = vxor.u32 %v3123, 2147483648
    %v3128 = vmul.f32 %v3127, 1.442695
    %v3129 = vpow.pop %v3128
    %v3130 = vadd.f32 %v3129, 1.0
    %v3131 = vrcp.pop %v3130
    %v3132 = vmul.f32 1.0, %v3131
    %v3133 = vxor.u32 %v3124, 2147483648
    %v3134 = vmul.f32 %v3133, 1.442695
    %v3135 = vpow.pop %v3134
    %v3136 = vadd.f32 %v3135, 1.0
    %v3137 = vrcp.pop %v3136
    %v3138 = vmul.f32 1.0, %v3137
    %v3139 = vtanh.pop %v3125
    %v3140 = vxor.u32 %v3126, 2147483648
    %v3141 = vmul.f32 %v3140, 1.442695
    %v3142 = vpow.pop %v3141
    %v3143 = vadd.f32 %v3142, 1.0
    %v3144 = vrcp.pop %v3143
    %v3145 = vmul.f32 1.0, %v3144
    %v3146 = vmul.f32 %v3138, %v2666
    %v3147 = vmul.f32 %v3132, %v3139
    %v3148 = vadd.f32 %v3146, %v3147
    %v3149 = vtanh.pop %v3148
    %v3150 = vmul.f32 %v3145, %v3149
    %3151 = vmatprep.subr.mxu0 %v264
    %3152 = vmatpush1.msra.mxu0 %v263
    %3153 = vmatprep.subr.mxu0 %v260
    %3154 = vmatpush1.msra.mxu0 %v259
    %3155 = vmatprep.subr.mxu0 %v256
    %3156 = vmatpush1.msra.mxu0 %v255
    %3157 = vmatprep.subr.mxu0 %v252
    %3158 = vmatpush1.msra.mxu0 %v251
    %3159 = vmatprep.subr.mxu0 %v248
    %3160 = vmatpush1.msra.mxu0 %v247
    %3161 = vmatprep.subr.mxu0 %v244
    %3162 = vmatpush1.msra.mxu0 %v243
    %3163 = vmatprep.subr.mxu0 %v240
    %3164 = vmatpush1.msra.mxu0 %v239
    %3165 = vmatprep.subr.mxu0 %v236
    %3166 = vmatpush1.msra.mxu0 %v235
    %3167 = vmatprep.subr.mxu0 %v232
    %3168 = vmatpush1.msra.mxu0 %v231
    %3169 = vmatprep.subr.mxu0 %v228
    %3170 = vmatpush1.msra.mxu0 %v227
    %3171 = vmatprep.subr.mxu0 %v224
    %3172 = vmatpush1.msra.mxu0 %v223
    %3173 = vmatprep.subr.mxu0 %v220
    %3174 = vmatpush1.msra.mxu0 %v219
    %3175 = vmatprep.subr.mxu0 %v216
    %3176 = vmatpush1.msra.mxu0 %v215
    %3177 = vmatprep.subr.mxu0 %v212
    %3178 = vmatpush1.msra.mxu0 %v211
    %3179 = vmatprep.subr.mxu0 %v208
    %3180 = vmatpush1.msra.mxu0 %v207
    %3181 = vmatprep.subr.mxu0 %v204
    %3182 = vmatpush1.msra.mxu0 %v203
    %3183 = vmatprep.subr.mxu0 0.0
    %3184 = vmatpush2.msra.mxu0 0.0
    %3185 = vmatprep.subr.mxu0 0.0
    %3186 = vmatpush2.msra.mxu0 0.0
    %3187 = vmatprep.subr.mxu0 0.0
    %3188 = vmatpush2.msra.mxu0 0.0
    %3189 = vmatprep.subr.mxu0 0.0
    %3190 = vmatpush2.msra.mxu0 0.0
    %3191 = vmatprep.subr.mxu0 0.0
    %3192 = vmatpush2.msra.mxu0 0.0
    %3193 = vmatprep.subr.mxu0 0.0
    %3194 = vmatpush2.msra.mxu0 0.0
    %3195 = vmatprep.subr.mxu0 0.0
    %3196 = vmatpush2.msra.mxu0 0.0
    %3197 = vmatprep.subr.mxu0 0.0
    %3198 = vmatpush2.msra.mxu0 0.0
    %3199 = vmatprep.subr.mxu0 0.0
    %3200 = vmatpush2.msra.mxu0 0.0
    %3201 = vmatprep.subr.mxu0 0.0
    %3202 = vmatpush2.msra.mxu0 0.0
    %3203 = vmatprep.subr.mxu0 0.0
    %3204 = vmatpush2.msra.mxu0 0.0
    %3205 = vmatprep.subr.mxu0 0.0
    %3206 = vmatpush2.msra.mxu0 0.0
    %3207 = vmatprep.subr.mxu0 0.0
    %3208 = vmatpush2.msra.mxu0 0.0
    %3209 = vmatprep.subr.mxu0 0.0
    %3210 = vmatpush2.msra.mxu0 0.0
    %3211 = vmatprep.subr.mxu0 0.0
    %3212 = vmatpush2.msra.mxu0 0.0
    %3213 = vmatprep.subr.mxu0 0.0
    %3214 = vmatpush2.msra.mxu0 0.0
    %3215 = vmatprep.mubr.f32.mxu0 0.0
    %3216 = vmatmul.mubr.f32.gmra.mxu0 %v2980
    %v3217 = vpop.f32.mrf.mxu0
    %v3218 = vadd.f32 0.0, %v3217
    %v3219 = vpop.f32.mrf.mxu0
    %v3220 = vadd.f32 0.0, %v3219
    %3221 = vdwg.mxu0
    %3222 = vmatprep.subr.mxu0 %v266
    %3223 = vmatpush1.msra.mxu0 %v265
    %3224 = vmatprep.subr.mxu0 %v262
    %3225 = vmatpush1.msra.mxu0 %v261
    %3226 = vmatprep.subr.mxu0 %v258
    %3227 = vmatpush1.msra.mxu0 %v257
    %3228 = vmatprep.subr.mxu0 %v254
    %3229 = vmatpush1.msra.mxu0 %v253
    %3230 = vmatprep.subr.mxu0 %v250
    %3231 = vmatpush1.msra.mxu0 %v249
    %3232 = vmatprep.subr.mxu0 %v246
    %3233 = vmatpush1.msra.mxu0 %v245
    %3234 = vmatprep.subr.mxu0 %v242
    %3235 = vmatpush1.msra.mxu0 %v241
    %3236 = vmatprep.subr.mxu0 %v238
    %3237 = vmatpush1.msra.mxu0 %v237
    %3238 = vmatprep.subr.mxu0 %v234
    %3239 = vmatpush1.msra.mxu0 %v233
    %3240 = vmatprep.subr.mxu0 %v230
    %3241 = vmatpush1.msra.mxu0 %v229
    %3242 = vmatprep.subr.mxu0 %v226
    %3243 = vmatpush1.msra.mxu0 %v225
    %3244 = vmatprep.subr.mxu0 %v222
    %3245 = vmatpush1.msra.mxu0 %v221
    %3246 = vmatprep.subr.mxu0 %v218
    %3247 = vmatpush1.msra.mxu0 %v217
    %3248 = vmatprep.subr.mxu0 %v214
    %3249 = vmatpush1.msra.mxu0 %v213
    %3250 = vmatprep.subr.mxu0 %v210
    %3251 = vmatpush1.msra.mxu0 %v209
    %3252 = vmatprep.subr.mxu0 %v206
    %3253 = vmatpush1.msra.mxu0 %v205
    %3254 = vmatprep.subr.mxu0 0.0
    %3255 = vmatpush2.msra.mxu0 0.0
    %3256 = vmatprep.subr.mxu0 0.0
    %3257 = vmatpush2.msra.mxu0 0.0
    %3258 = vmatprep.subr.mxu0 0.0
    %3259 = vmatpush2.msra.mxu0 0.0
    %3260 = vmatprep.subr.mxu0 0.0
    %3261 = vmatpush2.msra.mxu0 0.0
    %3262 = vmatprep.subr.mxu0 0.0
    %3263 = vmatpush2.msra.mxu0 0.0
    %3264 = vmatprep.subr.mxu0 0.0
    %3265 = vmatpush2.msra.mxu0 0.0
    %3266 = vmatprep.subr.mxu0 0.0
    %3267 = vmatpush2.msra.mxu0 0.0
    %3268 = vmatprep.subr.mxu0 0.0
    %3269 = vmatpush2.msra.mxu0 0.0
    %3270 = vmatprep.subr.mxu0 0.0
    %3271 = vmatpush2.msra.mxu0 0.0
    %3272 = vmatprep.subr.mxu0 0.0
    %3273 = vmatpush2.msra.mxu0 0.0
    %3274 = vmatprep.subr.mxu0 0.0
    %3275 = vmatpush2.msra.mxu0 0.0
    %3276 = vmatprep.subr.mxu0 0.0
    %3277 = vmatpush2.msra.mxu0 0.0
    %3278 = vmatprep.subr.mxu0 0.0
    %3279 = vmatpush2.msra.mxu0 0.0
    %3280 = vmatprep.subr.mxu0 0.0
    %3281 = vmatpush2.msra.mxu0 0.0
    %3282 = vmatprep.subr.mxu0 0.0
    %3283 = vmatpush2.msra.mxu0 0.0
    %3284 = vmatprep.subr.mxu0 0.0
    %3285 = vmatpush2.msra.mxu0 0.0
    %3286 = vmatprep.mubr.f32.mxu0 0.0
    %3287 = vmatmul.mubr.f32.gmra.mxu0 %v2980
    %v3288 = vpop.f32.mrf.mxu0
    %v3289 = vadd.f32 0.0, %v3288
    %v3290 = vpop.f32.mrf.mxu0
    %v3291 = vadd.f32 0.0, %v3290
    %3292 = vdwg.mxu0
    %3293 = vmatprep.subr.mxu0 %v200
    %3294 = vmatpush1.msra.mxu0 %v199
    %3295 = vmatprep.subr.mxu0 %v196
    %3296 = vmatpush1.msra.mxu0 %v195
    %3297 = vmatprep.subr.mxu0 %v192
    %3298 = vmatpush1.msra.mxu0 %v191
    %3299 = vmatprep.subr.mxu0 %v188
    %3300 = vmatpush1.msra.mxu0 %v187
    %3301 = vmatprep.subr.mxu0 %v184
    %3302 = vmatpush1.msra.mxu0 %v183
    %3303 = vmatprep.subr.mxu0 %v180
    %3304 = vmatpush1.msra.mxu0 %v179
    %3305 = vmatprep.subr.mxu0 %v176
    %3306 = vmatpush1.msra.mxu0 %v175
    %3307 = vmatprep.subr.mxu0 %v172
    %3308 = vmatpush1.msra.mxu0 %v171
    %3309 = vmatprep.subr.mxu0 %v168
    %3310 = vmatpush1.msra.mxu0 %v167
    %3311 = vmatprep.subr.mxu0 %v164
    %3312 = vmatpush1.msra.mxu0 %v163
    %3313 = vmatprep.subr.mxu0 %v160
    %3314 = vmatpush1.msra.mxu0 %v159
    %3315 = vmatprep.subr.mxu0 %v156
    %3316 = vmatpush1.msra.mxu0 %v155
    %3317 = vmatprep.subr.mxu0 %v152
    %3318 = vmatpush1.msra.mxu0 %v151
    %3319 = vmatprep.subr.mxu0 %v148
    %3320 = vmatpush1.msra.mxu0 %v147
    %3321 = vmatprep.subr.mxu0 %v144
    %3322 = vmatpush1.msra.mxu0 %v143
    %3323 = vmatprep.subr.mxu0 %v140
    %3324 = vmatpush1.msra.mxu0 %v139
    %3325 = vmatprep.subr.mxu0 0.0
    %3326 = vmatpush2.msra.mxu0 0.0
    %3327 = vmatprep.subr.mxu0 0.0
    %3328 = vmatpush2.msra.mxu0 0.0
    %3329 = vmatprep.subr.mxu0 0.0
    %3330 = vmatpush2.msra.mxu0 0.0
    %3331 = vmatprep.subr.mxu0 0.0
    %3332 = vmatpush2.msra.mxu0 0.0
    %3333 = vmatprep.subr.mxu0 0.0
    %3334 = vmatpush2.msra.mxu0 0.0
    %3335 = vmatprep.subr.mxu0 0.0
    %3336 = vmatpush2.msra.mxu0 0.0
    %3337 = vmatprep.subr.mxu0 0.0
    %3338 = vmatpush2.msra.mxu0 0.0
    %3339 = vmatprep.subr.mxu0 0.0
    %3340 = vmatpush2.msra.mxu0 0.0
    %3341 = vmatprep.subr.mxu0 0.0
    %3342 = vmatpush2.msra.mxu0 0.0
    %3343 = vmatprep.subr.mxu0 0.0
    %3344 = vmatpush2.msra.mxu0 0.0
    %3345 = vmatprep.subr.mxu0 0.0
    %3346 = vmatpush2.msra.mxu0 0.0
    %3347 = vmatprep.subr.mxu0 0.0
    %3348 = vmatpush2.msra.mxu0 0.0
    %3349 = vmatprep.subr.mxu0 0.0
    %3350 = vmatpush2.msra.mxu0 0.0
    %3351 = vmatprep.subr.mxu0 0.0
    %3352 = vmatpush2.msra.mxu0 0.0
    %3353 = vmatprep.subr.mxu0 0.0
    %3354 = vmatpush2.msra.mxu0 0.0
    %3355 = vmatprep.subr.mxu0 0.0
    %3356 = vmatpush2.msra.mxu0 0.0
    %3357 = vmatprep.mubr.f32.mxu0 0.0
    %3358 = vmatmul.mubr.f32.gmra.mxu0 %v3150
    %v3359 = vpop.f32.mrf.mxu0
    %v3360 = vadd.f32 %v3218, %v3359
    %v3361 = vpop.f32.mrf.mxu0
    %v3362 = vadd.f32 %v3220, %v3361
    %3363 = vdwg.mxu0
    %3364 = vmatprep.subr.mxu0 %v202
    %3365 = vmatpush1.msra.mxu0 %v201
    %3366 = vmatprep.subr.mxu0 %v198
    %3367 = vmatpush1.msra.mxu0 %v197
    %3368 = vmatprep.subr.mxu0 %v194
    %3369 = vmatpush1.msra.mxu0 %v193
    %3370 = vmatprep.subr.mxu0 %v190
    %3371 = vmatpush1.msra.mxu0 %v189
    %3372 = vmatprep.subr.mxu0 %v186
    %3373 = vmatpush1.msra.mxu0 %v185
    %3374 = vmatprep.subr.mxu0 %v182
    %3375 = vmatpush1.msra.mxu0 %v181
    %3376 = vmatprep.subr.mxu0 %v178
    %3377 = vmatpush1.msra.mxu0 %v177
    %3378 = vmatprep.subr.mxu0 %v174
    %3379 = vmatpush1.msra.mxu0 %v173
    %3380 = vmatprep.subr.mxu0 %v170
    %3381 = vmatpush1.msra.mxu0 %v169
    %3382 = vmatprep.subr.mxu0 %v166
    %3383 = vmatpush1.msra.mxu0 %v165
    %3384 = vmatprep.subr.mxu0 %v162
    %3385 = vmatpush1.msra.mxu0 %v161
    %3386 = vmatprep.subr.mxu0 %v158
    %3387 = vmatpush1.msra.mxu0 %v157
    %3388 = vmatprep.subr.mxu0 %v154
    %3389 = vmatpush1.msra.mxu0 %v153
    %3390 = vmatprep.subr.mxu0 %v150
    %3391 = vmatpush1.msra.mxu0 %v149
    %3392 = vmatprep.subr.mxu0 %v146
    %3393 = vmatpush1.msra.mxu0 %v145
    %3394 = vmatprep.subr.mxu0 %v142
    %3395 = vmatpush1.msra.mxu0 %v141
    %3396 = vmatprep.subr.mxu0 0.0
    %3397 = vmatpush2.msra.mxu0 0.0
    %3398 = vmatprep.subr.mxu0 0.0
    %3399 = vmatpush2.msra.mxu0 0.0
    %3400 = vmatprep.subr.mxu0 0.0
    %3401 = vmatpush2.msra.mxu0 0.0
    %3402 = vmatprep.subr.mxu0 0.0
    %3403 = vmatpush2.msra.mxu0 0.0
    %3404 = vmatprep.subr.mxu0 0.0
    %3405 = vmatpush2.msra.mxu0 0.0
    %3406 = vmatprep.subr.mxu0 0.0
    %3407 = vmatpush2.msra.mxu0 0.0
    %3408 = vmatprep.subr.mxu0 0.0
    %3409 = vmatpush2.msra.mxu0 0.0
    %3410 = vmatprep.subr.mxu0 0.0
    %3411 = vmatpush2.msra.mxu0 0.0
    %3412 = vmatprep.subr.mxu0 0.0
    %3413 = vmatpush2.msra.mxu0 0.0
    %3414 = vmatprep.subr.mxu0 0.0
    %3415 = vmatpush2.msra.mxu0 0.0
    %3416 = vmatprep.subr.mxu0 0.0
    %3417 = vmatpush2.msra.mxu0 0.0
    %3418 = vmatprep.subr.mxu0 0.0
    %3419 = vmatpush2.msra.mxu0 0.0
    %3420 = vmatprep.subr.mxu0 0.0
    %3421 = vmatpush2.msra.mxu0 0.0
    %3422 = vmatprep.subr.mxu0 0.0
    %3423 = vmatpush2.msra.mxu0 0.0
    %3424 = vmatprep.subr.mxu0 0.0
    %3425 = vmatpush2.msra.mxu0 0.0
    %3426 = vmatprep.subr.mxu0 0.0
    %3427 = vmatpush2.msra.mxu0 0.0
    %3428 = vmatprep.mubr.f32.mxu0 0.0
    %3429 = vmatmul.mubr.f32.gmra.mxu0 %v3150
    %v3430 = vpop.f32.mrf.mxu0
    %v3431 = vadd.f32 %v3289, %v3430
    %v3432 = vpop.f32.mrf.mxu0
    %v3433 = vadd.f32 %v3291, %v3432
    %3434 = vdwg.mxu0
    %v3435 = vadd.f32 %v3360, %v554
    %v3436 = vadd.f32 %v3362, %v558
    %v3437 = vadd.f32 %v3431, %v562
    %v3438 = vadd.f32 %v3433, %v566
    %v3439 = vxor.u32 %v3435, 2147483648
    %v3440 = vmul.f32 %v3439, 1.442695
    %v3441 = vpow.pop %v3440
    %v3442 = vadd.f32 %v3441, 1.0
    %v3443 = vrcp.pop %v3442
    %v3444 = vmul.f32 1.0, %v3443
    %v3445 = vxor.u32 %v3436, 2147483648
    %v3446 = vmul.f32 %v3445, 1.442695
    %v3447 = vpow.pop %v3446
    %v3448 = vadd.f32 %v3447, 1.0
    %v3449 = vrcp.pop %v3448
    %v3450 = vmul.f32 1.0, %v3449
    %v3451 = vtanh.pop %v3437
    %v3452 = vxor.u32 %v3438, 2147483648
    %v3453 = vmul.f32 %v3452, 1.442695
    %v3454 = vpow.pop %v3453
    %v3455 = vadd.f32 %v3454, 1.0
    %v3456 = vrcp.pop %v3455
    %v3457 = vmul.f32 1.0, %v3456
    %v3458 = vmul.f32 %v3450, %v2978
    %v3459 = vmul.f32 %v3444, %v3451
    %v3460 = vadd.f32 %v3458, %v3459
    %v3461 = vtanh.pop %v3460
    %v3462 = vmul.f32 %v3457, %v3461
    %3463 = vmatprep.subr.mxu0 %v136
    %3464 = vmatpush1.msra.mxu0 %v135
    %3465 = vmatprep.subr.mxu0 %v132
    %3466 = vmatpush1.msra.mxu0 %v131
    %3467 = vmatprep.subr.mxu0 %v128
    %3468 = vmatpush1.msra.mxu0 %v127
    %3469 = vmatprep.subr.mxu0 %v124
    %3470 = vmatpush1.msra.mxu0 %v123
    %3471 = vmatprep.subr.mxu0 %v120
    %3472 = vmatpush1.msra.mxu0 %v119
    %3473 = vmatprep.subr.mxu0 %v116
    %3474 = vmatpush1.msra.mxu0 %v115
    %3475 = vmatprep.subr.mxu0 %v112
    %3476 = vmatpush1.msra.mxu0 %v111
    %3477 = vmatprep.subr.mxu0 %v108
    %3478 = vmatpush1.msra.mxu0 %v107
    %3479 = vmatprep.subr.mxu0 %v104
    %3480 = vmatpush1.msra.mxu0 %v103
    %3481 = vmatprep.subr.mxu0 %v100
    %3482 = vmatpush1.msra.mxu0 %v99
    %3483 = vmatprep.subr.mxu0 %v96
    %3484 = vmatpush1.msra.mxu0 %v95
    %3485 = vmatprep.subr.mxu0 %v92
    %3486 = vmatpush1.msra.mxu0 %v91
    %3487 = vmatprep.subr.mxu0 %v88
    %3488 = vmatpush1.msra.mxu0 %v87
    %3489 = vmatprep.subr.mxu0 %v84
    %3490 = vmatpush1.msra.mxu0 %v83
    %3491 = vmatprep.subr.mxu0 %v80
    %3492 = vmatpush1.msra.mxu0 %v79
    %3493 = vmatprep.subr.mxu0 %v76
    %3494 = vmatpush1.msra.mxu0 %v75
    %3495 = vmatprep.subr.mxu0 0.0
    %3496 = vmatpush2.msra.mxu0 0.0
    %3497 = vmatprep.subr.mxu0 0.0
    %3498 = vmatpush2.msra.mxu0 0.0
    %3499 = vmatprep.subr.mxu0 0.0
    %3500 = vmatpush2.msra.mxu0 0.0
    %3501 = vmatprep.subr.mxu0 0.0
    %3502 = vmatpush2.msra.mxu0 0.0
    %3503 = vmatprep.subr.mxu0 0.0
    %3504 = vmatpush2.msra.mxu0 0.0
    %3505 = vmatprep.subr.mxu0 0.0
    %3506 = vmatpush2.msra.mxu0 0.0
    %3507 = vmatprep.subr.mxu0 0.0
    %3508 = vmatpush2.msra.mxu0 0.0
    %3509 = vmatprep.subr.mxu0 0.0
    %3510 = vmatpush2.msra.mxu0 0.0
    %3511 = vmatprep.subr.mxu0 0.0
    %3512 = vmatpush2.msra.mxu0 0.0
    %3513 = vmatprep.subr.mxu0 0.0
    %3514 = vmatpush2.msra.mxu0 0.0
    %3515 = vmatprep.subr.mxu0 0.0
    %3516 = vmatpush2.msra.mxu0 0.0
    %3517 = vmatprep.subr.mxu0 0.0
    %3518 = vmatpush2.msra.mxu0 0.0
    %3519 = vmatprep.subr.mxu0 0.0
    %3520 = vmatpush2.msra.mxu0 0.0
    %3521 = vmatprep.subr.mxu0 0.0
    %3522 = vmatpush2.msra.mxu0 0.0
    %3523 = vmatprep.subr.mxu0 0.0
    %3524 = vmatpush2.msra.mxu0 0.0
    %3525 = vmatprep.subr.mxu0 0.0
    %3526 = vmatpush2.msra.mxu0 0.0
    %3527 = vmatprep.mubr.f32.mxu0 0.0
    %3528 = vmatmul.mubr.f32.gmra.mxu0 %v3150
    %v3529 = vpop.f32.mrf.mxu0
    %v3530 = vadd.f32 0.0, %v3529
    %v3531 = vpop.f32.mrf.mxu0
    %v3532 = vadd.f32 0.0, %v3531
    %3533 = vdwg.mxu0
    %3534 = vmatprep.subr.mxu0 %v138
    %3535 = vmatpush1.msra.mxu0 %v137
    %3536 = vmatprep.subr.mxu0 %v134
    %3537 = vmatpush1.msra.mxu0 %v133
    %3538 = vmatprep.subr.mxu0 %v130
    %3539 = vmatpush1.msra.mxu0 %v129
    %3540 = vmatprep.subr.mxu0 %v126
    %3541 = vmatpush1.msra.mxu0 %v125
    %3542 = vmatprep.subr.mxu0 %v122
    %3543 = vmatpush1.msra.mxu0 %v121
    %3544 = vmatprep.subr.mxu0 %v118
    %3545 = vmatpush1.msra.mxu0 %v117
    %3546 = vmatprep.subr.mxu0 %v114
    %3547 = vmatpush1.msra.mxu0 %v113
    %3548 = vmatprep.subr.mxu0 %v110
    %3549 = vmatpush1.msra.mxu0 %v109
    %3550 = vmatprep.subr.mxu0 %v106
    %3551 = vmatpush1.msra.mxu0 %v105
    %3552 = vmatprep.subr.mxu0 %v102
    %3553 = vmatpush1.msra.mxu0 %v101
    %3554 = vmatprep.subr.mxu0 %v98
    %3555 = vmatpush1.msra.mxu0 %v97
    %3556 = vmatprep.subr.mxu0 %v94
    %3557 = vmatpush1.msra.mxu0 %v93
    %3558 = vmatprep.subr.mxu0 %v90
    %3559 = vmatpush1.msra.mxu0 %v89
    %3560 = vmatprep.subr.mxu0 %v86
    %3561 = vmatpush1.msra.mxu0 %v85
    %3562 = vmatprep.subr.mxu0 %v82
    %3563 = vmatpush1.msra.mxu0 %v81
    %3564 = vmatprep.subr.mxu0 %v78
    %3565 = vmatpush1.msra.mxu0 %v77
    %3566 = vmatprep.subr.mxu0 0.0
    %3567 = vmatpush2.msra.mxu0 0.0
    %3568 = vmatprep.subr.mxu0 0.0
    %3569 = vmatpush2.msra.mxu0 0.0
    %3570 = vmatprep.subr.mxu0 0.0
    %3571 = vmatpush2.msra.mxu0 0.0
    %3572 = vmatprep.subr.mxu0 0.0
    %3573 = vmatpush2.msra.mxu0 0.0
    %3574 = vmatprep.subr.mxu0 0.0
    %3575 = vmatpush2.msra.mxu0 0.0
    %3576 = vmatprep.subr.mxu0 0.0
    %3577 = vmatpush2.msra.mxu0 0.0
    %3578 = vmatprep.subr.mxu0 0.0
    %3579 = vmatpush2.msra.mxu0 0.0
    %3580 = vmatprep.subr.mxu0 0.0
    %3581 = vmatpush2.msra.mxu0 0.0
    %3582 = vmatprep.subr.mxu0 0.0
    %3583 = vmatpush2.msra.mxu0 0.0
    %3584 = vmatprep.subr.mxu0 0.0
    %3585 = vmatpush2.msra.mxu0 0.0
    %3586 = vmatprep.subr.mxu0 0.0
    %3587 = vmatpush2.msra.mxu0 0.0
    %3588 = vmatprep.subr.mxu0 0.0
    %3589 = vmatpush2.msra.mxu0 0.0
    %3590 = vmatprep.subr.mxu0 0.0
    %3591 = vmatpush2.msra.mxu0 0.0
    %3592 = vmatprep.subr.mxu0 0.0
    %3593 = vmatpush2.msra.mxu0 0.0
    %3594 = vmatprep.subr.mxu0 0.0
    %3595 = vmatpush2.msra.mxu0 0.0
    %3596 = vmatprep.subr.mxu0 0.0
    %3597 = vmatpush2.msra.mxu0 0.0
    %3598 = vmatprep.mubr.f32.mxu0 0.0
    %3599 = vmatmul.mubr.f32.gmra.mxu0 %v3150
    %v3600 = vpop.f32.mrf.mxu0
    %v3601 = vadd.f32 0.0, %v3600
    %v3602 = vpop.f32.mrf.mxu0
    %v3603 = vadd.f32 0.0, %v3602
    %3604 = vdwg.mxu0
    %v3605 = vadd.f32 %v438, %v3530
    %v3606 = vadd.f32 %v440, %v3532
    %v3607 = vadd.f32 %v545, %v3601
    %v3608 = vadd.f32 %v547, %v3603
    %v3609 = vxor.u32 %v3605, 2147483648
    %v3610 = vmul.f32 %v3609, 1.442695
    %v3611 = vpow.pop %v3610
    %v3612 = vadd.f32 %v3611, 1.0
    %v3613 = vrcp.pop %v3612
    %v3614 = vmul.f32 1.0, %v3613
    %v3615 = vxor.u32 %v3606, 2147483648
    %v3616 = vmul.f32 %v3615, 1.442695
    %v3617 = vpow.pop %v3616
    %v3618 = vadd.f32 %v3617, 1.0
    %v3619 = vrcp.pop %v3618
    %v3620 = vmul.f32 1.0, %v3619
    %v3621 = vtanh.pop %v3607
    %v3622 = vxor.u32 %v3608, 2147483648
    %v3623 = vmul.f32 %v3622, 1.442695
    %v3624 = vpow.pop %v3623
    %v3625 = vadd.f32 %v3624, 1.0
    %v3626 = vrcp.pop %v3625
    %v3627 = vmul.f32 1.0, %v3626
    %v3628 = vmul.f32 %v3620, %v3148
    %v3629 = vmul.f32 %v3614, %v3621
    %v3630 = vadd.f32 %v3628, %v3629
    %v3631 = vtanh.pop %v3630
    %v3632 = vmul.f32 %v3627, %v3631
    %3633 = vmatprep.subr.mxu0 %v264
    %3634 = vmatpush1.msra.mxu0 %v263
    %3635 = vmatprep.subr.mxu0 %v260
    %3636 = vmatpush1.msra.mxu0 %v259
    %3637 = vmatprep.subr.mxu0 %v256
    %3638 = vmatpush1.msra.mxu0 %v255
    %3639 = vmatprep.subr.mxu0 %v252
    %3640 = vmatpush1.msra.mxu0 %v251
    %3641 = vmatprep.subr.mxu0 %v248
    %3642 = vmatpush1.msra.mxu0 %v247
    %3643 = vmatprep.subr.mxu0 %v244
    %3644 = vmatpush1.msra.mxu0 %v243
    %3645 = vmatprep.subr.mxu0 %v240
    %3646 = vmatpush1.msra.mxu0 %v239
    %3647 = vmatprep.subr.mxu0 %v236
    %3648 = vmatpush1.msra.mxu0 %v235
    %3649 = vmatprep.subr.mxu0 %v232
    %3650 = vmatpush1.msra.mxu0 %v231
    %3651 = vmatprep.subr.mxu0 %v228
    %3652 = vmatpush1.msra.mxu0 %v227
    %3653 = vmatprep.subr.mxu0 %v224
    %3654 = vmatpush1.msra.mxu0 %v223
    %3655 = vmatprep.subr.mxu0 %v220
    %3656 = vmatpush1.msra.mxu0 %v219
    %3657 = vmatprep.subr.mxu0 %v216
    %3658 = vmatpush1.msra.mxu0 %v215
    %3659 = vmatprep.subr.mxu0 %v212
    %3660 = vmatpush1.msra.mxu0 %v211
    %3661 = vmatprep.subr.mxu0 %v208
    %3662 = vmatpush1.msra.mxu0 %v207
    %3663 = vmatprep.subr.mxu0 %v204
    %3664 = vmatpush1.msra.mxu0 %v203
    %3665 = vmatprep.subr.mxu0 0.0
    %3666 = vmatpush2.msra.mxu0 0.0
    %3667 = vmatprep.subr.mxu0 0.0
    %3668 = vmatpush2.msra.mxu0 0.0
    %3669 = vmatprep.subr.mxu0 0.0
    %3670 = vmatpush2.msra.mxu0 0.0
    %3671 = vmatprep.subr.mxu0 0.0
    %3672 = vmatpush2.msra.mxu0 0.0
    %3673 = vmatprep.subr.mxu0 0.0
    %3674 = vmatpush2.msra.mxu0 0.0
    %3675 = vmatprep.subr.mxu0 0.0
    %3676 = vmatpush2.msra.mxu0 0.0
    %3677 = vmatprep.subr.mxu0 0.0
    %3678 = vmatpush2.msra.mxu0 0.0
    %3679 = vmatprep.subr.mxu0 0.0
    %3680 = vmatpush2.msra.mxu0 0.0
    %3681 = vmatprep.subr.mxu0 0.0
    %3682 = vmatpush2.msra.mxu0 0.0
    %3683 = vmatprep.subr.mxu0 0.0
    %3684 = vmatpush2.msra.mxu0 0.0
    %3685 = vmatprep.subr.mxu0 0.0
    %3686 = vmatpush2.msra.mxu0 0.0
    %3687 = vmatprep.subr.mxu0 0.0
    %3688 = vmatpush2.msra.mxu0 0.0
    %3689 = vmatprep.subr.mxu0 0.0
    %3690 = vmatpush2.msra.mxu0 0.0
    %3691 = vmatprep.subr.mxu0 0.0
    %3692 = vmatpush2.msra.mxu0 0.0
    %3693 = vmatprep.subr.mxu0 0.0
    %3694 = vmatpush2.msra.mxu0 0.0
    %3695 = vmatprep.subr.mxu0 0.0
    %3696 = vmatpush2.msra.mxu0 0.0
    %3697 = vmatprep.mubr.f32.mxu0 0.0
    %3698 = vmatmul.mubr.f32.gmra.mxu0 %v3462
    %v3699 = vpop.f32.mrf.mxu0
    %v3700 = vadd.f32 0.0, %v3699
    %v3701 = vpop.f32.mrf.mxu0
    %v3702 = vadd.f32 0.0, %v3701
    %3703 = vdwg.mxu0
    %3704 = vmatprep.subr.mxu0 %v266
    %3705 = vmatpush1.msra.mxu0 %v265
    %3706 = vmatprep.subr.mxu0 %v262
    %3707 = vmatpush1.msra.mxu0 %v261
    %3708 = vmatprep.subr.mxu0 %v258
    %3709 = vmatpush1.msra.mxu0 %v257
    %3710 = vmatprep.subr.mxu0 %v254
    %3711 = vmatpush1.msra.mxu0 %v253
    %3712 = vmatprep.subr.mxu0 %v250
    %3713 = vmatpush1.msra.mxu0 %v249
    %3714 = vmatprep.subr.mxu0 %v246
    %3715 = vmatpush1.msra.mxu0 %v245
    %3716 = vmatprep.subr.mxu0 %v242
    %3717 = vmatpush1.msra.mxu0 %v241
    %3718 = vmatprep.subr.mxu0 %v238
    %3719 = vmatpush1.msra.mxu0 %v237
    %3720 = vmatprep.subr.mxu0 %v234
    %3721 = vmatpush1.msra.mxu0 %v233
    %3722 = vmatprep.subr.mxu0 %v230
    %3723 = vmatpush1.msra.mxu0 %v229
    %3724 = vmatprep.subr.mxu0 %v226
    %3725 = vmatpush1.msra.mxu0 %v225
    %3726 = vmatprep.subr.mxu0 %v222
    %3727 = vmatpush1.msra.mxu0 %v221
    %3728 = vmatprep.subr.mxu0 %v218
    %3729 = vmatpush1.msra.mxu0 %v217
    %3730 = vmatprep.subr.mxu0 %v214
    %3731 = vmatpush1.msra.mxu0 %v213
    %3732 = vmatprep.subr.mxu0 %v210
    %3733 = vmatpush1.msra.mxu0 %v209
    %3734 = vmatprep.subr.mxu0 %v206
    %3735 = vmatpush1.msra.mxu0 %v205
    %3736 = vmatprep.subr.mxu0 0.0
    %3737 = vmatpush2.msra.mxu0 0.0
    %3738 = vmatprep.subr.mxu0 0.0
    %3739 = vmatpush2.msra.mxu0 0.0
    %3740 = vmatprep.subr.mxu0 0.0
    %3741 = vmatpush2.msra.mxu0 0.0
    %3742 = vmatprep.subr.mxu0 0.0
    %3743 = vmatpush2.msra.mxu0 0.0
    %3744 = vmatprep.subr.mxu0 0.0
    %3745 = vmatpush2.msra.mxu0 0.0
    %3746 = vmatprep.subr.mxu0 0.0
    %3747 = vmatpush2.msra.mxu0 0.0
    %3748 = vmatprep.subr.mxu0 0.0
    %3749 = vmatpush2.msra.mxu0 0.0
    %3750 = vmatprep.subr.mxu0 0.0
    %3751 = vmatpush2.msra.mxu0 0.0
    %3752 = vmatprep.subr.mxu0 0.0
    %3753 = vmatpush2.msra.mxu0 0.0
    %3754 = vmatprep.subr.mxu0 0.0
    %3755 = vmatpush2.msra.mxu0 0.0
    %3756 = vmatprep.subr.mxu0 0.0
    %3757 = vmatpush2.msra.mxu0 0.0
    %3758 = vmatprep.subr.mxu0 0.0
    %3759 = vmatpush2.msra.mxu0 0.0
    %3760 = vmatprep.subr.mxu0 0.0
    %3761 = vmatpush2.msra.mxu0 0.0
    %3762 = vmatprep.subr.mxu0 0.0
    %3763 = vmatpush2.msra.mxu0 0.0
    %3764 = vmatprep.subr.mxu0 0.0
    %3765 = vmatpush2.msra.mxu0 0.0
    %3766 = vmatprep.subr.mxu0 0.0
    %3767 = vmatpush2.msra.mxu0 0.0
    %3768 = vmatprep.mubr.f32.mxu0 0.0
    %3769 = vmatmul.mubr.f32.gmra.mxu0 %v3462
    %v3770 = vpop.f32.mrf.mxu0
    %v3771 = vadd.f32 0.0, %v3770
    %v3772 = vpop.f32.mrf.mxu0
    %v3773 = vadd.f32 0.0, %v3772
    %3774 = vdwg.mxu0
    %3775 = vmatprep.subr.mxu0 %v200
    %3776 = vmatpush1.msra.mxu0 %v199
    %3777 = vmatprep.subr.mxu0 %v196
    %3778 = vmatpush1.msra.mxu0 %v195
    %3779 = vmatprep.subr.mxu0 %v192
    %3780 = vmatpush1.msra.mxu0 %v191
    %3781 = vmatprep.subr.mxu0 %v188
    %3782 = vmatpush1.msra.mxu0 %v187
    %3783 = vmatprep.subr.mxu0 %v184
    %3784 = vmatpush1.msra.mxu0 %v183
    %3785 = vmatprep.subr.mxu0 %v180
    %3786 = vmatpush1.msra.mxu0 %v179
    %3787 = vmatprep.subr.mxu0 %v176
    %3788 = vmatpush1.msra.mxu0 %v175
    %3789 = vmatprep.subr.mxu0 %v172
    %3790 = vmatpush1.msra.mxu0 %v171
    %3791 = vmatprep.subr.mxu0 %v168
    %3792 = vmatpush1.msra.mxu0 %v167
    %3793 = vmatprep.subr.mxu0 %v164
    %3794 = vmatpush1.msra.mxu0 %v163
    %3795 = vmatprep.subr.mxu0 %v160
    %3796 = vmatpush1.msra.mxu0 %v159
    %3797 = vmatprep.subr.mxu0 %v156
    %3798 = vmatpush1.msra.mxu0 %v155
    %3799 = vmatprep.subr.mxu0 %v152
    %3800 = vmatpush1.msra.mxu0 %v151
    %3801 = vmatprep.subr.mxu0 %v148
    %3802 = vmatpush1.msra.mxu0 %v147
    %3803 = vmatprep.subr.mxu0 %v144
    %3804 = vmatpush1.msra.mxu0 %v143
    %3805 = vmatprep.subr.mxu0 %v140
    %3806 = vmatpush1.msra.mxu0 %v139
    %3807 = vmatprep.subr.mxu0 0.0
    %3808 = vmatpush2.msra.mxu0 0.0
    %3809 = vmatprep.subr.mxu0 0.0
    %3810 = vmatpush2.msra.mxu0 0.0
    %3811 = vmatprep.subr.mxu0 0.0
    %3812 = vmatpush2.msra.mxu0 0.0
    %3813 = vmatprep.subr.mxu0 0.0
    %3814 = vmatpush2.msra.mxu0 0.0
    %3815 = vmatprep.subr.mxu0 0.0
    %3816 = vmatpush2.msra.mxu0 0.0
    %3817 = vmatprep.subr.mxu0 0.0
    %3818 = vmatpush2.msra.mxu0 0.0
    %3819 = vmatprep.subr.mxu0 0.0
    %3820 = vmatpush2.msra.mxu0 0.0
    %3821 = vmatprep.subr.mxu0 0.0
    %3822 = vmatpush2.msra.mxu0 0.0
    %3823 = vmatprep.subr.mxu0 0.0
    %3824 = vmatpush2.msra.mxu0 0.0
    %3825 = vmatprep.subr.mxu0 0.0
    %3826 = vmatpush2.msra.mxu0 0.0
    %3827 = vmatprep.subr.mxu0 0.0
    %3828 = vmatpush2.msra.mxu0 0.0
    %3829 = vmatprep.subr.mxu0 0.0
    %3830 = vmatpush2.msra.mxu0 0.0
    %3831 = vmatprep.subr.mxu0 0.0
    %3832 = vmatpush2.msra.mxu0 0.0
    %3833 = vmatprep.subr.mxu0 0.0
    %3834 = vmatpush2.msra.mxu0 0.0
    %3835 = vmatprep.subr.mxu0 0.0
    %3836 = vmatpush2.msra.mxu0 0.0
    %3837 = vmatprep.subr.mxu0 0.0
    %3838 = vmatpush2.msra.mxu0 0.0
    %3839 = vmatprep.mubr.f32.mxu0 0.0
    %3840 = vmatmul.mubr.f32.gmra.mxu0 %v3632
    %v3841 = vpop.f32.mrf.mxu0
    %v3842 = vadd.f32 %v3700, %v3841
    %v3843 = vpop.f32.mrf.mxu0
    %v3844 = vadd.f32 %v3702, %v3843
    %3845 = vdwg.mxu0
    %3846 = vmatprep.subr.mxu0 %v202
    %3847 = vmatpush1.msra.mxu0 %v201
    %3848 = vmatprep.subr.mxu0 %v198
    %3849 = vmatpush1.msra.mxu0 %v197
    %3850 = vmatprep.subr.mxu0 %v194
    %3851 = vmatpush1.msra.mxu0 %v193
    %3852 = vmatprep.subr.mxu0 %v190
    %3853 = vmatpush1.msra.mxu0 %v189
    %3854 = vmatprep.subr.mxu0 %v186
    %3855 = vmatpush1.msra.mxu0 %v185
    %3856 = vmatprep.subr.mxu0 %v182
    %3857 = vmatpush1.msra.mxu0 %v181
    %3858 = vmatprep.subr.mxu0 %v178
    %3859 = vmatpush1.msra.mxu0 %v177
    %3860 = vmatprep.subr.mxu0 %v174
    %3861 = vmatpush1.msra.mxu0 %v173
    %3862 = vmatprep.subr.mxu0 %v170
    %3863 = vmatpush1.msra.mxu0 %v169
    %3864 = vmatprep.subr.mxu0 %v166
    %3865 = vmatpush1.msra.mxu0 %v165
    %3866 = vmatprep.subr.mxu0 %v162
    %3867 = vmatpush1.msra.mxu0 %v161
    %3868 = vmatprep.subr.mxu0 %v158
    %3869 = vmatpush1.msra.mxu0 %v157
    %3870 = vmatprep.subr.mxu0 %v154
    %3871 = vmatpush1.msra.mxu0 %v153
    %3872 = vmatprep.subr.mxu0 %v150
    %3873 = vmatpush1.msra.mxu0 %v149
    %3874 = vmatprep.subr.mxu0 %v146
    %3875 = vmatpush1.msra.mxu0 %v145
    %3876 = vmatprep.subr.mxu0 %v142
    %3877 = vmatpush1.msra.mxu0 %v141
    %3878 = vmatprep.subr.mxu0 0.0
    %3879 = vmatpush2.msra.mxu0 0.0
    %3880 = vmatprep.subr.mxu0 0.0
    %3881 = vmatpush2.msra.mxu0 0.0
    %3882 = vmatprep.subr.mxu0 0.0
    %3883 = vmatpush2.msra.mxu0 0.0
    %3884 = vmatprep.subr.mxu0 0.0
    %3885 = vmatpush2.msra.mxu0 0.0
    %3886 = vmatprep.subr.mxu0 0.0
    %3887 = vmatpush2.msra.mxu0 0.0
    %3888 = vmatprep.subr.mxu0 0.0
    %3889 = vmatpush2.msra.mxu0 0.0
    %3890 = vmatprep.subr.mxu0 0.0
    %3891 = vmatpush2.msra.mxu0 0.0
    %3892 = vmatprep.subr.mxu0 0.0
    %3893 = vmatpush2.msra.mxu0 0.0
    %3894 = vmatprep.subr.mxu0 0.0
    %3895 = vmatpush2.msra.mxu0 0.0
    %3896 = vmatprep.subr.mxu0 0.0
    %3897 = vmatpush2.msra.mxu0 0.0
    %3898 = vmatprep.subr.mxu0 0.0
    %3899 = vmatpush2.msra.mxu0 0.0
    %3900 = vmatprep.subr.mxu0 0.0
    %3901 = vmatpush2.msra.mxu0 0.0
    %3902 = vmatprep.subr.mxu0 0.0
    %3903 = vmatpush2.msra.mxu0 0.0
    %3904 = vmatprep.subr.mxu0 0.0
    %3905 = vmatpush2.msra.mxu0 0.0
    %3906 = vmatprep.subr.mxu0 0.0
    %3907 = vmatpush2.msra.mxu0 0.0
    %3908 = vmatprep.subr.mxu0 0.0
    %3909 = vmatpush2.msra.mxu0 0.0
    %3910 = vmatprep.mubr.f32.mxu0 0.0
    %3911 = vmatmul.mubr.f32.gmra.mxu0 %v3632
    %v3912 = vpop.f32.mrf.mxu0
    %v3913 = vadd.f32 %v3771, %v3912
    %v3914 = vpop.f32.mrf.mxu0
    %v3915 = vadd.f32 %v3773, %v3914
    %3916 = vdwg.mxu0
    %v3917 = vadd.f32 %v3842, %v554
    %v3918 = vadd.f32 %v3844, %v558
    %v3919 = vadd.f32 %v3913, %v562
    %v3920 = vadd.f32 %v3915, %v566
    %v3921 = vxor.u32 %v3917, 2147483648
    %v3922 = vmul.f32 %v3921, 1.442695
    %v3923 = vpow.pop %v3922
    %v3924 = vadd.f32 %v3923, 1.0
    %v3925 = vrcp.pop %v3924
    %v3926 = vmul.f32 1.0, %v3925
    %v3927 = vxor.u32 %v3918, 2147483648
    %v3928 = vmul.f32 %v3927, 1.442695
    %v3929 = vpow.pop %v3928
    %v3930 = vadd.f32 %v3929, 1.0
    %v3931 = vrcp.pop %v3930
    %v3932 = vmul.f32 1.0, %v3931
    %v3933 = vtanh.pop %v3919
    %v3934 = vxor.u32 %v3920, 2147483648
    %v3935 = vmul.f32 %v3934, 1.442695
    %v3936 = vpow.pop %v3935
    %v3937 = vadd.f32 %v3936, 1.0
    %v3938 = vrcp.pop %v3937
    %v3939 = vmul.f32 1.0, %v3938
    %v3940 = vmul.f32 %v3932, %v3460
    %v3941 = vmul.f32 %v3926, %v3933
    %v3942 = vadd.f32 %v3940, %v3941
    %v3943 = vtanh.pop %v3942
    %v3944 = vmul.f32 %v3939, %v3943
    %v3945 = vld [vmem:[%s7] sm:$0x1]
    %v3947 = vlaneseq
    %v3948 = vshrl.u32 %v3947, 7
    %v3949 = vsub.s32 0, %v3948
    %v3950 = vrot.slane %v3945, %v3949
    %v3952 = vmul.f32 %v3944, %v3950
    %3953 = vadd.xlane.f32.xlu0 %v3952
    %v3954 = vpop.xlane.xlu0 %3953
    %v3955 = vld [vmem:[#allocation2] sm:$0x1]
    %v3957 = vlaneseq
    %v3958 = vshrl.u32 %v3957, 7
    %v3959 = vsub.s32 0, %v3958
    %v3960 = vrot.slane %v3955, %v3959
    %v3962 = vadd.f32 %v3954, %v3960
    %vm3963 = vcmask 7168
    %3964 = vst.msk [vmem:[%s9] sm:$0xff] %vm3963, %v3962
    // Predicated region
    $region50: #{tpu_custom_call.1} parent=1 // pred_check
      _
    $region51: #{tpu_custom_call.1} parent=1 // pred_check_branch
      %3966 = sbr.rel (0) target = $region53
    $region52: #{tpu_custom_call.1} parent=1 // pred_region
      _
    $region53: #{tpu_custom_call.1} parent=1 // pred_fallthru
      _
    // Predicated region
    $region54: #{tpu_custom_call.1} parent=1 // pred_check
      _
    $region55: #{tpu_custom_call.1} parent=1 // pred_check_branch
      %3968 = sbr.rel (0) target = $region57
    $region56: #{tpu_custom_call.1} parent=1 // pred_region
      _
    $region57: #{tpu_custom_call.1} parent=1 // pred_fallthru
      _
    %3969 = vsyncpa [#allocation4], 1
    %3970 = vsyncpa [#allocation6], 1

</llo_original>
